<compile_context>
chip_gen: v6e
topology: v6e:2x2x1
jax: 0.10.0
libtpu: 0.0.40
codegen_flags: <defaults>
</compile_context>

<pallas_src>
import functools
import math

import jax
import jax.numpy as jnp
from jax.experimental import pallas as pl
from jax.experimental.pallas import tpu as pltpu

LN_EPS = 1e-5  # PyTorch nn.LayerNorm default


def _layernorm(x, w, b):
    mu = jnp.mean(x, axis=-1, keepdims=True)
    var = jnp.mean((x - mu) ** 2, axis=-1, keepdims=True)
    return (x - mu) * jax.lax.rsqrt(var + LN_EPS) * w + b


def _inter_encoder_kernel(B, L, H, dk,
                          tgt_ref, src_ref, vecs_ref,
                          wq_ref, wkv_ref, bqkv_ref, wo_ref,
                          w1_ref, b1_ref, w2_ref,
                          out_ref):
    f32, bf16 = jnp.float32, jnp.bfloat16
    N, D = B * L, H * dk
    BH = B * H
    DK = src_ref.shape[-1]

    tgt = tgt_ref[...]                        # (N, D)     f32
    src = src_ref[...]                        # (B, L, DK) bf16

    vecs = vecs_ref[...]                      # (8, D)     f32, packed 1-D params
    n1w, n1b = vecs[0:1, :], vecs[1:2, :]
    n2w, n2b = vecs[2:3, :], vecs[3:4, :]
    bo,  b2  = vecs[4:5, :], vecs[5:6, :]

    bqkv = bqkv_ref[...]                      # (3H, 1, dk) f32  [bq | bk | bv] head-major
    bq_h = bqkv[0:H]                          # (H, 1, dk)
    bkv_h = bqkv[H:]                          # (2H, 1, dk)

    # ---- tgt2 = norm1(tgt) ----
    tgt2 = _layernorm(tgt, n1w, n1b)          # (N, D) f32

    # ---- multi-head attention, batched over (batch, head) ----
    # Q projection: (BH, L, D) @ (BH, D, dk) -> head-major q, no transposes needed.
    tgt2_b = jnp.broadcast_to(tgt2.reshape(B, 1, L, D),
                              (B, H, L, D)).reshape(BH, L, D).astype(bf16)
    wq_b = jnp.broadcast_to(wq_ref[...][None], (B, H, D, dk)).reshape(BH, D, dk)
    bq_b = jnp.broadcast_to(bq_h[None], (B, H, 1, dk)).reshape(BH, 1, dk)
    q = jnp.einsum('bld,bdk->blk', tgt2_b, wq_b,
                   preferred_element_type=f32) + bq_b             # (BH, L, dk) f32

    # Fused K|V projection: one batched matmul over 2*B*H "heads".
    src_b = jnp.broadcast_to(src[:, None], (B, 2 * H, L, DK)
                             ).reshape(2 * BH, L, DK)
    wkv_b = jnp.broadcast_to(wkv_ref[...][None], (B, 2 * H, DK, dk)
                             ).reshape(2 * BH, DK, dk)
    bkv_b = jnp.broadcast_to(bkv_h[None], (B, 2 * H, 1, dk)
                             ).reshape(2 * BH, 1, dk)
    kv = jnp.einsum('bld,bdk->blk', src_b, wkv_b,
                    preferred_element_type=f32) + bkv_b           # (2BH, L, dk) f32
    kv = kv.reshape(B, 2 * H, L, dk)
    k = kv[:, :H].reshape(BH, L, dk).astype(bf16)
    v = kv[:, H:].reshape(BH, L, dk).astype(bf16)

    # Scores + softmax (bf16 MXU operands, f32 elementwise).
    scale = 1.0 / math.sqrt(dk)
    s = jnp.einsum('bqd,bkd->bqk', q.astype(bf16), k,
                   preferred_element_type=f32) * scale            # (BH, L, L)
    s = s - jnp.max(s, axis=-1, keepdims=True)
    p = jnp.exp(s)
    p = p * pl.reciprocal(jnp.sum(p, axis=-1, keepdims=True), approx=True)
    o = jnp.einsum('bqk,bkd->bqd', p.astype(bf16), v,
                   preferred_element_type=f32)                    # (BH, L, dk)

    # Output projection: per-(batch,head) matmul, then sum heads over a leading dim.
    wo_b = jnp.broadcast_to(wo_ref[...][None], (B, H, dk, D)).reshape(BH, dk, D)
    attn = jnp.einsum('bld,bdm->blm', o.astype(bf16), wo_b,
                      preferred_element_type=f32)                 # (BH, L, D)
    attn = attn.reshape(B, H, L, D).sum(axis=1).reshape(N, D) + bo

    # ---- residual + FFN + residual + final norm (dropouts are identity) ----
    x = tgt + attn
    x2 = _layernorm(x, n2w, n2b)
    h1 = jnp.dot(x2.astype(bf16), w1_ref[...],
                 preferred_element_type=f32) + b1_ref[...]        # (N, F)
    h1 = jnp.maximum(h1, 0.0)
    ff = jnp.dot(h1.astype(bf16), w2_ref[...],
                 preferred_element_type=f32) + b2                 # (N, D)
    x = _layernorm(x + ff, n2w, n2b)          # note: norm2 reused (as in source module)

    out_ref[...] = x.astype(out_ref.dtype)


def inter_encoder_layer(src, tgt, params, heads):
    """src: (B, L, d_k_in), tgt: (B, L, d_model) -> (B, L, d_model)."""
    B, L, D = tgt.shape
    _, _, DK = src.shape
    H = heads
    dk = D // H
    N = B * L
    Fd = params["w1"].shape[1]
    f32, bf16 = jnp.float32, jnp.bfloat16

    # Head-major, bf16 weight re-arrangements (plain XLA, outside the kernel; free).
    wq_h = params["wq"].reshape(D, H, dk).transpose(1, 0, 2).astype(bf16)      # (H, D, dk)
    wk_h = params["wk"].reshape(DK, H, dk).transpose(1, 0, 2)
    wv_h = params["wv"].reshape(DK, H, dk).transpose(1, 0, 2)
    wkv_h = jnp.concatenate([wk_h, wv_h], axis=0).astype(bf16)                 # (2H, DK, dk)
    wo_h = params["wo"].reshape(H, dk, D).astype(bf16)                         # (H, dk, D)
    w1 = params["w1"].astype(bf16)                                             # (D, F)
    w2 = params["w2"].astype(bf16)                                             # (F, D)

    # All Q/K/V biases in one head-major ref (one DMA).
    bqkv_h = jnp.concatenate([params["bq"].reshape(H, 1, dk),
                              params["bk"].reshape(H, 1, dk),
                              params["bv"].reshape(H, 1, dk)], axis=0).astype(f32)  # (3H,1,dk)
    b1 = params["b1"].reshape(1, Fd).astype(f32)

    # Remaining 1-D params packed into a single (8, D) block (one DMA instead of many).
    zero = jnp.zeros((D,), f32)
    vecs = jnp.stack([params["n1w"], params["n1b"],
                      params["n2w"], params["n2b"],
                      params["bo"], params["b2"], zero, zero]).astype(f32)     # (8, D)

    tgt2d = tgt.reshape(N, D).astype(f32)     # batch fused into the row dim
    src3 = src.astype(bf16)                   # (B, L, DK) bf16 in HBM (halves DMA)

    args = (tgt2d, src3, vecs, wq_h, wkv_h, bqkv_h, wo_h, w1, b1, w2)

    def full(a):
        nd = a.ndim
        return pl.BlockSpec(a.shape, lambda i, _nd=nd: (0,) * _nd)

    kernel = functools.partial(_inter_encoder_kernel, B, L, H, dk)
    out = pl.pallas_call(
        kernel,
        grid=(1,),                            # whole (B*L) slab in one step
        in_specs=[full(a) for a in args],
        out_specs=pl.BlockSpec((N, D), lambda i: (0, 0)),
        out_shape=jax.ShapeDtypeStruct((N, D), f32),
        compiler_params=pltpu.CompilerParams(
            dimension_semantics=("arbitrary",)),
        # TODO(synk): at production sizes (large d_model/d_ff/L), tile rows and d_ff with
        # extra grid axes ("parallel" for megacore, "arbitrary" reduction) and set
        # vmem_limit_bytes; unnecessary at these shapes (everything fits VMEM trivially).
    )(*args)
    return out.reshape(B, L, D)


def ref_forward(src, tgt, p, heads):
    """Pure-JAX f32 reference (mirrors the PyTorch module in eval mode)."""
    B, L, D = tgt.shape
    dk = D // heads

    def ln(x, w, b):
        mu = jnp.mean(x, -1, keepdims=True)
        var = jnp.mean((x - mu) ** 2, -1, keepdims=True)
        return (x - mu) / jnp.sqrt(var + LN_EPS) * w + b

    tgt2 = ln(tgt, p["n1w"], p["n1b"])
    q = (tgt2 @ p["wq"] + p["bq"]).reshape(B, L, heads, dk).transpose(0, 2, 1, 3)
    k = (src @ p["wk"] + p["bk"]).reshape(B, L, heads, dk).transpose(0, 2, 1, 3)
    v = (src @ p["wv"] + p["bv"]).reshape(B, L, heads, dk).transpose(0, 2, 1, 3)
    s = jnp.einsum("bhqd,bhkd->bhqk", q, k) / math.sqrt(dk)
    a = jax.nn.softmax(s, axis=-1)
    o = jnp.einsum("bhqk,bhkd->bhqd", a, v).transpose(0, 2, 1, 3).reshape(B, L, D)
    o = o @ p["wo"] + p["bo"]
    t = tgt + o
    t2 = ln(t, p["n2w"], p["n2b"])
    t2 = jnp.maximum(t2 @ p["w1"] + p["b1"], 0.0) @ p["w2"] + p["b2"]
    t = t + t2
    return ln(t, p["n2w"], p["n2b"])


def init_params(key, d_model, d_ff, d_k_in, d_v_in):
    ks = jax.random.split(key, 12)
    g = lambda k, shp, s=0.1: (jax.random.normal(k, shp, jnp.float32) * s)
    return {
        "n1w": 1.0 + g(ks[0], (d_model,), 0.05),
        "n1b": g(ks[1], (d_model,), 0.05),
        "wq": g(ks[2], (d_model, d_model)), "bq": g(ks[3], (d_model,), 0.02),
        "wk": g(ks[4], (d_k_in, d_model)), "bk": g(ks[5], (d_model,), 0.02),
        "wv": g(ks[6], (d_v_in, d_model)), "bv": g(ks[7], (d_model,), 0.02),
        "wo": g(ks[8], (d_model, d_model)), "bo": g(ks[9], (d_model,), 0.02),
        "w1": g(ks[10], (d_model, d_ff)), "b1": jnp.zeros((d_ff,), jnp.float32),
        "w2": g(ks[11], (d_ff, d_model)), "b2": jnp.zeros((d_model,), jnp.float32),
        "n2w": jnp.ones((d_model,), jnp.float32),
        "n2b": jnp.zeros((d_model,), jnp.float32),
    }


if __name__ == "__main__":
    B, L = 2, 8
    d_model, d_ff, heads = 32, 64, 4
    d_k_in = d_v_in = 16  # src feeds both to_key and to_value, so d_k == d_v

    key = jax.random.PRNGKey(0)
    k_src, k_tgt, k_par = jax.random.split(key, 3)
    src = jax.random.normal(k_src, (B, L, d_k_in), jnp.float32)
    tgt = jax.random.normal(k_tgt, (B, L, d_model), jnp.float32)
    params = init_params(k_par, d_model, d_ff, d_k_in, d_v_in)

    out = inter_encoder_layer(src, tgt, params, heads)
    out = jax.block_until_ready(out)

    ref = ref_forward(src, tgt, params, heads)
    assert out.shape == (B, L, d_model)
    err = float(jnp.max(jnp.abs(out - ref)))
    # bf16 MXU operands + approx reciprocal => looser tolerance than a pure-f32 path.
    assert jnp.allclose(out, ref, atol=5e-2, rtol=5e-2), f"max abs diff {err}"

    print("KERNEL_OK")
</pallas_src>

<mosaic_0001>
module attributes {stable_mosaic.version = 11 : i64} {
  func.func @_inter_encoder_kernel(%arg0: i32, %arg1: memref<16x32xf32, #tpu.memory_space<vmem>>, %arg2: memref<2x8x16xbf16, #tpu.memory_space<vmem>>, %arg3: memref<8x32xf32, #tpu.memory_space<vmem>>, %arg4: memref<4x32x8xbf16, #tpu.memory_space<vmem>>, %arg5: memref<8x16x8xbf16, #tpu.memory_space<vmem>>, %arg6: memref<12x1x8xf32, #tpu.memory_space<vmem>>, %arg7: memref<4x8x32xbf16, #tpu.memory_space<vmem>>, %arg8: memref<32x64xbf16, #tpu.memory_space<vmem>>, %arg9: memref<1x64xf32, #tpu.memory_space<vmem>>, %arg10: memref<64x32xbf16, #tpu.memory_space<vmem>>, %arg11: memref<16x32xf32, #tpu.memory_space<vmem>>) attributes {dimension_semantics = [#tpu.dimension_semantics<arbitrary>], iteration_bounds = array<i64: 1>, scalar_prefetch = 0 : i64, scratch_operands = 0 : i64, tpu.core_type = #tpu.core_type<tc>, window_params = [{pipeline_mode = #tpu.pipeline_mode<synchronous>, transform_indices = @transform_0, window_bounds = array<i64: 16, 32>}, {pipeline_mode = #tpu.pipeline_mode<synchronous>, transform_indices = @transform_1, window_bounds = array<i64: 2, 8, 16>}, {pipeline_mode = #tpu.pipeline_mode<synchronous>, transform_indices = @transform_2, window_bounds = array<i64: 8, 32>}, {pipeline_mode = #tpu.pipeline_mode<synchronous>, transform_indices = @transform_3, window_bounds = array<i64: 4, 32, 8>}, {pipeline_mode = #tpu.pipeline_mode<synchronous>, transform_indices = @transform_4, window_bounds = array<i64: 8, 16, 8>}, {pipeline_mode = #tpu.pipeline_mode<synchronous>, transform_indices = @transform_5, window_bounds = array<i64: 12, 1, 8>}, {pipeline_mode = #tpu.pipeline_mode<synchronous>, transform_indices = @transform_6, window_bounds = array<i64: 4, 8, 32>}, {pipeline_mode = #tpu.pipeline_mode<synchronous>, transform_indices = @transform_7, window_bounds = array<i64: 32, 64>}, {pipeline_mode = #tpu.pipeline_mode<synchronous>, transform_indices = @transform_8, window_bounds = array<i64: 1, 64>}, {pipeline_mode = #tpu.pipeline_mode<synchronous>, transform_indices = @transform_9, window_bounds = array<i64: 64, 32>}, {pipeline_mode = #tpu.pipeline_mode<synchronous>, transform_indices = @transform_10, window_bounds = array<i64: 16, 32>}]} {
    %c0 = arith.constant 0 : index
    %c0_0 = arith.constant 0 : index
    %0 = vector.load %arg1[%c0, %c0_0] : memref<16x32xf32, #tpu.memory_space<vmem>>, vector<16x32xf32>
    %c0_1 = arith.constant 0 : index
    %c0_2 = arith.constant 0 : index
    %c0_3 = arith.constant 0 : index
    %1 = vector.load %arg2[%c0_1, %c0_2, %c0_3] : memref<2x8x16xbf16, #tpu.memory_space<vmem>>, vector<2x8x16xbf16>
    %c0_4 = arith.constant 0 : index
    %c0_5 = arith.constant 0 : index
    %2 = vector.load %arg3[%c0_4, %c0_5] : memref<8x32xf32, #tpu.memory_space<vmem>>, vector<8x32xf32>
    %3 = vector.extract_strided_slice %2 {offsets = [0, 0], sizes = [1, 32], strides = [1, 1]} : vector<8x32xf32> to vector<1x32xf32>
    %4 = vector.extract_strided_slice %2 {offsets = [1, 0], sizes = [1, 32], strides = [1, 1]} : vector<8x32xf32> to vector<1x32xf32>
    %5 = vector.extract_strided_slice %2 {offsets = [2, 0], sizes = [1, 32], strides = [1, 1]} : vector<8x32xf32> to vector<1x32xf32>
    %6 = vector.extract_strided_slice %2 {offsets = [3, 0], sizes = [1, 32], strides = [1, 1]} : vector<8x32xf32> to vector<1x32xf32>
    %7 = vector.extract_strided_slice %2 {offsets = [4, 0], sizes = [1, 32], strides = [1, 1]} : vector<8x32xf32> to vector<1x32xf32>
    %8 = vector.extract_strided_slice %2 {offsets = [5, 0], sizes = [1, 32], strides = [1, 1]} : vector<8x32xf32> to vector<1x32xf32>
    %c0_6 = arith.constant 0 : index
    %c0_7 = arith.constant 0 : index
    %c0_8 = arith.constant 0 : index
    %9 = vector.load %arg6[%c0_6, %c0_7, %c0_8] : memref<12x1x8xf32, #tpu.memory_space<vmem>>, vector<12x1x8xf32>
    %10 = vector.extract_strided_slice %9 {offsets = [0, 0, 0], sizes = [4, 1, 8], strides = [1, 1, 1]} : vector<12x1x8xf32> to vector<4x1x8xf32>
    %11 = vector.extract_strided_slice %9 {offsets = [4, 0, 0], sizes = [8, 1, 8], strides = [1, 1, 1]} : vector<12x1x8xf32> to vector<8x1x8xf32>
    %cst = arith.constant dense<0.000000e+00> : vector<16xf32>
    %12 = vector.multi_reduction <add>, %0, %cst [1] : vector<16x32xf32> to vector<16xf32>
    %13 = vector.shape_cast %12 : vector<16xf32> to vector<16x1xf32>
    %cst_9 = arith.constant 3.200000e+01 : f32
    %14 = vector.broadcast %cst_9 : f32 to vector<16x1xf32>
    %15 = arith.divf %13, %14 : vector<16x1xf32>
    %16 = vector.broadcast %15 : vector<16x1xf32> to vector<16x32xf32>
    %17 = arith.subf %0, %16 : vector<16x32xf32>
    %18 = arith.mulf %17, %17 : vector<16x32xf32>
    %cst_10 = arith.constant dense<0.000000e+00> : vector<16xf32>
    %19 = vector.multi_reduction <add>, %18, %cst_10 [1] : vector<16x32xf32> to vector<16xf32>
    %20 = vector.shape_cast %19 : vector<16xf32> to vector<16x1xf32>
    %cst_11 = arith.constant 3.200000e+01 : f32
    %21 = vector.broadcast %cst_11 : f32 to vector<16x1xf32>
    %22 = arith.divf %20, %21 : vector<16x1xf32>
    %23 = vector.broadcast %15 : vector<16x1xf32> to vector<16x32xf32>
    %24 = arith.subf %0, %23 : vector<16x32xf32>
    %cst_12 = arith.constant 9.99999974E-6 : f32
    %25 = vector.broadcast %cst_12 : f32 to vector<16x1xf32>
    %26 = arith.addf %22, %25 : vector<16x1xf32>
    %27 = math.rsqrt %26 : vector<16x1xf32>
    %28 = vector.broadcast %27 : vector<16x1xf32> to vector<16x32xf32>
    %29 = arith.mulf %24, %28 : vector<16x32xf32>
    %30 = vector.broadcast %3 : vector<1x32xf32> to vector<16x32xf32>
    %31 = arith.mulf %29, %30 : vector<16x32xf32>
    %32 = vector.broadcast %4 : vector<1x32xf32> to vector<16x32xf32>
    %33 = arith.addf %31, %32 : vector<16x32xf32>
    %34 = vector.shape_cast %33 : vector<16x32xf32> to vector<2x1x8x32xf32>
    %35 = vector.shape_cast %34 : vector<2x1x8x32xf32> to vector<2x1x8x32xf32>
    %36 = vector.broadcast %35 : vector<2x1x8x32xf32> to vector<2x4x8x32xf32>
    %37 = vector.shape_cast %36 : vector<2x4x8x32xf32> to vector<8x8x32xf32>
    %38 = arith.truncf %37 : vector<8x8x32xf32> to vector<8x8x32xbf16>
    %c0_13 = arith.constant 0 : index
    %c0_14 = arith.constant 0 : index
    %c0_15 = arith.constant 0 : index
    %39 = vector.load %arg4[%c0_13, %c0_14, %c0_15] : memref<4x32x8xbf16, #tpu.memory_space<vmem>>, vector<4x32x8xbf16>
    %40 = vector.shape_cast %39 : vector<4x32x8xbf16> to vector<1x4x32x8xbf16>
    %41 = vector.shape_cast %40 : vector<1x4x32x8xbf16> to vector<1x4x32x8xbf16>
    %42 = vector.broadcast %41 : vector<1x4x32x8xbf16> to vector<2x4x32x8xbf16>
    %43 = vector.shape_cast %42 : vector<2x4x32x8xbf16> to vector<8x32x8xbf16>
    %44 = vector.shape_cast %10 : vector<4x1x8xf32> to vector<1x4x1x8xf32>
    %45 = vector.shape_cast %44 : vector<1x4x1x8xf32> to vector<1x4x1x8xf32>
    %46 = vector.broadcast %45 : vector<1x4x1x8xf32> to vector<2x4x1x8xf32>
    %47 = vector.shape_cast %46 : vector<2x4x1x8xf32> to vector<8x1x8xf32>
    "tpu.trace_start"() <{level = 10 : i32, message = "bld,bdk->blk"}> : () -> ()
    %cst_16 = arith.constant dense<0.000000e+00> : vector<8x8x8xf32>
    %48 = tpu.matmul %38, %43, %cst_16 {dimension_numbers = #tpu.dot_dimension_numbers<[2], [1], [1], [2], [0, 0, 0, 1, 1, 2], [0], [0]>} : vector<8x8x32xbf16>, vector<8x32x8xbf16>, vector<8x8x8xf32> -> vector<8x8x8xf32>
    "tpu.trace_stop"() : () -> ()
    %49 = vector.broadcast %47 : vector<8x1x8xf32> to vector<8x8x8xf32>
    %50 = arith.addf %48, %49 : vector<8x8x8xf32>
    %51 = vector.shape_cast %1 : vector<2x8x16xbf16> to vector<2x1x8x16xbf16>
    %52 = vector.shape_cast %51 : vector<2x1x8x16xbf16> to vector<2x1x8x16xbf16>
    %53 = vector.broadcast %52 : vector<2x1x8x16xbf16> to vector<2x8x8x16xbf16>
    %54 = vector.shape_cast %53 : vector<2x8x8x16xbf16> to vector<16x8x16xbf16>
    %c0_17 = arith.constant 0 : index
    %c0_18 = arith.constant 0 : index
    %c0_19 = arith.constant 0 : index
    %55 = vector.load %arg5[%c0_17, %c0_18, %c0_19] : memref<8x16x8xbf16, #tpu.memory_space<vmem>>, vector<8x16x8xbf16>
    %56 = vector.shape_cast %55 : vector<8x16x8xbf16> to vector<1x8x16x8xbf16>
    %57 = vector.shape_cast %56 : vector<1x8x16x8xbf16> to vector<1x8x16x8xbf16>
    %58 = vector.broadcast %57 : vector<1x8x16x8xbf16> to vector<2x8x16x8xbf16>
    %59 = vector.shape_cast %58 : vector<2x8x16x8xbf16> to vector<16x16x8xbf16>
    %60 = vector.shape_cast %11 : vector<8x1x8xf32> to vector<1x8x1x8xf32>
    %61 = vector.shape_cast %60 : vector<1x8x1x8xf32> to vector<1x8x1x8xf32>
    %62 = vector.broadcast %61 : vector<1x8x1x8xf32> to vector<2x8x1x8xf32>
    %63 = vector.shape_cast %62 : vector<2x8x1x8xf32> to vector<16x1x8xf32>
    "tpu.trace_start"() <{level = 10 : i32, message = "bld,bdk->blk"}> : () -> ()
    %cst_20 = arith.constant dense<0.000000e+00> : vector<16x8x8xf32>
    %64 = tpu.matmul %54, %59, %cst_20 {dimension_numbers = #tpu.dot_dimension_numbers<[2], [1], [1], [2], [0, 0, 0, 1, 1, 2], [0], [0]>} : vector<16x8x16xbf16>, vector<16x16x8xbf16>, vector<16x8x8xf32> -> vector<16x8x8xf32>
    "tpu.trace_stop"() : () -> ()
    %65 = vector.broadcast %63 : vector<16x1x8xf32> to vector<16x8x8xf32>
    %66 = arith.addf %64, %65 : vector<16x8x8xf32>
    %67 = vector.shape_cast %66 : vector<16x8x8xf32> to vector<2x8x8x8xf32>
    %68 = vector.extract_strided_slice %67 {offsets = [0, 0, 0, 0], sizes = [2, 4, 8, 8], strides = [1, 1, 1, 1]} : vector<2x8x8x8xf32> to vector<2x4x8x8xf32>
    %69 = vector.shape_cast %68 : vector<2x4x8x8xf32> to vector<8x8x8xf32>
    %70 = arith.truncf %69 : vector<8x8x8xf32> to vector<8x8x8xbf16>
    %71 = vector.extract_strided_slice %67 {offsets = [0, 4, 0, 0], sizes = [2, 4, 8, 8], strides = [1, 1, 1, 1]} : vector<2x8x8x8xf32> to vector<2x4x8x8xf32>
    %72 = vector.shape_cast %71 : vector<2x4x8x8xf32> to vector<8x8x8xf32>
    %73 = arith.truncf %72 : vector<8x8x8xf32> to vector<8x8x8xbf16>
    %74 = arith.truncf %50 : vector<8x8x8xf32> to vector<8x8x8xbf16>
    "tpu.trace_start"() <{level = 10 : i32, message = "bqd,bkd->bqk"}> : () -> ()
    %cst_21 = arith.constant dense<0.000000e+00> : vector<8x8x8xf32>
    %75 = tpu.matmul %74, %70, %cst_21 {dimension_numbers = #tpu.dot_dimension_numbers<[2], [2], [1], [1], [0, 0, 0, 1, 1, 1], [0], [0]>} : vector<8x8x8xbf16>, vector<8x8x8xbf16>, vector<8x8x8xf32> -> vector<8x8x8xf32>
    "tpu.trace_stop"() : () -> ()
    %cst_22 = arith.constant 0.353553385 : f32
    %76 = vector.broadcast %cst_22 : f32 to vector<8x8x8xf32>
    %77 = arith.mulf %75, %76 : vector<8x8x8xf32>
    %cst_23 = arith.constant dense<0xFF800000> : vector<8x8xf32>
    %78 = vector.multi_reduction <maximumf>, %77, %cst_23 [2] : vector<8x8x8xf32> to vector<8x8xf32>
    %79 = vector.shape_cast %78 : vector<8x8xf32> to vector<8x8x1xf32>
    %80 = vector.broadcast %79 : vector<8x8x1xf32> to vector<8x8x8xf32>
    %81 = arith.subf %77, %80 : vector<8x8x8xf32>
    %82 = math.exp %81 : vector<8x8x8xf32>
    %cst_24 = arith.constant dense<0.000000e+00> : vector<8x8xf32>
    %83 = vector.multi_reduction <add>, %82, %cst_24 [2] : vector<8x8x8xf32> to vector<8x8xf32>
    %84 = vector.shape_cast %83 : vector<8x8xf32> to vector<8x8x1xf32>
    %85 = tpu.reciprocal %84 {approx = true} : vector<8x8x1xf32> -> vector<8x8x1xf32>
    %86 = vector.broadcast %85 : vector<8x8x1xf32> to vector<8x8x8xf32>
    %87 = arith.mulf %82, %86 : vector<8x8x8xf32>
    %88 = arith.truncf %87 : vector<8x8x8xf32> to vector<8x8x8xbf16>
    "tpu.trace_start"() <{level = 10 : i32, message = "bqk,bkd->bqd"}> : () -> ()
    %cst_25 = arith.constant dense<0.000000e+00> : vector<8x8x8xf32>
    %89 = tpu.matmul %88, %73, %cst_25 {dimension_numbers = #tpu.dot_dimension_numbers<[2], [1], [1], [2], [0, 0, 0, 1, 1, 2], [0], [0]>} : vector<8x8x8xbf16>, vector<8x8x8xbf16>, vector<8x8x8xf32> -> vector<8x8x8xf32>
    "tpu.trace_stop"() : () -> ()
    %c0_26 = arith.constant 0 : index
    %c0_27 = arith.constant 0 : index
    %c0_28 = arith.constant 0 : index
    %90 = vector.load %arg7[%c0_26, %c0_27, %c0_28] : memref<4x8x32xbf16, #tpu.memory_space<vmem>>, vector<4x8x32xbf16>
    %91 = vector.shape_cast %90 : vector<4x8x32xbf16> to vector<1x4x8x32xbf16>
    %92 = vector.shape_cast %91 : vector<1x4x8x32xbf16> to vector<1x4x8x32xbf16>
    %93 = vector.broadcast %92 : vector<1x4x8x32xbf16> to vector<2x4x8x32xbf16>
    %94 = vector.shape_cast %93 : vector<2x4x8x32xbf16> to vector<8x8x32xbf16>
    %95 = arith.truncf %89 : vector<8x8x8xf32> to vector<8x8x8xbf16>
    "tpu.trace_start"() <{level = 10 : i32, message = "bld,bdm->blm"}> : () -> ()
    %cst_29 = arith.constant dense<0.000000e+00> : vector<8x8x32xf32>
    %96 = tpu.matmul %95, %94, %cst_29 {dimension_numbers = #tpu.dot_dimension_numbers<[2], [1], [1], [2], [0, 0, 0, 1, 1, 2], [0], [0]>} : vector<8x8x8xbf16>, vector<8x8x32xbf16>, vector<8x8x32xf32> -> vector<8x8x32xf32>
    "tpu.trace_stop"() : () -> ()
    %97 = vector.shape_cast %96 : vector<8x8x32xf32> to vector<2x4x8x32xf32>
    %cst_30 = arith.constant dense<0.000000e+00> : vector<2x8x32xf32>
    %98 = vector.multi_reduction <add>, %97, %cst_30 [1] : vector<2x4x8x32xf32> to vector<2x8x32xf32>
    %99 = vector.shape_cast %98 : vector<2x8x32xf32> to vector<16x32xf32>
    %100 = vector.broadcast %7 : vector<1x32xf32> to vector<16x32xf32>
    %101 = arith.addf %99, %100 : vector<16x32xf32>
    %102 = arith.addf %0, %101 : vector<16x32xf32>
    %cst_31 = arith.constant dense<0.000000e+00> : vector<16xf32>
    %103 = vector.multi_reduction <add>, %102, %cst_31 [1] : vector<16x32xf32> to vector<16xf32>
    %104 = vector.shape_cast %103 : vector<16xf32> to vector<16x1xf32>
    %cst_32 = arith.constant 3.200000e+01 : f32
    %105 = vector.broadcast %cst_32 : f32 to vector<16x1xf32>
    %106 = arith.divf %104, %105 : vector<16x1xf32>
    %107 = vector.broadcast %106 : vector<16x1xf32> to vector<16x32xf32>
    %108 = arith.subf %102, %107 : vector<16x32xf32>
    %109 = arith.mulf %108, %108 : vector<16x32xf32>
    %cst_33 = arith.constant dense<0.000000e+00> : vector<16xf32>
    %110 = vector.multi_reduction <add>, %109, %cst_33 [1] : vector<16x32xf32> to vector<16xf32>
    %111 = vector.shape_cast %110 : vector<16xf32> to vector<16x1xf32>
    %cst_34 = arith.constant 3.200000e+01 : f32
    %112 = vector.broadcast %cst_34 : f32 to vector<16x1xf32>
    %113 = arith.divf %111, %112 : vector<16x1xf32>
    %114 = vector.broadcast %106 : vector<16x1xf32> to vector<16x32xf32>
    %115 = arith.subf %102, %114 : vector<16x32xf32>
    %cst_35 = arith.constant 9.99999974E-6 : f32
    %116 = vector.broadcast %cst_35 : f32 to vector<16x1xf32>
    %117 = arith.addf %113, %116 : vector<16x1xf32>
    %118 = math.rsqrt %117 : vector<16x1xf32>
    %119 = vector.broadcast %118 : vector<16x1xf32> to vector<16x32xf32>
    %120 = arith.mulf %115, %119 : vector<16x32xf32>
    %121 = vector.broadcast %5 : vector<1x32xf32> to vector<16x32xf32>
    %122 = arith.mulf %120, %121 : vector<16x32xf32>
    %123 = vector.broadcast %6 : vector<1x32xf32> to vector<16x32xf32>
    %124 = arith.addf %122, %123 : vector<16x32xf32>
    %125 = arith.truncf %124 : vector<16x32xf32> to vector<16x32xbf16>
    %c0_36 = arith.constant 0 : index
    %c0_37 = arith.constant 0 : index
    %126 = vector.load %arg8[%c0_36, %c0_37] : memref<32x64xbf16, #tpu.memory_space<vmem>>, vector<32x64xbf16>
    %cst_38 = arith.constant dense<0.000000e+00> : vector<16x64xf32>
    %127 = tpu.matmul %125, %126, %cst_38 {dimension_numbers = #tpu.dot_dimension_numbers<[1], [0], [0], [1], [0, 0, 1, 1], [], []>} : vector<16x32xbf16>, vector<32x64xbf16>, vector<16x64xf32> -> vector<16x64xf32>
    %c0_39 = arith.constant 0 : index
    %c0_40 = arith.constant 0 : index
    %128 = vector.load %arg9[%c0_39, %c0_40] : memref<1x64xf32, #tpu.memory_space<vmem>>, vector<1x64xf32>
    %129 = vector.broadcast %128 : vector<1x64xf32> to vector<16x64xf32>
    %130 = arith.addf %127, %129 : vector<16x64xf32>
    %cst_41 = arith.constant 0.000000e+00 : f32
    %131 = vector.broadcast %cst_41 : f32 to vector<16x64xf32>
    %132 = arith.maximumf %130, %131 : vector<16x64xf32>
    %133 = arith.truncf %132 : vector<16x64xf32> to vector<16x64xbf16>
    %c0_42 = arith.constant 0 : index
    %c0_43 = arith.constant 0 : index
    %134 = vector.load %arg10[%c0_42, %c0_43] : memref<64x32xbf16, #tpu.memory_space<vmem>>, vector<64x32xbf16>
    %cst_44 = arith.constant dense<0.000000e+00> : vector<16x32xf32>
    %135 = tpu.matmul %133, %134, %cst_44 {dimension_numbers = #tpu.dot_dimension_numbers<[1], [0], [0], [1], [0, 0, 1, 1], [], []>} : vector<16x64xbf16>, vector<64x32xbf16>, vector<16x32xf32> -> vector<16x32xf32>
    %136 = vector.broadcast %8 : vector<1x32xf32> to vector<16x32xf32>
    %137 = arith.addf %135, %136 : vector<16x32xf32>
    %138 = arith.addf %102, %137 : vector<16x32xf32>
    %cst_45 = arith.constant dense<0.000000e+00> : vector<16xf32>
    %139 = vector.multi_reduction <add>, %138, %cst_45 [1] : vector<16x32xf32> to vector<16xf32>
    %140 = vector.shape_cast %139 : vector<16xf32> to vector<16x1xf32>
    %cst_46 = arith.constant 3.200000e+01 : f32
    %141 = vector.broadcast %cst_46 : f32 to vector<16x1xf32>
    %142 = arith.divf %140, %141 : vector<16x1xf32>
    %143 = vector.broadcast %142 : vector<16x1xf32> to vector<16x32xf32>
    %144 = arith.subf %138, %143 : vector<16x32xf32>
    %145 = arith.mulf %144, %144 : vector<16x32xf32>
    %cst_47 = arith.constant dense<0.000000e+00> : vector<16xf32>
    %146 = vector.multi_reduction <add>, %145, %cst_47 [1] : vector<16x32xf32> to vector<16xf32>
    %147 = vector.shape_cast %146 : vector<16xf32> to vector<16x1xf32>
    %cst_48 = arith.constant 3.200000e+01 : f32
    %148 = vector.broadcast %cst_48 : f32 to vector<16x1xf32>
    %149 = arith.divf %147, %148 : vector<16x1xf32>
    %150 = vector.broadcast %142 : vector<16x1xf32> to vector<16x32xf32>
    %151 = arith.subf %138, %150 : vector<16x32xf32>
    %cst_49 = arith.constant 9.99999974E-6 : f32
    %152 = vector.broadcast %cst_49 : f32 to vector<16x1xf32>
    %153 = arith.addf %149, %152 : vector<16x1xf32>
    %154 = math.rsqrt %153 : vector<16x1xf32>
    %155 = vector.broadcast %154 : vector<16x1xf32> to vector<16x32xf32>
    %156 = arith.mulf %151, %155 : vector<16x32xf32>
    %157 = vector.broadcast %5 : vector<1x32xf32> to vector<16x32xf32>
    %158 = arith.mulf %156, %157 : vector<16x32xf32>
    %159 = vector.broadcast %6 : vector<1x32xf32> to vector<16x32xf32>
    %160 = arith.addf %158, %159 : vector<16x32xf32>
    %c0_50 = arith.constant 0 : index
    %c0_51 = arith.constant 0 : index
    %161 = vector.load %arg11[%c0_50, %c0_51] : memref<16x32xf32, #tpu.memory_space<vmem>>, vector<16x32xf32>
    tpu.vector_store %arg11[%c0_50, %c0_51], %160 {strides = array<i32>} : memref<16x32xf32, #tpu.memory_space<vmem>>, vector<16x32xf32>,
    return
  }
  func.func @transform_0(%arg0: i32) -> (i32, i32) {
    %c0_i32 = arith.constant 0 : i32
    %c0_i32_0 = arith.constant 0 : i32
    %c0_i32_1 = arith.constant 0 : i32
    return %c0_i32, %c0_i32_0 : i32, i32
  }
  func.func @transform_1(%arg0: i32) -> (i32, i32, i32) {
    %c0_i32 = arith.constant 0 : i32
    %c0_i32_0 = arith.constant 0 : i32
    %c0_i32_1 = arith.constant 0 : i32
    %c0_i32_2 = arith.constant 0 : i32
    return %c0_i32, %c0_i32_0, %c0_i32_1 : i32, i32, i32
  }
  func.func @transform_2(%arg0: i32) -> (i32, i32) {
    %c0_i32 = arith.constant 0 : i32
    %c0_i32_0 = arith.constant 0 : i32
    %c0_i32_1 = arith.constant 0 : i32
    return %c0_i32, %c0_i32_0 : i32, i32
  }
  func.func @transform_3(%arg0: i32) -> (i32, i32, i32) {
    %c0_i32 = arith.constant 0 : i32
    %c0_i32_0 = arith.constant 0 : i32
    %c0_i32_1 = arith.constant 0 : i32
    %c0_i32_2 = arith.constant 0 : i32
    return %c0_i32, %c0_i32_0, %c0_i32_1 : i32, i32, i32
  }
  func.func @transform_4(%arg0: i32) -> (i32, i32, i32) {
    %c0_i32 = arith.constant 0 : i32
    %c0_i32_0 = arith.constant 0 : i32
    %c0_i32_1 = arith.constant 0 : i32
    %c0_i32_2 = arith.constant 0 : i32
    return %c0_i32, %c0_i32_0, %c0_i32_1 : i32, i32, i32
  }
  func.func @transform_5(%arg0: i32) -> (i32, i32, i32) {
    %c0_i32 = arith.constant 0 : i32
    %c0_i32_0 = arith.constant 0 : i32
    %c0_i32_1 = arith.constant 0 : i32
    %c0_i32_2 = arith.constant 0 : i32
    return %c0_i32, %c0_i32_0, %c0_i32_1 : i32, i32, i32
  }
  func.func @transform_6(%arg0: i32) -> (i32, i32, i32) {
    %c0_i32 = arith.constant 0 : i32
    %c0_i32_0 = arith.constant 0 : i32
    %c0_i32_1 = arith.constant 0 : i32
    %c0_i32_2 = arith.constant 0 : i32
    return %c0_i32, %c0_i32_0, %c0_i32_1 : i32, i32, i32
  }
  func.func @transform_7(%arg0: i32) -> (i32, i32) {
    %c0_i32 = arith.constant 0 : i32
    %c0_i32_0 = arith.constant 0 : i32
    %c0_i32_1 = arith.constant 0 : i32
    return %c0_i32, %c0_i32_0 : i32, i32
  }
  func.func @transform_8(%arg0: i32) -> (i32, i32) {
    %c0_i32 = arith.constant 0 : i32
    %c0_i32_0 = arith.constant 0 : i32
    %c0_i32_1 = arith.constant 0 : i32
    return %c0_i32, %c0_i32_0 : i32, i32
  }
  func.func @transform_9(%arg0: i32) -> (i32, i32) {
    %c0_i32 = arith.constant 0 : i32
    %c0_i32_0 = arith.constant 0 : i32
    %c0_i32_1 = arith.constant 0 : i32
    return %c0_i32, %c0_i32_0 : i32, i32
  }
  func.func @transform_10(%arg0: i32) -> (i32, i32) {
    %c0_i32 = arith.constant 0 : i32
    %c0_i32_0 = arith.constant 0 : i32
    %c0_i32_1 = arith.constant 0 : i32
    return %c0_i32, %c0_i32_0 : i32, i32
  }
}

</mosaic_0001>

<llo_original>
// kernel: tpu_custom_call.1
$region0: #{tpu_custom_call.1}
  #allocation0 [shape = 'u32[]', space=smem, size = 0x4, offset = 0x4, fixed_abs, tag = 'smem constant byte address 0x4 - core index']
  #allocation1 [shape = 'u32[144,128]{1,0:T(1,128)}', space=vmem, size = 0x12000, scoped, tag = 'internal scratch']
  %s0 = inlined_call_operand.vmem [shape: f32[16,32], index: 0, kind: input, shape index: {}]
  %s1 = inlined_call_operand.vmem [shape: bf16[2,8,16], index: 1, kind: input, shape index: {}]
  %s2 = inlined_call_operand.vmem [shape: f32[8,32], index: 2, kind: input, shape index: {}]
  %s3 = inlined_call_operand.vmem [shape: bf16[4,32,8], index: 3, kind: input, shape index: {}]
  %s4 = inlined_call_operand.vmem [shape: bf16[8,16,8], index: 4, kind: input, shape index: {}]
  %s5 = inlined_call_operand.vmem [shape: f32[12,1,8], index: 5, kind: input, shape index: {}]
  %s6 = inlined_call_operand.vmem [shape: bf16[4,8,32], index: 6, kind: input, shape index: {}]
  %s7 = inlined_call_operand.vmem [shape: bf16[32,64], index: 7, kind: input, shape index: {}]
  %s8 = inlined_call_operand.vmem [shape: f32[1,64], index: 8, kind: input, shape index: {}]
  %s9 = inlined_call_operand.vmem [shape: bf16[64,32], index: 9, kind: input, shape index: {}]
  %s10 = inlined_call_operand.hbm [shape: f32[16,32], index: 10, kind: output, shape index: {}]
  %s11 = sld [smem:[#allocation0]]
  $region50: #{tpu_custom_call.1} parent=0
    _
  %s13 = ssub.s32 1, %s11
  %s14 = scalar_select 0, %s13, %s11
  $region1: #{tpu_custom_call.1} parent=0
    #allocation2 [shape = 'u8[8192]{0}', space=vmem, size = 0x2000, scoped, tag = 'output window, operand 0, single buffered']
    #allocation3 [shape = 's32[1]{0}', space=sflag, size = 0x4, scoped, tag = 'scoped memory for tpu_custom_call.1']
    %15 = vsyncpa [#allocation3], 0
    // Predicated region
    $region2: #{tpu_custom_call.1} parent=1 // pred_check
      _
    $region3: #{tpu_custom_call.1} parent=1 // pred_check_branch
      %17 = sbr.rel (0) target = $region5
    $region4: #{tpu_custom_call.1} parent=1 // pred_region
      _
    $region5: #{tpu_custom_call.1} parent=1 // pred_fallthru
      _
    // Predicated region
    $region6: #{tpu_custom_call.1} parent=1 // pred_check
      _
    $region7: #{tpu_custom_call.1} parent=1 // pred_check_branch
      %19 = sbr.rel (0) target = $region9
    $region8: #{tpu_custom_call.1} parent=1 // pred_region
      _
    $region9: #{tpu_custom_call.1} parent=1 // pred_fallthru
      _
    // Predicated region
    $region10: #{tpu_custom_call.1} parent=1 // pred_check
      _
    $region11: #{tpu_custom_call.1} parent=1 // pred_check_branch
      %21 = sbr.rel (0) target = $region13
    $region12: #{tpu_custom_call.1} parent=1 // pred_region
      _
    $region13: #{tpu_custom_call.1} parent=1 // pred_fallthru
      _
    // Predicated region
    $region14: #{tpu_custom_call.1} parent=1 // pred_check
      _
    $region15: #{tpu_custom_call.1} parent=1 // pred_check_branch
      %23 = sbr.rel (0) target = $region17
    $region16: #{tpu_custom_call.1} parent=1 // pred_region
      _
    $region17: #{tpu_custom_call.1} parent=1 // pred_fallthru
      _
    // Predicated region
    $region18: #{tpu_custom_call.1} parent=1 // pred_check
      _
    $region19: #{tpu_custom_call.1} parent=1 // pred_check_branch
      %25 = sbr.rel (0) target = $region21
    $region20: #{tpu_custom_call.1} parent=1 // pred_region
      _
    $region21: #{tpu_custom_call.1} parent=1 // pred_fallthru
      _
    // Predicated region
    $region22: #{tpu_custom_call.1} parent=1 // pred_check
      _
    $region23: #{tpu_custom_call.1} parent=1 // pred_check_branch
      %27 = sbr.rel (0) target = $region25
    $region24: #{tpu_custom_call.1} parent=1 // pred_region
      _
    $region25: #{tpu_custom_call.1} parent=1 // pred_fallthru
      _
    // Predicated region
    $region26: #{tpu_custom_call.1} parent=1 // pred_check
      _
    $region27: #{tpu_custom_call.1} parent=1 // pred_check_branch
      %29 = sbr.rel (0) target = $region29
    $region28: #{tpu_custom_call.1} parent=1 // pred_region
      _
    $region29: #{tpu_custom_call.1} parent=1 // pred_fallthru
      _
    // Predicated region
    $region30: #{tpu_custom_call.1} parent=1 // pred_check
      _
    $region31: #{tpu_custom_call.1} parent=1 // pred_check_branch
      %31 = sbr.rel (0) target = $region33
    $region32: #{tpu_custom_call.1} parent=1 // pred_region
      _
    $region33: #{tpu_custom_call.1} parent=1 // pred_fallthru
      _
    // Predicated region
    $region34: #{tpu_custom_call.1} parent=1 // pred_check
      _
    $region35: #{tpu_custom_call.1} parent=1 // pred_check_branch
      %33 = sbr.rel (0) target = $region37
    $region36: #{tpu_custom_call.1} parent=1 // pred_region
      _
    $region37: #{tpu_custom_call.1} parent=1 // pred_fallthru
      _
    // Predicated region
    $region38: #{tpu_custom_call.1} parent=1 // pred_check
      _
    $region39: #{tpu_custom_call.1} parent=1 // pred_check_branch
      %35 = sbr.rel (0) target = $region41
    $region40: #{tpu_custom_call.1} parent=1 // pred_region
      _
    $region41: #{tpu_custom_call.1} parent=1 // pred_fallthru
      _
    %v37 = vld [vmem:[%s0] sm:$0xff]
    %v38 = vld [vmem:[%s0 + $0x8] sm:$0xff]
    %v39 = vld [vmem:[%s1] sm:$0xf]
    %v40 = vld [vmem:[%s1 + $0x4] sm:$0xf]
    %v41 = vld [vmem:[%s2] sm:$0xff]
    %v42 = vld [vmem:[%s5] sm:$0x1]
    %v43 = vld [vmem:[%s5 + $0x1] sm:$0x1]
    %v44 = vld [vmem:[%s5 + $0x2] sm:$0x1]
    %v45 = vld [vmem:[%s5 + $0x3] sm:$0x1]
    %v46 = vld [vmem:[%s5 + $0x4] sm:$0x1]
    %v47 = vld [vmem:[%s5 + $0x5] sm:$0x1]
    %v48 = vld [vmem:[%s5 + $0x6] sm:$0x1]
    %v49 = vld [vmem:[%s5 + $0x7] sm:$0x1]
    %v50 = vld [vmem:[%s5 + $0x8] sm:$0x1]
    %v51 = vld [vmem:[%s5 + $0x9] sm:$0x1]
    %v52 = vld [vmem:[%s5 + $0xa] sm:$0x1]
    %v53 = vld [vmem:[%s5 + $0xb] sm:$0x1]
    %vm54 = vcmask 261120
    %v55 = vsel %vm54, %v37, 0.0
    %56 = vadd.xlane.f32.xlu0 %v55
    %v57 = vpop.xlane.xlu0 %56
    %v58 = vsel %vm54, %v38, 0.0
    %59 = vadd.xlane.f32.xlu0 %v58
    %v60 = vpop.xlane.xlu0 %59
    %v61 = vrcp.pop 32.0
    %v62 = vmul.f32 %v57, %v61
    %v63 = vmul.f32 %v60, %v61
    %v64 = vsub.f32 %v37, %v62
    %v65 = vsub.f32 %v38, %v63
    %v66 = vmul.f32 %v64, %v64
    %v67 = vmul.f32 %v65, %v65
    %v68 = vsel %vm54, %v66, 0.0
    %69 = vadd.xlane.f32.xlu0 %v68
    %v70 = vpop.xlane.xlu0 %69
    %v71 = vsel %vm54, %v67, 0.0
    %72 = vadd.xlane.f32.xlu0 %v71
    %v73 = vpop.xlane.xlu0 %72
    %v74 = vmul.f32 %v70, %v61
    %v75 = vmul.f32 %v73, %v61
    %v76 = vadd.f32 %v74, 1e-05
    %v77 = vadd.f32 %v75, 1e-05
    %v78 = vrsqrt.pop %v76
    %v79 = vrsqrt.pop %v77
    %v80 = vmul.f32 %v64, %v78
    %v81 = vmul.f32 %v65, %v79
    %v82 = vlaneseq
    %v83 = vshrl.u32 %v82, 7
    %v84 = vsub.s32 0, %v83
    %v85 = vrot.slane %v41, %v84
    %v86 = vmul.f32 %v80, %v85
    %v87 = vmul.f32 %v81, %v85
    %v88 = vlaneseq
    %v89 = vshrl.u32 %v88, 7
    %v90 = vsub.s32 1, %v89
    %v91 = vrot.slane %v41, %v90
    %v92 = vadd.f32 %v86, %v91
    %v93 = vadd.f32 %v87, %v91
    %v94 = vpack.c.bf16 %v92, %v92
    %v95 = vpack.c.bf16 %v93, %v93
    %v96 = vld [vmem:[%s3] sm:$0xf]
    %v97 = vld [vmem:[%s3 + $0x4] sm:$0xf]
    %v98 = vld [vmem:[%s3 + $0x8] sm:$0xf]
    %v99 = vld [vmem:[%s3 + $0xc] sm:$0xf]
    %v100 = vld [vmem:[%s3 + $0x10] sm:$0xf]
    %v101 = vld [vmem:[%s3 + $0x14] sm:$0xf]
    %v102 = vld [vmem:[%s3 + $0x18] sm:$0xf]
    %v103 = vld [vmem:[%s3 + $0x1c] sm:$0xf]
    %v104 = vld [vmem:[%s3 + $0x20] sm:$0xf]
    %v105 = vld [vmem:[%s3 + $0x24] sm:$0xf]
    %v106 = vld [vmem:[%s3 + $0x28] sm:$0xf]
    %v107 = vld [vmem:[%s3 + $0x2c] sm:$0xf]
    %v108 = vld [vmem:[%s3 + $0x30] sm:$0xf]
    %v109 = vld [vmem:[%s3 + $0x34] sm:$0xf]
    %v110 = vld [vmem:[%s3 + $0x38] sm:$0xf]
    %v111 = vld [vmem:[%s3 + $0x3c] sm:$0xf]
    %v116 = vlaneseq
    %v117 = vshrl.u32 %v116, 7
    %v118 = vsub.s32 0, %v117
    %v119 = vrot.slane %v42, %v118
    %v120 = vlaneseq
    %v121 = vshrl.u32 %v120, 7
    %v122 = vsub.s32 0, %v121
    %v123 = vrot.slane %v43, %v122
    %v124 = vlaneseq
    %v125 = vshrl.u32 %v124, 7
    %v126 = vsub.s32 0, %v125
    %v127 = vrot.slane %v44, %v126
    %v128 = vlaneseq
    %v129 = vshrl.u32 %v128, 7
    %v130 = vsub.s32 0, %v129
    %v131 = vrot.slane %v45, %v130
    %v140 = vunpack.c.l.b16 %v96
    %v141 = vunpack.c.l.b16 %v97
    %v142 = vunpack.c.l.b16 %v98
    %v143 = vunpack.c.l.b16 %v99
    %v144 = vpack.c.b16 %v141, %v140
    %v145 = vpack.c.b16 %v143, %v142
    %v149 = vsel %vm54, %v94, 0
    %151 = vmatprep.subr.bf16.mxu0 0
    %152 = vmatpush1.bf16.msra.mxu0 0
    %153 = vmatprep.subr.bf16.mxu0 0
    %154 = vmatpush1.bf16.msra.mxu0 0
    %155 = vmatprep.subr.bf16.mxu0 0
    %156 = vmatpush1.bf16.msra.mxu0 0
    %157 = vmatprep.subr.bf16.mxu0 0
    %158 = vmatpush1.bf16.msra.mxu0 0
    %159 = vmatprep.subr.bf16.mxu0 0
    %160 = vmatpush1.bf16.msra.mxu0 0
    %161 = vmatprep.subr.bf16.mxu0 0
    %162 = vmatpush1.bf16.msra.mxu0 0
    %163 = vmatprep.subr.bf16.mxu0 0
    %164 = vmatpush1.bf16.msra.mxu0 %v145
    %165 = vmatprep.subr.bf16.mxu0 0
    %166 = vmatpush1.bf16.msra.mxu0 %v144
    %167 = vmatprep.subr.bf16.mxu0 0
    %168 = vmatpush2.bf16.msra.mxu0 0
    %169 = vmatprep.subr.bf16.mxu0 0
    %170 = vmatpush2.bf16.msra.mxu0 0
    %171 = vmatprep.subr.bf16.mxu0 0
    %172 = vmatpush2.bf16.msra.mxu0 0
    %173 = vmatprep.subr.bf16.mxu0 0
    %174 = vmatpush2.bf16.msra.mxu0 0
    %175 = vmatprep.subr.bf16.mxu0 0
    %176 = vmatpush2.bf16.msra.mxu0 0
    %177 = vmatprep.subr.bf16.mxu0 0
    %178 = vmatpush2.bf16.msra.mxu0 0
    %179 = vmatprep.subr.bf16.mxu0 0
    %180 = vmatpush2.bf16.msra.mxu0 0
    %181 = vmatprep.subr.bf16.mxu0 0
    %182 = vmatpush2.bf16.msra.mxu0 0
    %183 = vmatprep.mubr.bf16.mxu0 0
    %184 = vmatmul.mubr.bf16.gmra.mxu0 %v149
    %v185 = vpop.f32.mrf.mxu0
    %v186 = vadd.f32 %v119, %v185
    %v187 = vpop.f32.mrf.mxu0
    %v188 = vpop.f32.mrf.mxu0
    %v189 = vpop.f32.mrf.mxu0
    %190 = vdwg.mxu0
    %v195 = vunpack.c.l.b16 %v100
    %v196 = vunpack.c.l.b16 %v101
    %v197 = vunpack.c.l.b16 %v102
    %v198 = vunpack.c.l.b16 %v103
    %v199 = vpack.c.b16 %v196, %v195
    %v200 = vpack.c.b16 %v198, %v197
    %203 = vmatprep.subr.bf16.mxu0 0
    %204 = vmatpush1.bf16.msra.mxu0 0
    %205 = vmatprep.subr.bf16.mxu0 0
    %206 = vmatpush1.bf16.msra.mxu0 0
    %207 = vmatprep.subr.bf16.mxu0 0
    %208 = vmatpush1.bf16.msra.mxu0 0
    %209 = vmatprep.subr.bf16.mxu0 0
    %210 = vmatpush1.bf16.msra.mxu0 0
    %211 = vmatprep.subr.bf16.mxu0 0
    %212 = vmatpush1.bf16.msra.mxu0 0
    %213 = vmatprep.subr.bf16.mxu0 0
    %214 = vmatpush1.bf16.msra.mxu0 0
    %215 = vmatprep.subr.bf16.mxu0 0
    %216 = vmatpush1.bf16.msra.mxu0 %v200
    %217 = vmatprep.subr.bf16.mxu0 0
    %218 = vmatpush1.bf16.msra.mxu0 %v199
    %219 = vmatprep.subr.bf16.mxu0 0
    %220 = vmatpush2.bf16.msra.mxu0 0
    %221 = vmatprep.subr.bf16.mxu0 0
    %222 = vmatpush2.bf16.msra.mxu0 0
    %223 = vmatprep.subr.bf16.mxu0 0
    %224 = vmatpush2.bf16.msra.mxu0 0
    %225 = vmatprep.subr.bf16.mxu0 0
    %226 = vmatpush2.bf16.msra.mxu0 0
    %227 = vmatprep.subr.bf16.mxu0 0
    %228 = vmatpush2.bf16.msra.mxu0 0
    %229 = vmatprep.subr.bf16.mxu0 0
    %230 = vmatpush2.bf16.msra.mxu0 0
    %231 = vmatprep.subr.bf16.mxu0 0
    %232 = vmatpush2.bf16.msra.mxu0 0
    %233 = vmatprep.subr.bf16.mxu0 0
    %234 = vmatpush2.bf16.msra.mxu0 0
    %235 = vmatprep.mubr.bf16.mxu0 0
    %236 = vmatmul.mubr.bf16.gmra.mxu0 %v149
    %v237 = vpop.f32.mrf.mxu0
    %v238 = vadd.f32 %v123, %v237
    %v239 = vpop.f32.mrf.mxu0
    %v240 = vpop.f32.mrf.mxu0
    %v241 = vpop.f32.mrf.mxu0
    %242 = vdwg.mxu0
    %v247 = vunpack.c.l.b16 %v104
    %v248 = vunpack.c.l.b16 %v105
    %v249 = vunpack.c.l.b16 %v106
    %v250 = vunpack.c.l.b16 %v107
    %v251 = vpack.c.b16 %v248, %v247
    %v252 = vpack.c.b16 %v250, %v249
    %255 = vmatprep.subr.bf16.mxu0 0
    %256 = vmatpush1.bf16.msra.mxu0 0
    %257 = vmatprep.subr.bf16.mxu0 0
    %258 = vmatpush1.bf16.msra.mxu0 0
    %259 = vmatprep.subr.bf16.mxu0 0
    %260 = vmatpush1.bf16.msra.mxu0 0
    %261 = vmatprep.subr.bf16.mxu0 0
    %262 = vmatpush1.bf16.msra.mxu0 0
    %263 = vmatprep.subr.bf16.mxu0 0
    %264 = vmatpush1.bf16.msra.mxu0 0
    %265 = vmatprep.subr.bf16.mxu0 0
    %266 = vmatpush1.bf16.msra.mxu0 0
    %267 = vmatprep.subr.bf16.mxu0 0
    %268 = vmatpush1.bf16.msra.mxu0 %v252
    %269 = vmatprep.subr.bf16.mxu0 0
    %270 = vmatpush1.bf16.msra.mxu0 %v251
    %271 = vmatprep.subr.bf16.mxu0 0
    %272 = vmatpush2.bf16.msra.mxu0 0
    %273 = vmatprep.subr.bf16.mxu0 0
    %274 = vmatpush2.bf16.msra.mxu0 0
    %275 = vmatprep.subr.bf16.mxu0 0
    %276 = vmatpush2.bf16.msra.mxu0 0
    %277 = vmatprep.subr.bf16.mxu0 0
    %278 = vmatpush2.bf16.msra.mxu0 0
    %279 = vmatprep.subr.bf16.mxu0 0
    %280 = vmatpush2.bf16.msra.mxu0 0
    %281 = vmatprep.subr.bf16.mxu0 0
    %282 = vmatpush2.bf16.msra.mxu0 0
    %283 = vmatprep.subr.bf16.mxu0 0
    %284 = vmatpush2.bf16.msra.mxu0 0
    %285 = vmatprep.subr.bf16.mxu0 0
    %286 = vmatpush2.bf16.msra.mxu0 0
    %287 = vmatprep.mubr.bf16.mxu0 0
    %288 = vmatmul.mubr.bf16.gmra.mxu0 %v149
    %v289 = vpop.f32.mrf.mxu0
    %v290 = vadd.f32 %v127, %v289
    %v291 = vpop.f32.mrf.mxu0
    %v292 = vpop.f32.mrf.mxu0
    %v293 = vpop.f32.mrf.mxu0
    %294 = vdwg.mxu0
    %v299 = vunpack.c.l.b16 %v108
    %v300 = vunpack.c.l.b16 %v109
    %v301 = vunpack.c.l.b16 %v110
    %v302 = vunpack.c.l.b16 %v111
    %v303 = vpack.c.b16 %v300, %v299
    %v304 = vpack.c.b16 %v302, %v301
    %307 = vmatprep.subr.bf16.mxu0 0
    %308 = vmatpush1.bf16.msra.mxu0 0
    %309 = vmatprep.subr.bf16.mxu0 0
    %310 = vmatpush1.bf16.msra.mxu0 0
    %311 = vmatprep.subr.bf16.mxu0 0
    %312 = vmatpush1.bf16.msra.mxu0 0
    %313 = vmatprep.subr.bf16.mxu0 0
    %314 = vmatpush1.bf16.msra.mxu0 0
    %315 = vmatprep.subr.bf16.mxu0 0
    %316 = vmatpush1.bf16.msra.mxu0 0
    %317 = vmatprep.subr.bf16.mxu0 0
    %318 = vmatpush1.bf16.msra.mxu0 0
    %319 = vmatprep.subr.bf16.mxu0 0
    %320 = vmatpush1.bf16.msra.mxu0 %v304
    %321 = vmatprep.subr.bf16.mxu0 0
    %322 = vmatpush1.bf16.msra.mxu0 %v303
    %323 = vmatprep.subr.bf16.mxu0 0
    %324 = vmatpush2.bf16.msra.mxu0 0
    %325 = vmatprep.subr.bf16.mxu0 0
    %326 = vmatpush2.bf16.msra.mxu0 0
    %327 = vmatprep.subr.bf16.mxu0 0
    %328 = vmatpush2.bf16.msra.mxu0 0
    %329 = vmatprep.subr.bf16.mxu0 0
    %330 = vmatpush2.bf16.msra.mxu0 0
    %331 = vmatprep.subr.bf16.mxu0 0
    %332 = vmatpush2.bf16.msra.mxu0 0
    %333 = vmatprep.subr.bf16.mxu0 0
    %334 = vmatpush2.bf16.msra.mxu0 0
    %335 = vmatprep.subr.bf16.mxu0 0
    %336 = vmatpush2.bf16.msra.mxu0 0
    %337 = vmatprep.subr.bf16.mxu0 0
    %338 = vmatpush2.bf16.msra.mxu0 0
    %339 = vmatprep.mubr.bf16.mxu0 0
    %340 = vmatmul.mubr.bf16.gmra.mxu0 %v149
    %v341 = vpop.f32.mrf.mxu0
    %v342 = vadd.f32 %v131, %v341
    %v343 = vpop.f32.mrf.mxu0
    %v344 = vpop.f32.mrf.mxu0
    %v345 = vpop.f32.mrf.mxu0
    %346 = vdwg.mxu0
    %v348 = vsel %vm54, %v95, 0
    %350 = vmatprep.subr.bf16.mxu0 0
    %351 = vmatpush1.bf16.msra.mxu0 0
    %352 = vmatprep.subr.bf16.mxu0 0
    %353 = vmatpush1.bf16.msra.mxu0 0
    %354 = vmatprep.subr.bf16.mxu0 0
    %355 = vmatpush1.bf16.msra.mxu0 0
    %356 = vmatprep.subr.bf16.mxu0 0
    %357 = vmatpush1.bf16.msra.mxu0 0
    %358 = vmatprep.subr.bf16.mxu0 0
    %359 = vmatpush1.bf16.msra.mxu0 0
    %360 = vmatprep.subr.bf16.mxu0 0
    %361 = vmatpush1.bf16.msra.mxu0 0
    %362 = vmatprep.subr.bf16.mxu0 0
    %363 = vmatpush1.bf16.msra.mxu0 %v145
    %364 = vmatprep.subr.bf16.mxu0 0
    %365 = vmatpush1.bf16.msra.mxu0 %v144
    %366 = vmatprep.subr.bf16.mxu0 0
    %367 = vmatpush2.bf16.msra.mxu0 0
    %368 = vmatprep.subr.bf16.mxu0 0
    %369 = vmatpush2.bf16.msra.mxu0 0
    %370 = vmatprep.subr.bf16.mxu0 0
    %371 = vmatpush2.bf16.msra.mxu0 0
    %372 = vmatprep.subr.bf16.mxu0 0
    %373 = vmatpush2.bf16.msra.mxu0 0
    %374 = vmatprep.subr.bf16.mxu0 0
    %375 = vmatpush2.bf16.msra.mxu0 0
    %376 = vmatprep.subr.bf16.mxu0 0
    %377 = vmatpush2.bf16.msra.mxu0 0
    %378 = vmatprep.subr.bf16.mxu0 0
    %379 = vmatpush2.bf16.msra.mxu0 0
    %380 = vmatprep.subr.bf16.mxu0 0
    %381 = vmatpush2.bf16.msra.mxu0 0
    %382 = vmatprep.mubr.bf16.mxu0 0
    %383 = vmatmul.mubr.bf16.gmra.mxu0 %v348
    %v384 = vpop.f32.mrf.mxu0
    %v385 = vadd.f32 %v119, %v384
    %v386 = vpop.f32.mrf.mxu0
    %v387 = vpop.f32.mrf.mxu0
    %v388 = vpop.f32.mrf.mxu0
    %389 = vdwg.mxu0
    %390 = vmatprep.subr.bf16.mxu0 0
    %391 = vmatpush1.bf16.msra.mxu0 0
    %392 = vmatprep.subr.bf16.mxu0 0
    %393 = vmatpush1.bf16.msra.mxu0 0
    %394 = vmatprep.subr.bf16.mxu0 0
    %395 = vmatpush1.bf16.msra.mxu0 0
    %396 = vmatprep.subr.bf16.mxu0 0
    %397 = vmatpush1.bf16.msra.mxu0 0
    %398 = vmatprep.subr.bf16.mxu0 0
    %399 = vmatpush1.bf16.msra.mxu0 0
    %400 = vmatprep.subr.bf16.mxu0 0
    %401 = vmatpush1.bf16.msra.mxu0 0
    %402 = vmatprep.subr.bf16.mxu0 0
    %403 = vmatpush1.bf16.msra.mxu0 %v200
    %404 = vmatprep.subr.bf16.mxu0 0
    %405 = vmatpush1.bf16.msra.mxu0 %v199
    %406 = vmatprep.subr.bf16.mxu0 0
    %407 = vmatpush2.bf16.msra.mxu0 0
    %408 = vmatprep.subr.bf16.mxu0 0
    %409 = vmatpush2.bf16.msra.mxu0 0
    %410 = vmatprep.subr.bf16.mxu0 0
    %411 = vmatpush2.bf16.msra.mxu0 0
    %412 = vmatprep.subr.bf16.mxu0 0
    %413 = vmatpush2.bf16.msra.mxu0 0
    %414 = vmatprep.subr.bf16.mxu0 0
    %415 = vmatpush2.bf16.msra.mxu0 0
    %416 = vmatprep.subr.bf16.mxu0 0
    %417 = vmatpush2.bf16.msra.mxu0 0
    %418 = vmatprep.subr.bf16.mxu0 0
    %419 = vmatpush2.bf16.msra.mxu0 0
    %420 = vmatprep.subr.bf16.mxu0 0
    %421 = vmatpush2.bf16.msra.mxu0 0
    %422 = vmatprep.mubr.bf16.mxu0 0
    %423 = vmatmul.mubr.bf16.gmra.mxu0 %v348
    %v424 = vpop.f32.mrf.mxu0
    %v425 = vadd.f32 %v123, %v424
    %v426 = vpop.f32.mrf.mxu0
    %v427 = vpop.f32.mrf.mxu0
    %v428 = vpop.f32.mrf.mxu0
    %429 = vdwg.mxu0
    %430 = vmatprep.subr.bf16.mxu0 0
    %431 = vmatpush1.bf16.msra.mxu0 0
    %432 = vmatprep.subr.bf16.mxu0 0
    %433 = vmatpush1.bf16.msra.mxu0 0
    %434 = vmatprep.subr.bf16.mxu0 0
    %435 = vmatpush1.bf16.msra.mxu0 0
    %436 = vmatprep.subr.bf16.mxu0 0
    %437 = vmatpush1.bf16.msra.mxu0 0
    %438 = vmatprep.subr.bf16.mxu0 0
    %439 = vmatpush1.bf16.msra.mxu0 0
    %440 = vmatprep.subr.bf16.mxu0 0
    %441 = vmatpush1.bf16.msra.mxu0 0
    %442 = vmatprep.subr.bf16.mxu0 0
    %443 = vmatpush1.bf16.msra.mxu0 %v252
    %444 = vmatprep.subr.bf16.mxu0 0
    %445 = vmatpush1.bf16.msra.mxu0 %v251
    %446 = vmatprep.subr.bf16.mxu0 0
    %447 = vmatpush2.bf16.msra.mxu0 0
    %448 = vmatprep.subr.bf16.mxu0 0
    %449 = vmatpush2.bf16.msra.mxu0 0
    %450 = vmatprep.subr.bf16.mxu0 0
    %451 = vmatpush2.bf16.msra.mxu0 0
    %452 = vmatprep.subr.bf16.mxu0 0
    %453 = vmatpush2.bf16.msra.mxu0 0
    %454 = vmatprep.subr.bf16.mxu0 0
    %455 = vmatpush2.bf16.msra.mxu0 0
    %456 = vmatprep.subr.bf16.mxu0 0
    %457 = vmatpush2.bf16.msra.mxu0 0
    %458 = vmatprep.subr.bf16.mxu0 0
    %459 = vmatpush2.bf16.msra.mxu0 0
    %460 = vmatprep.subr.bf16.mxu0 0
    %461 = vmatpush2.bf16.msra.mxu0 0
    %462 = vmatprep.mubr.bf16.mxu0 0
    %463 = vmatmul.mubr.bf16.gmra.mxu0 %v348
    %v464 = vpop.f32.mrf.mxu0
    %v465 = vadd.f32 %v127, %v464
    %v466 = vpop.f32.mrf.mxu0
    %v467 = vpop.f32.mrf.mxu0
    %v468 = vpop.f32.mrf.mxu0
    %469 = vdwg.mxu0
    %470 = vmatprep.subr.bf16.mxu0 0
    %471 = vmatpush1.bf16.msra.mxu0 0
    %472 = vmatprep.subr.bf16.mxu0 0
    %473 = vmatpush1.bf16.msra.mxu0 0
    %474 = vmatprep.subr.bf16.mxu0 0
    %475 = vmatpush1.bf16.msra.mxu0 0
    %476 = vmatprep.subr.bf16.mxu0 0
    %477 = vmatpush1.bf16.msra.mxu0 0
    %478 = vmatprep.subr.bf16.mxu0 0
    %479 = vmatpush1.bf16.msra.mxu0 0
    %480 = vmatprep.subr.bf16.mxu0 0
    %481 = vmatpush1.bf16.msra.mxu0 0
    %482 = vmatprep.subr.bf16.mxu0 0
    %483 = vmatpush1.bf16.msra.mxu0 %v304
    %484 = vmatprep.subr.bf16.mxu0 0
    %485 = vmatpush1.bf16.msra.mxu0 %v303
    %486 = vmatprep.subr.bf16.mxu0 0
    %487 = vmatpush2.bf16.msra.mxu0 0
    %488 = vmatprep.subr.bf16.mxu0 0
    %489 = vmatpush2.bf16.msra.mxu0 0
    %490 = vmatprep.subr.bf16.mxu0 0
    %491 = vmatpush2.bf16.msra.mxu0 0
    %492 = vmatprep.subr.bf16.mxu0 0
    %493 = vmatpush2.bf16.msra.mxu0 0
    %494 = vmatprep.subr.bf16.mxu0 0
    %495 = vmatpush2.bf16.msra.mxu0 0
    %496 = vmatprep.subr.bf16.mxu0 0
    %497 = vmatpush2.bf16.msra.mxu0 0
    %498 = vmatprep.subr.bf16.mxu0 0
    %499 = vmatpush2.bf16.msra.mxu0 0
    %500 = vmatprep.subr.bf16.mxu0 0
    %501 = vmatpush2.bf16.msra.mxu0 0
    %502 = vmatprep.mubr.bf16.mxu0 0
    %503 = vmatmul.mubr.bf16.gmra.mxu0 %v348
    %v504 = vpop.f32.mrf.mxu0
    %v505 = vadd.f32 %v131, %v504
    %v506 = vpop.f32.mrf.mxu0
    %v507 = vpop.f32.mrf.mxu0
    %v508 = vpop.f32.mrf.mxu0
    %509 = vdwg.mxu0
    %v510 = vld [vmem:[%s4] sm:$0xf]
    %v511 = vld [vmem:[%s4 + $0x4] sm:$0xf]
    %v512 = vld [vmem:[%s4 + $0x8] sm:$0xf]
    %v513 = vld [vmem:[%s4 + $0xc] sm:$0xf]
    %v514 = vld [vmem:[%s4 + $0x10] sm:$0xf]
    %v515 = vld [vmem:[%s4 + $0x14] sm:$0xf]
    %v516 = vld [vmem:[%s4 + $0x18] sm:$0xf]
    %v517 = vld [vmem:[%s4 + $0x1c] sm:$0xf]
    %v518 = vld [vmem:[%s4 + $0x20] sm:$0xf]
    %v519 = vld [vmem:[%s4 + $0x24] sm:$0xf]
    %v520 = vld [vmem:[%s4 + $0x28] sm:$0xf]
    %v521 = vld [vmem:[%s4 + $0x2c] sm:$0xf]
    %v522 = vld [vmem:[%s4 + $0x30] sm:$0xf]
    %v523 = vld [vmem:[%s4 + $0x34] sm:$0xf]
    %v524 = vld [vmem:[%s4 + $0x38] sm:$0xf]
    %v525 = vld [vmem:[%s4 + $0x3c] sm:$0xf]
    %v534 = vlaneseq
    %v535 = vshrl.u32 %v534, 7
    %v536 = vsub.s32 0, %v535
    %v537 = vrot.slane %v46, %v536
    %v538 = vlaneseq
    %v539 = vshrl.u32 %v538, 7
    %v540 = vsub.s32 0, %v539
    %v541 = vrot.slane %v47, %v540
    %v542 = vlaneseq
    %v543 = vshrl.u32 %v542, 7
    %v544 = vsub.s32 0, %v543
    %v545 = vrot.slane %v48, %v544
    %v546 = vlaneseq
    %v547 = vshrl.u32 %v546, 7
    %v548 = vsub.s32 0, %v547
    %v549 = vrot.slane %v49, %v548
    %v550 = vlaneseq
    %v551 = vshrl.u32 %v550, 7
    %v552 = vsub.s32 0, %v551
    %v553 = vrot.slane %v50, %v552
    %v554 = vlaneseq
    %v555 = vshrl.u32 %v554, 7
    %v556 = vsub.s32 0, %v555
    %v557 = vrot.slane %v51, %v556
    %v558 = vlaneseq
    %v559 = vshrl.u32 %v558, 7
    %v560 = vsub.s32 0, %v559
    %v561 = vrot.slane %v52, %v560
    %v562 = vlaneseq
    %v563 = vshrl.u32 %v562, 7
    %v564 = vsub.s32 0, %v563
    %v565 = vrot.slane %v53, %v564
    %v576 = vunpack.c.l.b16 %v510
    %v577 = vunpack.c.l.b16 %v511
    %v578 = vpack.c.b16 %v577, %v576
    %vm580 = vcmask 130048
    %v582 = vsel %vm580, %v39, 0
    %584 = vmatprep.subr.bf16.mxu0 0
    %585 = vmatpush1.bf16.msra.mxu0 0
    %586 = vmatprep.subr.bf16.mxu0 0
    %587 = vmatpush1.bf16.msra.mxu0 0
    %588 = vmatprep.subr.bf16.mxu0 0
    %589 = vmatpush1.bf16.msra.mxu0 0
    %590 = vmatprep.subr.bf16.mxu0 0
    %591 = vmatpush1.bf16.msra.mxu0 0
    %592 = vmatprep.subr.bf16.mxu0 0
    %593 = vmatpush1.bf16.msra.mxu0 0
    %594 = vmatprep.subr.bf16.mxu0 0
    %595 = vmatpush1.bf16.msra.mxu0 0
    %596 = vmatprep.subr.bf16.mxu0 0
    %597 = vmatpush1.bf16.msra.mxu0 0
    %598 = vmatprep.subr.bf16.mxu0 0
    %599 = vmatpush1.bf16.msra.mxu0 %v578
    %600 = vmatprep.subr.bf16.mxu0 0
    %601 = vmatpush2.bf16.msra.mxu0 0
    %602 = vmatprep.subr.bf16.mxu0 0
    %603 = vmatpush2.bf16.msra.mxu0 0
    %604 = vmatprep.subr.bf16.mxu0 0
    %605 = vmatpush2.bf16.msra.mxu0 0
    %606 = vmatprep.subr.bf16.mxu0 0
    %607 = vmatpush2.bf16.msra.mxu0 0
    %608 = vmatprep.subr.bf16.mxu0 0
    %609 = vmatpush2.bf16.msra.mxu0 0
    %610 = vmatprep.subr.bf16.mxu0 0
    %611 = vmatpush2.bf16.msra.mxu0 0
    %612 = vmatprep.subr.bf16.mxu0 0
    %613 = vmatpush2.bf16.msra.mxu0 0
    %614 = vmatprep.subr.bf16.mxu0 0
    %615 = vmatpush2.bf16.msra.mxu0 0
    %616 = vmatprep.mubr.bf16.mxu0 0
    %617 = vmatmul.mubr.bf16.gmra.mxu0 %v582
    %v618 = vpop.f32.mrf.mxu0
    %v619 = vadd.f32 %v537, %v618
    %v620 = vpop.f32.mrf.mxu0
    %v621 = vpop.f32.mrf.mxu0
    %v622 = vpop.f32.mrf.mxu0
    %623 = vdwg.mxu0
    %v626 = vunpack.c.l.b16 %v512
    %v627 = vunpack.c.l.b16 %v513
    %v628 = vpack.c.b16 %v627, %v626
    %630 = vmatprep.subr.bf16.mxu0 0
    %631 = vmatpush1.bf16.msra.mxu0 0
    %632 = vmatprep.subr.bf16.mxu0 0
    %633 = vmatpush1.bf16.msra.mxu0 0
    %634 = vmatprep.subr.bf16.mxu0 0
    %635 = vmatpush1.bf16.msra.mxu0 0
    %636 = vmatprep.subr.bf16.mxu0 0
    %637 = vmatpush1.bf16.msra.mxu0 0
    %638 = vmatprep.subr.bf16.mxu0 0
    %639 = vmatpush1.bf16.msra.mxu0 0
    %640 = vmatprep.subr.bf16.mxu0 0
    %641 = vmatpush1.bf16.msra.mxu0 0
    %642 = vmatprep.subr.bf16.mxu0 0
    %643 = vmatpush1.bf16.msra.mxu0 0
    %644 = vmatprep.subr.bf16.mxu0 0
    %645 = vmatpush1.bf16.msra.mxu0 %v628
    %646 = vmatprep.subr.bf16.mxu0 0
    %647 = vmatpush2.bf16.msra.mxu0 0
    %648 = vmatprep.subr.bf16.mxu0 0
    %649 = vmatpush2.bf16.msra.mxu0 0
    %650 = vmatprep.subr.bf16.mxu0 0
    %651 = vmatpush2.bf16.msra.mxu0 0
    %652 = vmatprep.subr.bf16.mxu0 0
    %653 = vmatpush2.bf16.msra.mxu0 0
    %654 = vmatprep.subr.bf16.mxu0 0
    %655 = vmatpush2.bf16.msra.mxu0 0
    %656 = vmatprep.subr.bf16.mxu0 0
    %657 = vmatpush2.bf16.msra.mxu0 0
    %658 = vmatprep.subr.bf16.mxu0 0
    %659 = vmatpush2.bf16.msra.mxu0 0
    %660 = vmatprep.subr.bf16.mxu0 0
    %661 = vmatpush2.bf16.msra.mxu0 0
    %662 = vmatprep.mubr.bf16.mxu0 0
    %663 = vmatmul.mubr.bf16.gmra.mxu0 %v582
    %v664 = vpop.f32.mrf.mxu0
    %v665 = vadd.f32 %v541, %v664
    %v666 = vpop.f32.mrf.mxu0
    %v667 = vpop.f32.mrf.mxu0
    %v668 = vpop.f32.mrf.mxu0
    %669 = vdwg.mxu0
    %v672 = vunpack.c.l.b16 %v514
    %v673 = vunpack.c.l.b16 %v515
    %v674 = vpack.c.b16 %v673, %v672
    %676 = vmatprep.subr.bf16.mxu0 0
    %677 = vmatpush1.bf16.msra.mxu0 0
    %678 = vmatprep.subr.bf16.mxu0 0
    %679 = vmatpush1.bf16.msra.mxu0 0
    %680 = vmatprep.subr.bf16.mxu0 0
    %681 = vmatpush1.bf16.msra.mxu0 0
    %682 = vmatprep.subr.bf16.mxu0 0
    %683 = vmatpush1.bf16.msra.mxu0 0
    %684 = vmatprep.subr.bf16.mxu0 0
    %685 = vmatpush1.bf16.msra.mxu0 0
    %686 = vmatprep.subr.bf16.mxu0 0
    %687 = vmatpush1.bf16.msra.mxu0 0
    %688 = vmatprep.subr.bf16.mxu0 0
    %689 = vmatpush1.bf16.msra.mxu0 0
    %690 = vmatprep.subr.bf16.mxu0 0
    %691 = vmatpush1.bf16.msra.mxu0 %v674
    %692 = vmatprep.subr.bf16.mxu0 0
    %693 = vmatpush2.bf16.msra.mxu0 0
    %694 = vmatprep.subr.bf16.mxu0 0
    %695 = vmatpush2.bf16.msra.mxu0 0
    %696 = vmatprep.subr.bf16.mxu0 0
    %697 = vmatpush2.bf16.msra.mxu0 0
    %698 = vmatprep.subr.bf16.mxu0 0
    %699 = vmatpush2.bf16.msra.mxu0 0
    %700 = vmatprep.subr.bf16.mxu0 0
    %701 = vmatpush2.bf16.msra.mxu0 0
    %702 = vmatprep.subr.bf16.mxu0 0
    %703 = vmatpush2.bf16.msra.mxu0 0
    %704 = vmatprep.subr.bf16.mxu0 0
    %705 = vmatpush2.bf16.msra.mxu0 0
    %706 = vmatprep.subr.bf16.mxu0 0
    %707 = vmatpush2.bf16.msra.mxu0 0
    %708 = vmatprep.mubr.bf16.mxu0 0
    %709 = vmatmul.mubr.bf16.gmra.mxu0 %v582
    %v710 = vpop.f32.mrf.mxu0
    %v711 = vadd.f32 %v545, %v710
    %v712 = vpop.f32.mrf.mxu0
    %v713 = vpop.f32.mrf.mxu0
    %v714 = vpop.f32.mrf.mxu0
    %715 = vdwg.mxu0
    %v718 = vunpack.c.l.b16 %v516
    %v719 = vunpack.c.l.b16 %v517
    %v720 = vpack.c.b16 %v719, %v718
    %722 = vmatprep.subr.bf16.mxu0 0
    %723 = vmatpush1.bf16.msra.mxu0 0
    %724 = vmatprep.subr.bf16.mxu0 0
    %725 = vmatpush1.bf16.msra.mxu0 0
    %726 = vmatprep.subr.bf16.mxu0 0
    %727 = vmatpush1.bf16.msra.mxu0 0
    %728 = vmatprep.subr.bf16.mxu0 0
    %729 = vmatpush1.bf16.msra.mxu0 0
    %730 = vmatprep.subr.bf16.mxu0 0
    %731 = vmatpush1.bf16.msra.mxu0 0
    %732 = vmatprep.subr.bf16.mxu0 0
    %733 = vmatpush1.bf16.msra.mxu0 0
    %734 = vmatprep.subr.bf16.mxu0 0
    %735 = vmatpush1.bf16.msra.mxu0 0
    %736 = vmatprep.subr.bf16.mxu0 0
    %737 = vmatpush1.bf16.msra.mxu0 %v720
    %738 = vmatprep.subr.bf16.mxu0 0
    %739 = vmatpush2.bf16.msra.mxu0 0
    %740 = vmatprep.subr.bf16.mxu0 0
    %741 = vmatpush2.bf16.msra.mxu0 0
    %742 = vmatprep.subr.bf16.mxu0 0
    %743 = vmatpush2.bf16.msra.mxu0 0
    %744 = vmatprep.subr.bf16.mxu0 0
    %745 = vmatpush2.bf16.msra.mxu0 0
    %746 = vmatprep.subr.bf16.mxu0 0
    %747 = vmatpush2.bf16.msra.mxu0 0
    %748 = vmatprep.subr.bf16.mxu0 0
    %749 = vmatpush2.bf16.msra.mxu0 0
    %750 = vmatprep.subr.bf16.mxu0 0
    %751 = vmatpush2.bf16.msra.mxu0 0
    %752 = vmatprep.subr.bf16.mxu0 0
    %753 = vmatpush2.bf16.msra.mxu0 0
    %754 = vmatprep.mubr.bf16.mxu0 0
    %755 = vmatmul.mubr.bf16.gmra.mxu0 %v582
    %v756 = vpop.f32.mrf.mxu0
    %v757 = vadd.f32 %v549, %v756
    %v758 = vpop.f32.mrf.mxu0
    %v759 = vpop.f32.mrf.mxu0
    %v760 = vpop.f32.mrf.mxu0
    %761 = vdwg.mxu0
    %v764 = vunpack.c.l.b16 %v518
    %v765 = vunpack.c.l.b16 %v519
    %v766 = vpack.c.b16 %v765, %v764
    %768 = vmatprep.subr.bf16.mxu0 0
    %769 = vmatpush1.bf16.msra.mxu0 0
    %770 = vmatprep.subr.bf16.mxu0 0
    %771 = vmatpush1.bf16.msra.mxu0 0
    %772 = vmatprep.subr.bf16.mxu0 0
    %773 = vmatpush1.bf16.msra.mxu0 0
    %774 = vmatprep.subr.bf16.mxu0 0
    %775 = vmatpush1.bf16.msra.mxu0 0
    %776 = vmatprep.subr.bf16.mxu0 0
    %777 = vmatpush1.bf16.msra.mxu0 0
    %778 = vmatprep.subr.bf16.mxu0 0
    %779 = vmatpush1.bf16.msra.mxu0 0
    %780 = vmatprep.subr.bf16.mxu0 0
    %781 = vmatpush1.bf16.msra.mxu0 0
    %782 = vmatprep.subr.bf16.mxu0 0
    %783 = vmatpush1.bf16.msra.mxu0 %v766
    %784 = vmatprep.subr.bf16.mxu0 0
    %785 = vmatpush2.bf16.msra.mxu0 0
    %786 = vmatprep.subr.bf16.mxu0 0
    %787 = vmatpush2.bf16.msra.mxu0 0
    %788 = vmatprep.subr.bf16.mxu0 0
    %789 = vmatpush2.bf16.msra.mxu0 0
    %790 = vmatprep.subr.bf16.mxu0 0
    %791 = vmatpush2.bf16.msra.mxu0 0
    %792 = vmatprep.subr.bf16.mxu0 0
    %793 = vmatpush2.bf16.msra.mxu0 0
    %794 = vmatprep.subr.bf16.mxu0 0
    %795 = vmatpush2.bf16.msra.mxu0 0
    %796 = vmatprep.subr.bf16.mxu0 0
    %797 = vmatpush2.bf16.msra.mxu0 0
    %798 = vmatprep.subr.bf16.mxu0 0
    %799 = vmatpush2.bf16.msra.mxu0 0
    %800 = vmatprep.mubr.bf16.mxu0 0
    %801 = vmatmul.mubr.bf16.gmra.mxu0 %v582
    %v802 = vpop.f32.mrf.mxu0
    %v803 = vadd.f32 %v553, %v802
    %v804 = vpop.f32.mrf.mxu0
    %v805 = vpop.f32.mrf.mxu0
    %v806 = vpop.f32.mrf.mxu0
    %807 = vdwg.mxu0
    %v810 = vunpack.c.l.b16 %v520
    %v811 = vunpack.c.l.b16 %v521
    %v812 = vpack.c.b16 %v811, %v810
    %814 = vmatprep.subr.bf16.mxu0 0
    %815 = vmatpush1.bf16.msra.mxu0 0
    %816 = vmatprep.subr.bf16.mxu0 0
    %817 = vmatpush1.bf16.msra.mxu0 0
    %818 = vmatprep.subr.bf16.mxu0 0
    %819 = vmatpush1.bf16.msra.mxu0 0
    %820 = vmatprep.subr.bf16.mxu0 0
    %821 = vmatpush1.bf16.msra.mxu0 0
    %822 = vmatprep.subr.bf16.mxu0 0
    %823 = vmatpush1.bf16.msra.mxu0 0
    %824 = vmatprep.subr.bf16.mxu0 0
    %825 = vmatpush1.bf16.msra.mxu0 0
    %826 = vmatprep.subr.bf16.mxu0 0
    %827 = vmatpush1.bf16.msra.mxu0 0
    %828 = vmatprep.subr.bf16.mxu0 0
    %829 = vmatpush1.bf16.msra.mxu0 %v812
    %830 = vmatprep.subr.bf16.mxu0 0
    %831 = vmatpush2.bf16.msra.mxu0 0
    %832 = vmatprep.subr.bf16.mxu0 0
    %833 = vmatpush2.bf16.msra.mxu0 0
    %834 = vmatprep.subr.bf16.mxu0 0
    %835 = vmatpush2.bf16.msra.mxu0 0
    %836 = vmatprep.subr.bf16.mxu0 0
    %837 = vmatpush2.bf16.msra.mxu0 0
    %838 = vmatprep.subr.bf16.mxu0 0
    %839 = vmatpush2.bf16.msra.mxu0 0
    %840 = vmatprep.subr.bf16.mxu0 0
    %841 = vmatpush2.bf16.msra.mxu0 0
    %842 = vmatprep.subr.bf16.mxu0 0
    %843 = vmatpush2.bf16.msra.mxu0 0
    %844 = vmatprep.subr.bf16.mxu0 0
    %845 = vmatpush2.bf16.msra.mxu0 0
    %846 = vmatprep.mubr.bf16.mxu0 0
    %847 = vmatmul.mubr.bf16.gmra.mxu0 %v582
    %v848 = vpop.f32.mrf.mxu0
    %v849 = vadd.f32 %v557, %v848
    %v850 = vpop.f32.mrf.mxu0
    %v851 = vpop.f32.mrf.mxu0
    %v852 = vpop.f32.mrf.mxu0
    %853 = vdwg.mxu0
    %v856 = vunpack.c.l.b16 %v522
    %v857 = vunpack.c.l.b16 %v523
    %v858 = vpack.c.b16 %v857, %v856
    %860 = vmatprep.subr.bf16.mxu0 0
    %861 = vmatpush1.bf16.msra.mxu0 0
    %862 = vmatprep.subr.bf16.mxu0 0
    %863 = vmatpush1.bf16.msra.mxu0 0
    %864 = vmatprep.subr.bf16.mxu0 0
    %865 = vmatpush1.bf16.msra.mxu0 0
    %866 = vmatprep.subr.bf16.mxu0 0
    %867 = vmatpush1.bf16.msra.mxu0 0
    %868 = vmatprep.subr.bf16.mxu0 0
    %869 = vmatpush1.bf16.msra.mxu0 0
    %870 = vmatprep.subr.bf16.mxu0 0
    %871 = vmatpush1.bf16.msra.mxu0 0
    %872 = vmatprep.subr.bf16.mxu0 0
    %873 = vmatpush1.bf16.msra.mxu0 0
    %874 = vmatprep.subr.bf16.mxu0 0
    %875 = vmatpush1.bf16.msra.mxu0 %v858
    %876 = vmatprep.subr.bf16.mxu0 0
    %877 = vmatpush2.bf16.msra.mxu0 0
    %878 = vmatprep.subr.bf16.mxu0 0
    %879 = vmatpush2.bf16.msra.mxu0 0
    %880 = vmatprep.subr.bf16.mxu0 0
    %881 = vmatpush2.bf16.msra.mxu0 0
    %882 = vmatprep.subr.bf16.mxu0 0
    %883 = vmatpush2.bf16.msra.mxu0 0
    %884 = vmatprep.subr.bf16.mxu0 0
    %885 = vmatpush2.bf16.msra.mxu0 0
    %886 = vmatprep.subr.bf16.mxu0 0
    %887 = vmatpush2.bf16.msra.mxu0 0
    %888 = vmatprep.subr.bf16.mxu0 0
    %889 = vmatpush2.bf16.msra.mxu0 0
    %890 = vmatprep.subr.bf16.mxu0 0
    %891 = vmatpush2.bf16.msra.mxu0 0
    %892 = vmatprep.mubr.bf16.mxu0 0
    %893 = vmatmul.mubr.bf16.gmra.mxu0 %v582
    %v894 = vpop.f32.mrf.mxu0
    %v895 = vadd.f32 %v561, %v894
    %v896 = vpop.f32.mrf.mxu0
    %v897 = vpop.f32.mrf.mxu0
    %v898 = vpop.f32.mrf.mxu0
    %899 = vdwg.mxu0
    %v902 = vunpack.c.l.b16 %v524
    %v903 = vunpack.c.l.b16 %v525
    %v904 = vpack.c.b16 %v903, %v902
    %906 = vmatprep.subr.bf16.mxu0 0
    %907 = vmatpush1.bf16.msra.mxu0 0
    %908 = vmatprep.subr.bf16.mxu0 0
    %909 = vmatpush1.bf16.msra.mxu0 0
    %910 = vmatprep.subr.bf16.mxu0 0
    %911 = vmatpush1.bf16.msra.mxu0 0
    %912 = vmatprep.subr.bf16.mxu0 0
    %913 = vmatpush1.bf16.msra.mxu0 0
    %914 = vmatprep.subr.bf16.mxu0 0
    %915 = vmatpush1.bf16.msra.mxu0 0
    %916 = vmatprep.subr.bf16.mxu0 0
    %917 = vmatpush1.bf16.msra.mxu0 0
    %918 = vmatprep.subr.bf16.mxu0 0
    %919 = vmatpush1.bf16.msra.mxu0 0
    %920 = vmatprep.subr.bf16.mxu0 0
    %921 = vmatpush1.bf16.msra.mxu0 %v904
    %922 = vmatprep.subr.bf16.mxu0 0
    %923 = vmatpush2.bf16.msra.mxu0 0
    %924 = vmatprep.subr.bf16.mxu0 0
    %925 = vmatpush2.bf16.msra.mxu0 0
    %926 = vmatprep.subr.bf16.mxu0 0
    %927 = vmatpush2.bf16.msra.mxu0 0
    %928 = vmatprep.subr.bf16.mxu0 0
    %929 = vmatpush2.bf16.msra.mxu0 0
    %930 = vmatprep.subr.bf16.mxu0 0
    %931 = vmatpush2.bf16.msra.mxu0 0
    %932 = vmatprep.subr.bf16.mxu0 0
    %933 = vmatpush2.bf16.msra.mxu0 0
    %934 = vmatprep.subr.bf16.mxu0 0
    %935 = vmatpush2.bf16.msra.mxu0 0
    %936 = vmatprep.subr.bf16.mxu0 0
    %937 = vmatpush2.bf16.msra.mxu0 0
    %938 = vmatprep.mubr.bf16.mxu0 0
    %939 = vmatmul.mubr.bf16.gmra.mxu0 %v582
    %v940 = vpop.f32.mrf.mxu0
    %v941 = vadd.f32 %v565, %v940
    %v942 = vpop.f32.mrf.mxu0
    %v943 = vpop.f32.mrf.mxu0
    %v944 = vpop.f32.mrf.mxu0
    %945 = vdwg.mxu0
    %v947 = vsel %vm580, %v40, 0
    %949 = vmatprep.subr.bf16.mxu0 0
    %950 = vmatpush1.bf16.msra.mxu0 0
    %951 = vmatprep.subr.bf16.mxu0 0
    %952 = vmatpush1.bf16.msra.mxu0 0
    %953 = vmatprep.subr.bf16.mxu0 0
    %954 = vmatpush1.bf16.msra.mxu0 0
    %955 = vmatprep.subr.bf16.mxu0 0
    %956 = vmatpush1.bf16.msra.mxu0 0
    %957 = vmatprep.subr.bf16.mxu0 0
    %958 = vmatpush1.bf16.msra.mxu0 0
    %959 = vmatprep.subr.bf16.mxu0 0
    %960 = vmatpush1.bf16.msra.mxu0 0
    %961 = vmatprep.subr.bf16.mxu0 0
    %962 = vmatpush1.bf16.msra.mxu0 0
    %963 = vmatprep.subr.bf16.mxu0 0
    %964 = vmatpush1.bf16.msra.mxu0 %v578
    %965 = vmatprep.subr.bf16.mxu0 0
    %966 = vmatpush2.bf16.msra.mxu0 0
    %967 = vmatprep.subr.bf16.mxu0 0
    %968 = vmatpush2.bf16.msra.mxu0 0
    %969 = vmatprep.subr.bf16.mxu0 0
    %970 = vmatpush2.bf16.msra.mxu0 0
    %971 = vmatprep.subr.bf16.mxu0 0
    %972 = vmatpush2.bf16.msra.mxu0 0
    %973 = vmatprep.subr.bf16.mxu0 0
    %974 = vmatpush2.bf16.msra.mxu0 0
    %975 = vmatprep.subr.bf16.mxu0 0
    %976 = vmatpush2.bf16.msra.mxu0 0
    %977 = vmatprep.subr.bf16.mxu0 0
    %978 = vmatpush2.bf16.msra.mxu0 0
    %979 = vmatprep.subr.bf16.mxu0 0
    %980 = vmatpush2.bf16.msra.mxu0 0
    %981 = vmatprep.mubr.bf16.mxu0 0
    %982 = vmatmul.mubr.bf16.gmra.mxu0 %v947
    %v983 = vpop.f32.mrf.mxu0
    %v984 = vadd.f32 %v537, %v983
    %v985 = vpop.f32.mrf.mxu0
    %v986 = vpop.f32.mrf.mxu0
    %v987 = vpop.f32.mrf.mxu0
    %988 = vdwg.mxu0
    %989 = vmatprep.subr.bf16.mxu0 0
    %990 = vmatpush1.bf16.msra.mxu0 0
    %991 = vmatprep.subr.bf16.mxu0 0
    %992 = vmatpush1.bf16.msra.mxu0 0
    %993 = vmatprep.subr.bf16.mxu0 0
    %994 = vmatpush1.bf16.msra.mxu0 0
    %995 = vmatprep.subr.bf16.mxu0 0
    %996 = vmatpush1.bf16.msra.mxu0 0
    %997 = vmatprep.subr.bf16.mxu0 0
    %998 = vmatpush1.bf16.msra.mxu0 0
    %999 = vmatprep.subr.bf16.mxu0 0
    %1000 = vmatpush1.bf16.msra.mxu0 0
    %1001 = vmatprep.subr.bf16.mxu0 0
    %1002 = vmatpush1.bf16.msra.mxu0 0
    %1003 = vmatprep.subr.bf16.mxu0 0
    %1004 = vmatpush1.bf16.msra.mxu0 %v628
    %1005 = vmatprep.subr.bf16.mxu0 0
    %1006 = vmatpush2.bf16.msra.mxu0 0
    %1007 = vmatprep.subr.bf16.mxu0 0
    %1008 = vmatpush2.bf16.msra.mxu0 0
    %1009 = vmatprep.subr.bf16.mxu0 0
    %1010 = vmatpush2.bf16.msra.mxu0 0
    %1011 = vmatprep.subr.bf16.mxu0 0
    %1012 = vmatpush2.bf16.msra.mxu0 0
    %1013 = vmatprep.subr.bf16.mxu0 0
    %1014 = vmatpush2.bf16.msra.mxu0 0
    %1015 = vmatprep.subr.bf16.mxu0 0
    %1016 = vmatpush2.bf16.msra.mxu0 0
    %1017 = vmatprep.subr.bf16.mxu0 0
    %1018 = vmatpush2.bf16.msra.mxu0 0
    %1019 = vmatprep.subr.bf16.mxu0 0
    %1020 = vmatpush2.bf16.msra.mxu0 0
    %1021 = vmatprep.mubr.bf16.mxu0 0
    %1022 = vmatmul.mubr.bf16.gmra.mxu0 %v947
    %v1023 = vpop.f32.mrf.mxu0
    %v1024 = vadd.f32 %v541, %v1023
    %v1025 = vpop.f32.mrf.mxu0
    %v1026 = vpop.f32.mrf.mxu0
    %v1027 = vpop.f32.mrf.mxu0
    %1028 = vdwg.mxu0
    %1029 = vmatprep.subr.bf16.mxu0 0
    %1030 = vmatpush1.bf16.msra.mxu0 0
    %1031 = vmatprep.subr.bf16.mxu0 0
    %1032 = vmatpush1.bf16.msra.mxu0 0
    %1033 = vmatprep.subr.bf16.mxu0 0
    %1034 = vmatpush1.bf16.msra.mxu0 0
    %1035 = vmatprep.subr.bf16.mxu0 0
    %1036 = vmatpush1.bf16.msra.mxu0 0
    %1037 = vmatprep.subr.bf16.mxu0 0
    %1038 = vmatpush1.bf16.msra.mxu0 0
    %1039 = vmatprep.subr.bf16.mxu0 0
    %1040 = vmatpush1.bf16.msra.mxu0 0
    %1041 = vmatprep.subr.bf16.mxu0 0
    %1042 = vmatpush1.bf16.msra.mxu0 0
    %1043 = vmatprep.subr.bf16.mxu0 0
    %1044 = vmatpush1.bf16.msra.mxu0 %v674
    %1045 = vmatprep.subr.bf16.mxu0 0
    %1046 = vmatpush2.bf16.msra.mxu0 0
    %1047 = vmatprep.subr.bf16.mxu0 0
    %1048 = vmatpush2.bf16.msra.mxu0 0
    %1049 = vmatprep.subr.bf16.mxu0 0
    %1050 = vmatpush2.bf16.msra.mxu0 0
    %1051 = vmatprep.subr.bf16.mxu0 0
    %1052 = vmatpush2.bf16.msra.mxu0 0
    %1053 = vmatprep.subr.bf16.mxu0 0
    %1054 = vmatpush2.bf16.msra.mxu0 0
    %1055 = vmatprep.subr.bf16.mxu0 0
    %1056 = vmatpush2.bf16.msra.mxu0 0
    %1057 = vmatprep.subr.bf16.mxu0 0
    %1058 = vmatpush2.bf16.msra.mxu0 0
    %1059 = vmatprep.subr.bf16.mxu0 0
    %1060 = vmatpush2.bf16.msra.mxu0 0
    %1061 = vmatprep.mubr.bf16.mxu0 0
    %1062 = vmatmul.mubr.bf16.gmra.mxu0 %v947
    %v1063 = vpop.f32.mrf.mxu0
    %v1064 = vadd.f32 %v545, %v1063
    %v1065 = vpop.f32.mrf.mxu0
    %v1066 = vpop.f32.mrf.mxu0
    %v1067 = vpop.f32.mrf.mxu0
    %1068 = vdwg.mxu0
    %1069 = vmatprep.subr.bf16.mxu0 0
    %1070 = vmatpush1.bf16.msra.mxu0 0
    %1071 = vmatprep.subr.bf16.mxu0 0
    %1072 = vmatpush1.bf16.msra.mxu0 0
    %1073 = vmatprep.subr.bf16.mxu0 0
    %1074 = vmatpush1.bf16.msra.mxu0 0
    %1075 = vmatprep.subr.bf16.mxu0 0
    %1076 = vmatpush1.bf16.msra.mxu0 0
    %1077 = vmatprep.subr.bf16.mxu0 0
    %1078 = vmatpush1.bf16.msra.mxu0 0
    %1079 = vmatprep.subr.bf16.mxu0 0
    %1080 = vmatpush1.bf16.msra.mxu0 0
    %1081 = vmatprep.subr.bf16.mxu0 0
    %1082 = vmatpush1.bf16.msra.mxu0 0
    %1083 = vmatprep.subr.bf16.mxu0 0
    %1084 = vmatpush1.bf16.msra.mxu0 %v720
    %1085 = vmatprep.subr.bf16.mxu0 0
    %1086 = vmatpush2.bf16.msra.mxu0 0
    %1087 = vmatprep.subr.bf16.mxu0 0
    %1088 = vmatpush2.bf16.msra.mxu0 0
    %1089 = vmatprep.subr.bf16.mxu0 0
    %1090 = vmatpush2.bf16.msra.mxu0 0
    %1091 = vmatprep.subr.bf16.mxu0 0
    %1092 = vmatpush2.bf16.msra.mxu0 0
    %1093 = vmatprep.subr.bf16.mxu0 0
    %1094 = vmatpush2.bf16.msra.mxu0 0
    %1095 = vmatprep.subr.bf16.mxu0 0
    %1096 = vmatpush2.bf16.msra.mxu0 0
    %1097 = vmatprep.subr.bf16.mxu0 0
    %1098 = vmatpush2.bf16.msra.mxu0 0
    %1099 = vmatprep.subr.bf16.mxu0 0
    %1100 = vmatpush2.bf16.msra.mxu0 0
    %1101 = vmatprep.mubr.bf16.mxu0 0
    %1102 = vmatmul.mubr.bf16.gmra.mxu0 %v947
    %v1103 = vpop.f32.mrf.mxu0
    %v1104 = vadd.f32 %v549, %v1103
    %v1105 = vpop.f32.mrf.mxu0
    %v1106 = vpop.f32.mrf.mxu0
    %v1107 = vpop.f32.mrf.mxu0
    %1108 = vdwg.mxu0
    %1109 = vmatprep.subr.bf16.mxu0 0
    %1110 = vmatpush1.bf16.msra.mxu0 0
    %1111 = vmatprep.subr.bf16.mxu0 0
    %1112 = vmatpush1.bf16.msra.mxu0 0
    %1113 = vmatprep.subr.bf16.mxu0 0
    %1114 = vmatpush1.bf16.msra.mxu0 0
    %1115 = vmatprep.subr.bf16.mxu0 0
    %1116 = vmatpush1.bf16.msra.mxu0 0
    %1117 = vmatprep.subr.bf16.mxu0 0
    %1118 = vmatpush1.bf16.msra.mxu0 0
    %1119 = vmatprep.subr.bf16.mxu0 0
    %1120 = vmatpush1.bf16.msra.mxu0 0
    %1121 = vmatprep.subr.bf16.mxu0 0
    %1122 = vmatpush1.bf16.msra.mxu0 0
    %1123 = vmatprep.subr.bf16.mxu0 0
    %1124 = vmatpush1.bf16.msra.mxu0 %v766
    %1125 = vmatprep.subr.bf16.mxu0 0
    %1126 = vmatpush2.bf16.msra.mxu0 0
    %1127 = vmatprep.subr.bf16.mxu0 0
    %1128 = vmatpush2.bf16.msra.mxu0 0
    %1129 = vmatprep.subr.bf16.mxu0 0
    %1130 = vmatpush2.bf16.msra.mxu0 0
    %1131 = vmatprep.subr.bf16.mxu0 0
    %1132 = vmatpush2.bf16.msra.mxu0 0
    %1133 = vmatprep.subr.bf16.mxu0 0
    %1134 = vmatpush2.bf16.msra.mxu0 0
    %1135 = vmatprep.subr.bf16.mxu0 0
    %1136 = vmatpush2.bf16.msra.mxu0 0
    %1137 = vmatprep.subr.bf16.mxu0 0
    %1138 = vmatpush2.bf16.msra.mxu0 0
    %1139 = vmatprep.subr.bf16.mxu0 0
    %1140 = vmatpush2.bf16.msra.mxu0 0
    %1141 = vmatprep.mubr.bf16.mxu0 0
    %1142 = vmatmul.mubr.bf16.gmra.mxu0 %v947
    %v1143 = vpop.f32.mrf.mxu0
    %v1144 = vadd.f32 %v553, %v1143
    %v1145 = vpop.f32.mrf.mxu0
    %v1146 = vpop.f32.mrf.mxu0
    %v1147 = vpop.f32.mrf.mxu0
    %1148 = vdwg.mxu0
    %1149 = vmatprep.subr.bf16.mxu0 0
    %1150 = vmatpush1.bf16.msra.mxu0 0
    %1151 = vmatprep.subr.bf16.mxu0 0
    %1152 = vmatpush1.bf16.msra.mxu0 0
    %1153 = vmatprep.subr.bf16.mxu0 0
    %1154 = vmatpush1.bf16.msra.mxu0 0
    %1155 = vmatprep.subr.bf16.mxu0 0
    %1156 = vmatpush1.bf16.msra.mxu0 0
    %1157 = vmatprep.subr.bf16.mxu0 0
    %1158 = vmatpush1.bf16.msra.mxu0 0
    %1159 = vmatprep.subr.bf16.mxu0 0
    %1160 = vmatpush1.bf16.msra.mxu0 0
    %1161 = vmatprep.subr.bf16.mxu0 0
    %1162 = vmatpush1.bf16.msra.mxu0 0
    %1163 = vmatprep.subr.bf16.mxu0 0
    %1164 = vmatpush1.bf16.msra.mxu0 %v812
    %1165 = vmatprep.subr.bf16.mxu0 0
    %1166 = vmatpush2.bf16.msra.mxu0 0
    %1167 = vmatprep.subr.bf16.mxu0 0
    %1168 = vmatpush2.bf16.msra.mxu0 0
    %1169 = vmatprep.subr.bf16.mxu0 0
    %1170 = vmatpush2.bf16.msra.mxu0 0
    %1171 = vmatprep.subr.bf16.mxu0 0
    %1172 = vmatpush2.bf16.msra.mxu0 0
    %1173 = vmatprep.subr.bf16.mxu0 0
    %1174 = vmatpush2.bf16.msra.mxu0 0
    %1175 = vmatprep.subr.bf16.mxu0 0
    %1176 = vmatpush2.bf16.msra.mxu0 0
    %1177 = vmatprep.subr.bf16.mxu0 0
    %1178 = vmatpush2.bf16.msra.mxu0 0
    %1179 = vmatprep.subr.bf16.mxu0 0
    %1180 = vmatpush2.bf16.msra.mxu0 0
    %1181 = vmatprep.mubr.bf16.mxu0 0
    %1182 = vmatmul.mubr.bf16.gmra.mxu0 %v947
    %v1183 = vpop.f32.mrf.mxu0
    %v1184 = vadd.f32 %v557, %v1183
    %v1185 = vpop.f32.mrf.mxu0
    %v1186 = vpop.f32.mrf.mxu0
    %v1187 = vpop.f32.mrf.mxu0
    %1188 = vdwg.mxu0
    %1189 = vmatprep.subr.bf16.mxu0 0
    %1190 = vmatpush1.bf16.msra.mxu0 0
    %1191 = vmatprep.subr.bf16.mxu0 0
    %1192 = vmatpush1.bf16.msra.mxu0 0
    %1193 = vmatprep.subr.bf16.mxu0 0
    %1194 = vmatpush1.bf16.msra.mxu0 0
    %1195 = vmatprep.subr.bf16.mxu0 0
    %1196 = vmatpush1.bf16.msra.mxu0 0
    %1197 = vmatprep.subr.bf16.mxu0 0
    %1198 = vmatpush1.bf16.msra.mxu0 0
    %1199 = vmatprep.subr.bf16.mxu0 0
    %1200 = vmatpush1.bf16.msra.mxu0 0
    %1201 = vmatprep.subr.bf16.mxu0 0
    %1202 = vmatpush1.bf16.msra.mxu0 0
    %1203 = vmatprep.subr.bf16.mxu0 0
    %1204 = vmatpush1.bf16.msra.mxu0 %v858
    %1205 = vmatprep.subr.bf16.mxu0 0
    %1206 = vmatpush2.bf16.msra.mxu0 0
    %1207 = vmatprep.subr.bf16.mxu0 0
    %1208 = vmatpush2.bf16.msra.mxu0 0
    %1209 = vmatprep.subr.bf16.mxu0 0
    %1210 = vmatpush2.bf16.msra.mxu0 0
    %1211 = vmatprep.subr.bf16.mxu0 0
    %1212 = vmatpush2.bf16.msra.mxu0 0
    %1213 = vmatprep.subr.bf16.mxu0 0
    %1214 = vmatpush2.bf16.msra.mxu0 0
    %1215 = vmatprep.subr.bf16.mxu0 0
    %1216 = vmatpush2.bf16.msra.mxu0 0
    %1217 = vmatprep.subr.bf16.mxu0 0
    %1218 = vmatpush2.bf16.msra.mxu0 0
    %1219 = vmatprep.subr.bf16.mxu0 0
    %1220 = vmatpush2.bf16.msra.mxu0 0
    %1221 = vmatprep.mubr.bf16.mxu0 0
    %1222 = vmatmul.mubr.bf16.gmra.mxu0 %v947
    %v1223 = vpop.f32.mrf.mxu0
    %v1224 = vadd.f32 %v561, %v1223
    %v1225 = vpop.f32.mrf.mxu0
    %v1226 = vpop.f32.mrf.mxu0
    %v1227 = vpop.f32.mrf.mxu0
    %1228 = vdwg.mxu0
    %1229 = vmatprep.subr.bf16.mxu0 0
    %1230 = vmatpush1.bf16.msra.mxu0 0
    %1231 = vmatprep.subr.bf16.mxu0 0
    %1232 = vmatpush1.bf16.msra.mxu0 0
    %1233 = vmatprep.subr.bf16.mxu0 0
    %1234 = vmatpush1.bf16.msra.mxu0 0
    %1235 = vmatprep.subr.bf16.mxu0 0
    %1236 = vmatpush1.bf16.msra.mxu0 0
    %1237 = vmatprep.subr.bf16.mxu0 0
    %1238 = vmatpush1.bf16.msra.mxu0 0
    %1239 = vmatprep.subr.bf16.mxu0 0
    %1240 = vmatpush1.bf16.msra.mxu0 0
    %1241 = vmatprep.subr.bf16.mxu0 0
    %1242 = vmatpush1.bf16.msra.mxu0 0
    %1243 = vmatprep.subr.bf16.mxu0 0
    %1244 = vmatpush1.bf16.msra.mxu0 %v904
    %1245 = vmatprep.subr.bf16.mxu0 0
    %1246 = vmatpush2.bf16.msra.mxu0 0
    %1247 = vmatprep.subr.bf16.mxu0 0
    %1248 = vmatpush2.bf16.msra.mxu0 0
    %1249 = vmatprep.subr.bf16.mxu0 0
    %1250 = vmatpush2.bf16.msra.mxu0 0
    %1251 = vmatprep.subr.bf16.mxu0 0
    %1252 = vmatpush2.bf16.msra.mxu0 0
    %1253 = vmatprep.subr.bf16.mxu0 0
    %1254 = vmatpush2.bf16.msra.mxu0 0
    %1255 = vmatprep.subr.bf16.mxu0 0
    %1256 = vmatpush2.bf16.msra.mxu0 0
    %1257 = vmatprep.subr.bf16.mxu0 0
    %1258 = vmatpush2.bf16.msra.mxu0 0
    %1259 = vmatprep.subr.bf16.mxu0 0
    %1260 = vmatpush2.bf16.msra.mxu0 0
    %1261 = vmatprep.mubr.bf16.mxu0 0
    %1262 = vmatmul.mubr.bf16.gmra.mxu0 %v947
    %v1263 = vpop.f32.mrf.mxu0
    %v1264 = vadd.f32 %v565, %v1263
    %v1265 = vpop.f32.mrf.mxu0
    %v1266 = vpop.f32.mrf.mxu0
    %v1267 = vpop.f32.mrf.mxu0
    %1268 = vdwg.mxu0
    %v1269 = vpack.c.bf16 %v619, %v619
    %v1270 = vpack.c.bf16 %v665, %v665
    %v1271 = vpack.c.bf16 %v711, %v711
    %v1272 = vpack.c.bf16 %v757, %v757
    %v1273 = vpack.c.bf16 %v984, %v984
    %v1274 = vpack.c.bf16 %v1024, %v1024
    %v1275 = vpack.c.bf16 %v1064, %v1064
    %v1276 = vpack.c.bf16 %v1104, %v1104
    %v1277 = vpack.c.bf16 %v803, %v803
    %v1278 = vpack.c.bf16 %v849, %v849
    %v1279 = vpack.c.bf16 %v895, %v895
    %v1280 = vpack.c.bf16 %v941, %v941
    %v1281 = vpack.c.bf16 %v1144, %v1144
    %v1282 = vpack.c.bf16 %v1184, %v1184
    %v1283 = vpack.c.bf16 %v1224, %v1224
    %v1284 = vpack.c.bf16 %v1264, %v1264
    %v1285 = vpack.c.bf16 %v186, %v186
    %v1286 = vpack.c.bf16 %v238, %v238
    %v1287 = vpack.c.bf16 %v290, %v290
    %v1288 = vpack.c.bf16 %v342, %v342
    %v1289 = vpack.c.bf16 %v385, %v385
    %v1290 = vpack.c.bf16 %v425, %v425
    %v1291 = vpack.c.bf16 %v465, %v465
    %v1292 = vpack.c.bf16 %v505, %v505
    %vm1293 = vcmask 64512
    %v1295 = vsel %vm1293, %v1285, 0
    %v1298 = vsel %vm1293, %v1269, 0
    %1300 = vmatprep.subr.bf16.mxu0 0
    %1301 = vmatpush1.bf16.xpose.msra.mxu0 0
    %1302 = vmatprep.subr.bf16.mxu0 0
    %1303 = vmatpush1.bf16.xpose.msra.mxu0 0
    %1304 = vmatprep.subr.bf16.mxu0 0
    %1305 = vmatpush1.bf16.xpose.msra.mxu0 0
    %1306 = vmatprep.subr.bf16.mxu0 0
    %1307 = vmatpush1.bf16.xpose.msra.mxu0 0
    %1308 = vmatprep.subr.bf16.mxu0 0
    %1309 = vmatpush1.bf16.xpose.msra.mxu0 0
    %1310 = vmatprep.subr.bf16.mxu0 0
    %1311 = vmatpush1.bf16.xpose.msra.mxu0 0
    %1312 = vmatprep.subr.bf16.mxu0 0
    %1313 = vmatpush1.bf16.xpose.msra.mxu0 0
    %1314 = vmatprep.subr.bf16.mxu0 0
    %1315 = vmatpush1.bf16.xpose.msra.mxu0 %v1298
    %1316 = vmatprep.subr.bf16.mxu0 0
    %1317 = vmatpush2.bf16.xpose.msra.mxu0 0
    %1318 = vmatprep.subr.bf16.mxu0 0
    %1319 = vmatpush2.bf16.xpose.msra.mxu0 0
    %1320 = vmatprep.subr.bf16.mxu0 0
    %1321 = vmatpush2.bf16.xpose.msra.mxu0 0
    %1322 = vmatprep.subr.bf16.mxu0 0
    %1323 = vmatpush2.bf16.xpose.msra.mxu0 0
    %1324 = vmatprep.subr.bf16.mxu0 0
    %1325 = vmatpush2.bf16.xpose.msra.mxu0 0
    %1326 = vmatprep.subr.bf16.mxu0 0
    %1327 = vmatpush2.bf16.xpose.msra.mxu0 0
    %1328 = vmatprep.subr.bf16.mxu0 0
    %1329 = vmatpush2.bf16.xpose.msra.mxu0 0
    %1330 = vmatprep.subr.bf16.mxu0 0
    %1331 = vmatpush2.bf16.xpose.msra.mxu0 0
    %1332 = vmatprep.mubr.bf16.mxu0 0
    %1333 = vmatmul.mubr.bf16.gmra.mxu0 %v1295
    %v1334 = vpop.f32.mrf.mxu0
    %v1335 = vadd.f32 0.0, %v1334
    %v1336 = vpop.f32.mrf.mxu0
    %v1337 = vpop.f32.mrf.mxu0
    %v1338 = vpop.f32.mrf.mxu0
    %1339 = vdwg.mxu0
    %v1341 = vsel %vm1293, %v1286, 0
    %v1344 = vsel %vm1293, %v1270, 0
    %1346 = vmatprep.subr.bf16.mxu0 0
    %1347 = vmatpush1.bf16.xpose.msra.mxu0 0
    %1348 = vmatprep.subr.bf16.mxu0 0
    %1349 = vmatpush1.bf16.xpose.msra.mxu0 0
    %1350 = vmatprep.subr.bf16.mxu0 0
    %1351 = vmatpush1.bf16.xpose.msra.mxu0 0
    %1352 = vmatprep.subr.bf16.mxu0 0
    %1353 = vmatpush1.bf16.xpose.msra.mxu0 0
    %1354 = vmatprep.subr.bf16.mxu0 0
    %1355 = vmatpush1.bf16.xpose.msra.mxu0 0
    %1356 = vmatprep.subr.bf16.mxu0 0
    %1357 = vmatpush1.bf16.xpose.msra.mxu0 0
    %1358 = vmatprep.subr.bf16.mxu0 0
    %1359 = vmatpush1.bf16.xpose.msra.mxu0 0
    %1360 = vmatprep.subr.bf16.mxu0 0
    %1361 = vmatpush1.bf16.xpose.msra.mxu0 %v1344
    %1362 = vmatprep.subr.bf16.mxu0 0
    %1363 = vmatpush2.bf16.xpose.msra.mxu0 0
    %1364 = vmatprep.subr.bf16.mxu0 0
    %1365 = vmatpush2.bf16.xpose.msra.mxu0 0
    %1366 = vmatprep.subr.bf16.mxu0 0
    %1367 = vmatpush2.bf16.xpose.msra.mxu0 0
    %1368 = vmatprep.subr.bf16.mxu0 0
    %1369 = vmatpush2.bf16.xpose.msra.mxu0 0
    %1370 = vmatprep.subr.bf16.mxu0 0
    %1371 = vmatpush2.bf16.xpose.msra.mxu0 0
    %1372 = vmatprep.subr.bf16.mxu0 0
    %1373 = vmatpush2.bf16.xpose.msra.mxu0 0
    %1374 = vmatprep.subr.bf16.mxu0 0
    %1375 = vmatpush2.bf16.xpose.msra.mxu0 0
    %1376 = vmatprep.subr.bf16.mxu0 0
    %1377 = vmatpush2.bf16.xpose.msra.mxu0 0
    %1378 = vmatprep.mubr.bf16.mxu0 0
    %1379 = vmatmul.mubr.bf16.gmra.mxu0 %v1341
    %v1380 = vpop.f32.mrf.mxu0
    %v1381 = vadd.f32 0.0, %v1380
    %v1382 = vpop.f32.mrf.mxu0
    %v1383 = vpop.f32.mrf.mxu0
    %v1384 = vpop.f32.mrf.mxu0
    %1385 = vdwg.mxu0
    %v1387 = vsel %vm1293, %v1287, 0
    %v1390 = vsel %vm1293, %v1271, 0
    %1392 = vmatprep.subr.bf16.mxu0 0
    %1393 = vmatpush1.bf16.xpose.msra.mxu0 0
    %1394 = vmatprep.subr.bf16.mxu0 0
    %1395 = vmatpush1.bf16.xpose.msra.mxu0 0
    %1396 = vmatprep.subr.bf16.mxu0 0
    %1397 = vmatpush1.bf16.xpose.msra.mxu0 0
    %1398 = vmatprep.subr.bf16.mxu0 0
    %1399 = vmatpush1.bf16.xpose.msra.mxu0 0
    %1400 = vmatprep.subr.bf16.mxu0 0
    %1401 = vmatpush1.bf16.xpose.msra.mxu0 0
    %1402 = vmatprep.subr.bf16.mxu0 0
    %1403 = vmatpush1.bf16.xpose.msra.mxu0 0
    %1404 = vmatprep.subr.bf16.mxu0 0
    %1405 = vmatpush1.bf16.xpose.msra.mxu0 0
    %1406 = vmatprep.subr.bf16.mxu0 0
    %1407 = vmatpush1.bf16.xpose.msra.mxu0 %v1390
    %1408 = vmatprep.subr.bf16.mxu0 0
    %1409 = vmatpush2.bf16.xpose.msra.mxu0 0
    %1410 = vmatprep.subr.bf16.mxu0 0
    %1411 = vmatpush2.bf16.xpose.msra.mxu0 0
    %1412 = vmatprep.subr.bf16.mxu0 0
    %1413 = vmatpush2.bf16.xpose.msra.mxu0 0
    %1414 = vmatprep.subr.bf16.mxu0 0
    %1415 = vmatpush2.bf16.xpose.msra.mxu0 0
    %1416 = vmatprep.subr.bf16.mxu0 0
    %1417 = vmatpush2.bf16.xpose.msra.mxu0 0
    %1418 = vmatprep.subr.bf16.mxu0 0
    %1419 = vmatpush2.bf16.xpose.msra.mxu0 0
    %1420 = vmatprep.subr.bf16.mxu0 0
    %1421 = vmatpush2.bf16.xpose.msra.mxu0 0
    %1422 = vmatprep.subr.bf16.mxu0 0
    %1423 = vmatpush2.bf16.xpose.msra.mxu0 0
    %1424 = vmatprep.mubr.bf16.mxu0 0
    %1425 = vmatmul.mubr.bf16.gmra.mxu0 %v1387
    %v1426 = vpop.f32.mrf.mxu0
    %v1427 = vadd.f32 0.0, %v1426
    %v1428 = vpop.f32.mrf.mxu0
    %v1429 = vpop.f32.mrf.mxu0
    %v1430 = vpop.f32.mrf.mxu0
    %1431 = vdwg.mxu0
    %v1433 = vsel %vm1293, %v1288, 0
    %v1436 = vsel %vm1293, %v1272, 0
    %1438 = vmatprep.subr.bf16.mxu0 0
    %1439 = vmatpush1.bf16.xpose.msra.mxu0 0
    %1440 = vmatprep.subr.bf16.mxu0 0
    %1441 = vmatpush1.bf16.xpose.msra.mxu0 0
    %1442 = vmatprep.subr.bf16.mxu0 0
    %1443 = vmatpush1.bf16.xpose.msra.mxu0 0
    %1444 = vmatprep.subr.bf16.mxu0 0
    %1445 = vmatpush1.bf16.xpose.msra.mxu0 0
    %1446 = vmatprep.subr.bf16.mxu0 0
    %1447 = vmatpush1.bf16.xpose.msra.mxu0 0
    %1448 = vmatprep.subr.bf16.mxu0 0
    %1449 = vmatpush1.bf16.xpose.msra.mxu0 0
    %1450 = vmatprep.subr.bf16.mxu0 0
    %1451 = vmatpush1.bf16.xpose.msra.mxu0 0
    %1452 = vmatprep.subr.bf16.mxu0 0
    %1453 = vmatpush1.bf16.xpose.msra.mxu0 %v1436
    %1454 = vmatprep.subr.bf16.mxu0 0
    %1455 = vmatpush2.bf16.xpose.msra.mxu0 0
    %1456 = vmatprep.subr.bf16.mxu0 0
    %1457 = vmatpush2.bf16.xpose.msra.mxu0 0
    %1458 = vmatprep.subr.bf16.mxu0 0
    %1459 = vmatpush2.bf16.xpose.msra.mxu0 0
    %1460 = vmatprep.subr.bf16.mxu0 0
    %1461 = vmatpush2.bf16.xpose.msra.mxu0 0
    %1462 = vmatprep.subr.bf16.mxu0 0
    %1463 = vmatpush2.bf16.xpose.msra.mxu0 0
    %1464 = vmatprep.subr.bf16.mxu0 0
    %1465 = vmatpush2.bf16.xpose.msra.mxu0 0
    %1466 = vmatprep.subr.bf16.mxu0 0
    %1467 = vmatpush2.bf16.xpose.msra.mxu0 0
    %1468 = vmatprep.subr.bf16.mxu0 0
    %1469 = vmatpush2.bf16.xpose.msra.mxu0 0
    %1470 = vmatprep.mubr.bf16.mxu0 0
    %1471 = vmatmul.mubr.bf16.gmra.mxu0 %v1433
    %v1472 = vpop.f32.mrf.mxu0
    %v1473 = vadd.f32 0.0, %v1472
    %v1474 = vpop.f32.mrf.mxu0
    %v1475 = vpop.f32.mrf.mxu0
    %v1476 = vpop.f32.mrf.mxu0
    %1477 = vdwg.mxu0
    %v1479 = vsel %vm1293, %v1289, 0
    %v1482 = vsel %vm1293, %v1273, 0
    %1484 = vmatprep.subr.bf16.mxu0 0
    %1485 = vmatpush1.bf16.xpose.msra.mxu0 0
    %1486 = vmatprep.subr.bf16.mxu0 0
    %1487 = vmatpush1.bf16.xpose.msra.mxu0 0
    %1488 = vmatprep.subr.bf16.mxu0 0
    %1489 = vmatpush1.bf16.xpose.msra.mxu0 0
    %1490 = vmatprep.subr.bf16.mxu0 0
    %1491 = vmatpush1.bf16.xpose.msra.mxu0 0
    %1492 = vmatprep.subr.bf16.mxu0 0
    %1493 = vmatpush1.bf16.xpose.msra.mxu0 0
    %1494 = vmatprep.subr.bf16.mxu0 0
    %1495 = vmatpush1.bf16.xpose.msra.mxu0 0
    %1496 = vmatprep.subr.bf16.mxu0 0
    %1497 = vmatpush1.bf16.xpose.msra.mxu0 0
    %1498 = vmatprep.subr.bf16.mxu0 0
    %1499 = vmatpush1.bf16.xpose.msra.mxu0 %v1482
    %1500 = vmatprep.subr.bf16.mxu0 0
    %1501 = vmatpush2.bf16.xpose.msra.mxu0 0
    %1502 = vmatprep.subr.bf16.mxu0 0
    %1503 = vmatpush2.bf16.xpose.msra.mxu0 0
    %1504 = vmatprep.subr.bf16.mxu0 0
    %1505 = vmatpush2.bf16.xpose.msra.mxu0 0
    %1506 = vmatprep.subr.bf16.mxu0 0
    %1507 = vmatpush2.bf16.xpose.msra.mxu0 0
    %1508 = vmatprep.subr.bf16.mxu0 0
    %1509 = vmatpush2.bf16.xpose.msra.mxu0 0
    %1510 = vmatprep.subr.bf16.mxu0 0
    %1511 = vmatpush2.bf16.xpose.msra.mxu0 0
    %1512 = vmatprep.subr.bf16.mxu0 0
    %1513 = vmatpush2.bf16.xpose.msra.mxu0 0
    %1514 = vmatprep.subr.bf16.mxu0 0
    %1515 = vmatpush2.bf16.xpose.msra.mxu0 0
    %1516 = vmatprep.mubr.bf16.mxu0 0
    %1517 = vmatmul.mubr.bf16.gmra.mxu0 %v1479
    %v1518 = vpop.f32.mrf.mxu0
    %v1519 = vadd.f32 0.0, %v1518
    %v1520 = vpop.f32.mrf.mxu0
    %v1521 = vpop.f32.mrf.mxu0
    %v1522 = vpop.f32.mrf.mxu0
    %1523 = vdwg.mxu0
    %v1525 = vsel %vm1293, %v1290, 0
    %v1528 = vsel %vm1293, %v1274, 0
    %1530 = vmatprep.subr.bf16.mxu0 0
    %1531 = vmatpush1.bf16.xpose.msra.mxu0 0
    %1532 = vmatprep.subr.bf16.mxu0 0
    %1533 = vmatpush1.bf16.xpose.msra.mxu0 0
    %1534 = vmatprep.subr.bf16.mxu0 0
    %1535 = vmatpush1.bf16.xpose.msra.mxu0 0
    %1536 = vmatprep.subr.bf16.mxu0 0
    %1537 = vmatpush1.bf16.xpose.msra.mxu0 0
    %1538 = vmatprep.subr.bf16.mxu0 0
    %1539 = vmatpush1.bf16.xpose.msra.mxu0 0
    %1540 = vmatprep.subr.bf16.mxu0 0
    %1541 = vmatpush1.bf16.xpose.msra.mxu0 0
    %1542 = vmatprep.subr.bf16.mxu0 0
    %1543 = vmatpush1.bf16.xpose.msra.mxu0 0
    %1544 = vmatprep.subr.bf16.mxu0 0
    %1545 = vmatpush1.bf16.xpose.msra.mxu0 %v1528
    %1546 = vmatprep.subr.bf16.mxu0 0
    %1547 = vmatpush2.bf16.xpose.msra.mxu0 0
    %1548 = vmatprep.subr.bf16.mxu0 0
    %1549 = vmatpush2.bf16.xpose.msra.mxu0 0
    %1550 = vmatprep.subr.bf16.mxu0 0
    %1551 = vmatpush2.bf16.xpose.msra.mxu0 0
    %1552 = vmatprep.subr.bf16.mxu0 0
    %1553 = vmatpush2.bf16.xpose.msra.mxu0 0
    %1554 = vmatprep.subr.bf16.mxu0 0
    %1555 = vmatpush2.bf16.xpose.msra.mxu0 0
    %1556 = vmatprep.subr.bf16.mxu0 0
    %1557 = vmatpush2.bf16.xpose.msra.mxu0 0
    %1558 = vmatprep.subr.bf16.mxu0 0
    %1559 = vmatpush2.bf16.xpose.msra.mxu0 0
    %1560 = vmatprep.subr.bf16.mxu0 0
    %1561 = vmatpush2.bf16.xpose.msra.mxu0 0
    %1562 = vmatprep.mubr.bf16.mxu0 0
    %1563 = vmatmul.mubr.bf16.gmra.mxu0 %v1525
    %v1564 = vpop.f32.mrf.mxu0
    %v1565 = vadd.f32 0.0, %v1564
    %v1566 = vpop.f32.mrf.mxu0
    %v1567 = vpop.f32.mrf.mxu0
    %v1568 = vpop.f32.mrf.mxu0
    %1569 = vdwg.mxu0
    %v1571 = vsel %vm1293, %v1291, 0
    %v1574 = vsel %vm1293, %v1275, 0
    %1576 = vmatprep.subr.bf16.mxu0 0
    %1577 = vmatpush1.bf16.xpose.msra.mxu0 0
    %1578 = vmatprep.subr.bf16.mxu0 0
    %1579 = vmatpush1.bf16.xpose.msra.mxu0 0
    %1580 = vmatprep.subr.bf16.mxu0 0
    %1581 = vmatpush1.bf16.xpose.msra.mxu0 0
    %1582 = vmatprep.subr.bf16.mxu0 0
    %1583 = vmatpush1.bf16.xpose.msra.mxu0 0
    %1584 = vmatprep.subr.bf16.mxu0 0
    %1585 = vmatpush1.bf16.xpose.msra.mxu0 0
    %1586 = vmatprep.subr.bf16.mxu0 0
    %1587 = vmatpush1.bf16.xpose.msra.mxu0 0
    %1588 = vmatprep.subr.bf16.mxu0 0
    %1589 = vmatpush1.bf16.xpose.msra.mxu0 0
    %1590 = vmatprep.subr.bf16.mxu0 0
    %1591 = vmatpush1.bf16.xpose.msra.mxu0 %v1574
    %1592 = vmatprep.subr.bf16.mxu0 0
    %1593 = vmatpush2.bf16.xpose.msra.mxu0 0
    %1594 = vmatprep.subr.bf16.mxu0 0
    %1595 = vmatpush2.bf16.xpose.msra.mxu0 0
    %1596 = vmatprep.subr.bf16.mxu0 0
    %1597 = vmatpush2.bf16.xpose.msra.mxu0 0
    %1598 = vmatprep.subr.bf16.mxu0 0
    %1599 = vmatpush2.bf16.xpose.msra.mxu0 0
    %1600 = vmatprep.subr.bf16.mxu0 0
    %1601 = vmatpush2.bf16.xpose.msra.mxu0 0
    %1602 = vmatprep.subr.bf16.mxu0 0
    %1603 = vmatpush2.bf16.xpose.msra.mxu0 0
    %1604 = vmatprep.subr.bf16.mxu0 0
    %1605 = vmatpush2.bf16.xpose.msra.mxu0 0
    %1606 = vmatprep.subr.bf16.mxu0 0
    %1607 = vmatpush2.bf16.xpose.msra.mxu0 0
    %1608 = vmatprep.mubr.bf16.mxu0 0
    %1609 = vmatmul.mubr.bf16.gmra.mxu0 %v1571
    %v1610 = vpop.f32.mrf.mxu0
    %v1611 = vadd.f32 0.0, %v1610
    %v1612 = vpop.f32.mrf.mxu0
    %v1613 = vpop.f32.mrf.mxu0
    %v1614 = vpop.f32.mrf.mxu0
    %1615 = vdwg.mxu0
    %v1617 = vsel %vm1293, %v1292, 0
    %v1620 = vsel %vm1293, %v1276, 0
    %1622 = vmatprep.subr.bf16.mxu0 0
    %1623 = vmatpush1.bf16.xpose.msra.mxu0 0
    %1624 = vmatprep.subr.bf16.mxu0 0
    %1625 = vmatpush1.bf16.xpose.msra.mxu0 0
    %1626 = vmatprep.subr.bf16.mxu0 0
    %1627 = vmatpush1.bf16.xpose.msra.mxu0 0
    %1628 = vmatprep.subr.bf16.mxu0 0
    %1629 = vmatpush1.bf16.xpose.msra.mxu0 0
    %1630 = vmatprep.subr.bf16.mxu0 0
    %1631 = vmatpush1.bf16.xpose.msra.mxu0 0
    %1632 = vmatprep.subr.bf16.mxu0 0
    %1633 = vmatpush1.bf16.xpose.msra.mxu0 0
    %1634 = vmatprep.subr.bf16.mxu0 0
    %1635 = vmatpush1.bf16.xpose.msra.mxu0 0
    %1636 = vmatprep.subr.bf16.mxu0 0
    %1637 = vmatpush1.bf16.xpose.msra.mxu0 %v1620
    %1638 = vmatprep.subr.bf16.mxu0 0
    %1639 = vmatpush2.bf16.xpose.msra.mxu0 0
    %1640 = vmatprep.subr.bf16.mxu0 0
    %1641 = vmatpush2.bf16.xpose.msra.mxu0 0
    %1642 = vmatprep.subr.bf16.mxu0 0
    %1643 = vmatpush2.bf16.xpose.msra.mxu0 0
    %1644 = vmatprep.subr.bf16.mxu0 0
    %1645 = vmatpush2.bf16.xpose.msra.mxu0 0
    %1646 = vmatprep.subr.bf16.mxu0 0
    %1647 = vmatpush2.bf16.xpose.msra.mxu0 0
    %1648 = vmatprep.subr.bf16.mxu0 0
    %1649 = vmatpush2.bf16.xpose.msra.mxu0 0
    %1650 = vmatprep.subr.bf16.mxu0 0
    %1651 = vmatpush2.bf16.xpose.msra.mxu0 0
    %1652 = vmatprep.subr.bf16.mxu0 0
    %1653 = vmatpush2.bf16.xpose.msra.mxu0 0
    %1654 = vmatprep.mubr.bf16.mxu0 0
    %1655 = vmatmul.mubr.bf16.gmra.mxu0 %v1617
    %v1656 = vpop.f32.mrf.mxu0
    %v1657 = vadd.f32 0.0, %v1656
    %v1658 = vpop.f32.mrf.mxu0
    %v1659 = vpop.f32.mrf.mxu0
    %v1660 = vpop.f32.mrf.mxu0
    %1661 = vdwg.mxu0
    %v1662 = vmul.f32 %v1335, 0.35355338
    %v1663 = vmul.f32 %v1381, 0.35355338
    %v1664 = vmul.f32 %v1427, 0.35355338
    %v1665 = vmul.f32 %v1473, 0.35355338
    %v1666 = vmul.f32 %v1519, 0.35355338
    %v1667 = vmul.f32 %v1565, 0.35355338
    %v1668 = vmul.f32 %v1611, 0.35355338
    %v1669 = vmul.f32 %v1657, 0.35355338
    %v1670 = vsel %vm1293, %v1662, -inf
    %1671 = vmax.xlane.f32.xlu0 %v1670
    %v1672 = vpop.xlane.xlu0 %1671
    %v1673 = vsel %vm1293, %v1663, -inf
    %1674 = vmax.xlane.f32.xlu0 %v1673
    %v1675 = vpop.xlane.xlu0 %1674
    %v1676 = vsel %vm1293, %v1664, -inf
    %1677 = vmax.xlane.f32.xlu0 %v1676
    %v1678 = vpop.xlane.xlu0 %1677
    %v1679 = vsel %vm1293, %v1665, -inf
    %1680 = vmax.xlane.f32.xlu0 %v1679
    %v1681 = vpop.xlane.xlu0 %1680
    %v1682 = vsel %vm1293, %v1666, -inf
    %1683 = vmax.xlane.f32.xlu0 %v1682
    %v1684 = vpop.xlane.xlu0 %1683
    %v1685 = vsel %vm1293, %v1667, -inf
    %1686 = vmax.xlane.f32.xlu0 %v1685
    %v1687 = vpop.xlane.xlu0 %1686
    %v1688 = vsel %vm1293, %v1668, -inf
    %1689 = vmax.xlane.f32.xlu0 %v1688
    %v1690 = vpop.xlane.xlu0 %1689
    %v1691 = vsel %vm1293, %v1669, -inf
    %1692 = vmax.xlane.f32.xlu0 %v1691
    %v1693 = vpop.xlane.xlu0 %1692
    %v1694 = vsub.f32 %v1662, %v1672
    %v1695 = vsub.f32 %v1663, %v1675
    %v1696 = vsub.f32 %v1664, %v1678
    %v1697 = vsub.f32 %v1665, %v1681
    %v1698 = vsub.f32 %v1666, %v1684
    %v1699 = vsub.f32 %v1667, %v1687
    %v1700 = vsub.f32 %v1668, %v1690
    %v1701 = vsub.f32 %v1669, %v1693
    %v1702 = vmul.f32 %v1694, 1.442695
    %v1703 = vpow.pop %v1702
    %v1704 = vmul.f32 %v1695, 1.442695
    %v1705 = vpow.pop %v1704
    %v1706 = vmul.f32 %v1696, 1.442695
    %v1707 = vpow.pop %v1706
    %v1708 = vmul.f32 %v1697, 1.442695
    %v1709 = vpow.pop %v1708
    %v1710 = vmul.f32 %v1698, 1.442695
    %v1711 = vpow.pop %v1710
    %v1712 = vmul.f32 %v1699, 1.442695
    %v1713 = vpow.pop %v1712
    %v1714 = vmul.f32 %v1700, 1.442695
    %v1715 = vpow.pop %v1714
    %v1716 = vmul.f32 %v1701, 1.442695
    %v1717 = vpow.pop %v1716
    %v1718 = vsel %vm1293, %v1703, 0.0
    %1719 = vadd.xlane.f32.xlu0 %v1718
    %v1720 = vpop.xlane.xlu0 %1719
    %v1721 = vsel %vm1293, %v1705, 0.0
    %1722 = vadd.xlane.f32.xlu0 %v1721
    %v1723 = vpop.xlane.xlu0 %1722
    %v1724 = vsel %vm1293, %v1707, 0.0
    %1725 = vadd.xlane.f32.xlu0 %v1724
    %v1726 = vpop.xlane.xlu0 %1725
    %v1727 = vsel %vm1293, %v1709, 0.0
    %1728 = vadd.xlane.f32.xlu0 %v1727
    %v1729 = vpop.xlane.xlu0 %1728
    %v1730 = vsel %vm1293, %v1711, 0.0
    %1731 = vadd.xlane.f32.xlu0 %v1730
    %v1732 = vpop.xlane.xlu0 %1731
    %v1733 = vsel %vm1293, %v1713, 0.0
    %1734 = vadd.xlane.f32.xlu0 %v1733
    %v1735 = vpop.xlane.xlu0 %1734
    %v1736 = vsel %vm1293, %v1715, 0.0
    %1737 = vadd.xlane.f32.xlu0 %v1736
    %v1738 = vpop.xlane.xlu0 %1737
    %v1739 = vsel %vm1293, %v1717, 0.0
    %1740 = vadd.xlane.f32.xlu0 %v1739
    %v1741 = vpop.xlane.xlu0 %1740
    %v1742 = vrcp.pop %v1720
    %v1743 = vrcp.pop %v1723
    %v1744 = vrcp.pop %v1726
    %v1745 = vrcp.pop %v1729
    %v1746 = vrcp.pop %v1732
    %v1747 = vrcp.pop %v1735
    %v1748 = vrcp.pop %v1738
    %v1749 = vrcp.pop %v1741
    %v1750 = vmul.f32 %v1703, %v1742
    %v1751 = vmul.f32 %v1705, %v1743
    %v1752 = vmul.f32 %v1707, %v1744
    %v1753 = vmul.f32 %v1709, %v1745
    %v1754 = vmul.f32 %v1711, %v1746
    %v1755 = vmul.f32 %v1713, %v1747
    %v1756 = vmul.f32 %v1715, %v1748
    %v1757 = vmul.f32 %v1717, %v1749
    %v1758 = vpack.c.bf16 %v1750, %v1750
    %v1759 = vpack.c.bf16 %v1751, %v1751
    %v1760 = vpack.c.bf16 %v1752, %v1752
    %v1761 = vpack.c.bf16 %v1753, %v1753
    %v1762 = vpack.c.bf16 %v1754, %v1754
    %v1763 = vpack.c.bf16 %v1755, %v1755
    %v1764 = vpack.c.bf16 %v1756, %v1756
    %v1765 = vpack.c.bf16 %v1757, %v1757
    %v1767 = vsel %vm1293, %v1758, 0
    %vm1769 = vcmask 1043456
    %v1771 = vsel %vm1769, %v1277, 0
    %1773 = vmatprep.subr.bf16.mxu0 0
    %1774 = vmatpush1.bf16.msra.mxu0 0
    %1775 = vmatprep.subr.bf16.mxu0 0
    %1776 = vmatpush1.bf16.msra.mxu0 0
    %1777 = vmatprep.subr.bf16.mxu0 0
    %1778 = vmatpush1.bf16.msra.mxu0 0
    %1779 = vmatprep.subr.bf16.mxu0 0
    %1780 = vmatpush1.bf16.msra.mxu0 0
    %1781 = vmatprep.subr.bf16.mxu0 0
    %1782 = vmatpush1.bf16.msra.mxu0 0
    %1783 = vmatprep.subr.bf16.mxu0 0
    %1784 = vmatpush1.bf16.msra.mxu0 0
    %1785 = vmatprep.subr.bf16.mxu0 0
    %1786 = vmatpush1.bf16.msra.mxu0 0
    %1787 = vmatprep.subr.bf16.mxu0 0
    %1788 = vmatpush1.bf16.msra.mxu0 %v1771
    %1789 = vmatprep.subr.bf16.mxu0 0
    %1790 = vmatpush2.bf16.msra.mxu0 0
    %1791 = vmatprep.subr.bf16.mxu0 0
    %1792 = vmatpush2.bf16.msra.mxu0 0
    %1793 = vmatprep.subr.bf16.mxu0 0
    %1794 = vmatpush2.bf16.msra.mxu0 0
    %1795 = vmatprep.subr.bf16.mxu0 0
    %1796 = vmatpush2.bf16.msra.mxu0 0
    %1797 = vmatprep.subr.bf16.mxu0 0
    %1798 = vmatpush2.bf16.msra.mxu0 0
    %1799 = vmatprep.subr.bf16.mxu0 0
    %1800 = vmatpush2.bf16.msra.mxu0 0
    %1801 = vmatprep.subr.bf16.mxu0 0
    %1802 = vmatpush2.bf16.msra.mxu0 0
    %1803 = vmatprep.subr.bf16.mxu0 0
    %1804 = vmatpush2.bf16.msra.mxu0 0
    %1805 = vmatprep.mubr.bf16.mxu0 0
    %1806 = vmatmul.mubr.bf16.gmra.mxu0 %v1767
    %v1807 = vpop.f32.mrf.mxu0
    %v1808 = vadd.f32 0.0, %v1807
    %v1809 = vpop.f32.mrf.mxu0
    %v1810 = vpop.f32.mrf.mxu0
    %v1811 = vpop.f32.mrf.mxu0
    %1812 = vdwg.mxu0
    %v1814 = vsel %vm1293, %v1759, 0
    %v1817 = vsel %vm1769, %v1278, 0
    %1819 = vmatprep.subr.bf16.mxu0 0
    %1820 = vmatpush1.bf16.msra.mxu0 0
    %1821 = vmatprep.subr.bf16.mxu0 0
    %1822 = vmatpush1.bf16.msra.mxu0 0
    %1823 = vmatprep.subr.bf16.mxu0 0
    %1824 = vmatpush1.bf16.msra.mxu0 0
    %1825 = vmatprep.subr.bf16.mxu0 0
    %1826 = vmatpush1.bf16.msra.mxu0 0
    %1827 = vmatprep.subr.bf16.mxu0 0
    %1828 = vmatpush1.bf16.msra.mxu0 0
    %1829 = vmatprep.subr.bf16.mxu0 0
    %1830 = vmatpush1.bf16.msra.mxu0 0
    %1831 = vmatprep.subr.bf16.mxu0 0
    %1832 = vmatpush1.bf16.msra.mxu0 0
    %1833 = vmatprep.subr.bf16.mxu0 0
    %1834 = vmatpush1.bf16.msra.mxu0 %v1817
    %1835 = vmatprep.subr.bf16.mxu0 0
    %1836 = vmatpush2.bf16.msra.mxu0 0
    %1837 = vmatprep.subr.bf16.mxu0 0
    %1838 = vmatpush2.bf16.msra.mxu0 0
    %1839 = vmatprep.subr.bf16.mxu0 0
    %1840 = vmatpush2.bf16.msra.mxu0 0
    %1841 = vmatprep.subr.bf16.mxu0 0
    %1842 = vmatpush2.bf16.msra.mxu0 0
    %1843 = vmatprep.subr.bf16.mxu0 0
    %1844 = vmatpush2.bf16.msra.mxu0 0
    %1845 = vmatprep.subr.bf16.mxu0 0
    %1846 = vmatpush2.bf16.msra.mxu0 0
    %1847 = vmatprep.subr.bf16.mxu0 0
    %1848 = vmatpush2.bf16.msra.mxu0 0
    %1849 = vmatprep.subr.bf16.mxu0 0
    %1850 = vmatpush2.bf16.msra.mxu0 0
    %1851 = vmatprep.mubr.bf16.mxu0 0
    %1852 = vmatmul.mubr.bf16.gmra.mxu0 %v1814
    %v1853 = vpop.f32.mrf.mxu0
    %v1854 = vadd.f32 0.0, %v1853
    %v1855 = vpop.f32.mrf.mxu0
    %v1856 = vpop.f32.mrf.mxu0
    %v1857 = vpop.f32.mrf.mxu0
    %1858 = vdwg.mxu0
    %v1860 = vsel %vm1293, %v1760, 0
    %v1863 = vsel %vm1769, %v1279, 0
    %1865 = vmatprep.subr.bf16.mxu0 0
    %1866 = vmatpush1.bf16.msra.mxu0 0
    %1867 = vmatprep.subr.bf16.mxu0 0
    %1868 = vmatpush1.bf16.msra.mxu0 0
    %1869 = vmatprep.subr.bf16.mxu0 0
    %1870 = vmatpush1.bf16.msra.mxu0 0
    %1871 = vmatprep.subr.bf16.mxu0 0
    %1872 = vmatpush1.bf16.msra.mxu0 0
    %1873 = vmatprep.subr.bf16.mxu0 0
    %1874 = vmatpush1.bf16.msra.mxu0 0
    %1875 = vmatprep.subr.bf16.mxu0 0
    %1876 = vmatpush1.bf16.msra.mxu0 0
    %1877 = vmatprep.subr.bf16.mxu0 0
    %1878 = vmatpush1.bf16.msra.mxu0 0
    %1879 = vmatprep.subr.bf16.mxu0 0
    %1880 = vmatpush1.bf16.msra.mxu0 %v1863
    %1881 = vmatprep.subr.bf16.mxu0 0
    %1882 = vmatpush2.bf16.msra.mxu0 0
    %1883 = vmatprep.subr.bf16.mxu0 0
    %1884 = vmatpush2.bf16.msra.mxu0 0
    %1885 = vmatprep.subr.bf16.mxu0 0
    %1886 = vmatpush2.bf16.msra.mxu0 0
    %1887 = vmatprep.subr.bf16.mxu0 0
    %1888 = vmatpush2.bf16.msra.mxu0 0
    %1889 = vmatprep.subr.bf16.mxu0 0
    %1890 = vmatpush2.bf16.msra.mxu0 0
    %1891 = vmatprep.subr.bf16.mxu0 0
    %1892 = vmatpush2.bf16.msra.mxu0 0
    %1893 = vmatprep.subr.bf16.mxu0 0
    %1894 = vmatpush2.bf16.msra.mxu0 0
    %1895 = vmatprep.subr.bf16.mxu0 0
    %1896 = vmatpush2.bf16.msra.mxu0 0
    %1897 = vmatprep.mubr.bf16.mxu0 0
    %1898 = vmatmul.mubr.bf16.gmra.mxu0 %v1860
    %v1899 = vpop.f32.mrf.mxu0
    %v1900 = vadd.f32 0.0, %v1899
    %v1901 = vpop.f32.mrf.mxu0
    %v1902 = vpop.f32.mrf.mxu0
    %v1903 = vpop.f32.mrf.mxu0
    %1904 = vdwg.mxu0
    %v1906 = vsel %vm1293, %v1761, 0
    %v1909 = vsel %vm1769, %v1280, 0
    %1911 = vmatprep.subr.bf16.mxu0 0
    %1912 = vmatpush1.bf16.msra.mxu0 0
    %1913 = vmatprep.subr.bf16.mxu0 0
    %1914 = vmatpush1.bf16.msra.mxu0 0
    %1915 = vmatprep.subr.bf16.mxu0 0
    %1916 = vmatpush1.bf16.msra.mxu0 0
    %1917 = vmatprep.subr.bf16.mxu0 0
    %1918 = vmatpush1.bf16.msra.mxu0 0
    %1919 = vmatprep.subr.bf16.mxu0 0
    %1920 = vmatpush1.bf16.msra.mxu0 0
    %1921 = vmatprep.subr.bf16.mxu0 0
    %1922 = vmatpush1.bf16.msra.mxu0 0
    %1923 = vmatprep.subr.bf16.mxu0 0
    %1924 = vmatpush1.bf16.msra.mxu0 0
    %1925 = vmatprep.subr.bf16.mxu0 0
    %1926 = vmatpush1.bf16.msra.mxu0 %v1909
    %1927 = vmatprep.subr.bf16.mxu0 0
    %1928 = vmatpush2.bf16.msra.mxu0 0
    %1929 = vmatprep.subr.bf16.mxu0 0
    %1930 = vmatpush2.bf16.msra.mxu0 0
    %1931 = vmatprep.subr.bf16.mxu0 0
    %1932 = vmatpush2.bf16.msra.mxu0 0
    %1933 = vmatprep.subr.bf16.mxu0 0
    %1934 = vmatpush2.bf16.msra.mxu0 0
    %1935 = vmatprep.subr.bf16.mxu0 0
    %1936 = vmatpush2.bf16.msra.mxu0 0
    %1937 = vmatprep.subr.bf16.mxu0 0
    %1938 = vmatpush2.bf16.msra.mxu0 0
    %1939 = vmatprep.subr.bf16.mxu0 0
    %1940 = vmatpush2.bf16.msra.mxu0 0
    %1941 = vmatprep.subr.bf16.mxu0 0
    %1942 = vmatpush2.bf16.msra.mxu0 0
    %1943 = vmatprep.mubr.bf16.mxu0 0
    %1944 = vmatmul.mubr.bf16.gmra.mxu0 %v1906
    %v1945 = vpop.f32.mrf.mxu0
    %v1946 = vadd.f32 0.0, %v1945
    %v1947 = vpop.f32.mrf.mxu0
    %v1948 = vpop.f32.mrf.mxu0
    %v1949 = vpop.f32.mrf.mxu0
    %1950 = vdwg.mxu0
    %v1952 = vsel %vm1293, %v1762, 0
    %v1955 = vsel %vm1769, %v1281, 0
    %1957 = vmatprep.subr.bf16.mxu0 0
    %1958 = vmatpush1.bf16.msra.mxu0 0
    %1959 = vmatprep.subr.bf16.mxu0 0
    %1960 = vmatpush1.bf16.msra.mxu0 0
    %1961 = vmatprep.subr.bf16.mxu0 0
    %1962 = vmatpush1.bf16.msra.mxu0 0
    %1963 = vmatprep.subr.bf16.mxu0 0
    %1964 = vmatpush1.bf16.msra.mxu0 0
    %1965 = vmatprep.subr.bf16.mxu0 0
    %1966 = vmatpush1.bf16.msra.mxu0 0
    %1967 = vmatprep.subr.bf16.mxu0 0
    %1968 = vmatpush1.bf16.msra.mxu0 0
    %1969 = vmatprep.subr.bf16.mxu0 0
    %1970 = vmatpush1.bf16.msra.mxu0 0
    %1971 = vmatprep.subr.bf16.mxu0 0
    %1972 = vmatpush1.bf16.msra.mxu0 %v1955
    %1973 = vmatprep.subr.bf16.mxu0 0
    %1974 = vmatpush2.bf16.msra.mxu0 0
    %1975 = vmatprep.subr.bf16.mxu0 0
    %1976 = vmatpush2.bf16.msra.mxu0 0
    %1977 = vmatprep.subr.bf16.mxu0 0
    %1978 = vmatpush2.bf16.msra.mxu0 0
    %1979 = vmatprep.subr.bf16.mxu0 0
    %1980 = vmatpush2.bf16.msra.mxu0 0
    %1981 = vmatprep.subr.bf16.mxu0 0
    %1982 = vmatpush2.bf16.msra.mxu0 0
    %1983 = vmatprep.subr.bf16.mxu0 0
    %1984 = vmatpush2.bf16.msra.mxu0 0
    %1985 = vmatprep.subr.bf16.mxu0 0
    %1986 = vmatpush2.bf16.msra.mxu0 0
    %1987 = vmatprep.subr.bf16.mxu0 0
    %1988 = vmatpush2.bf16.msra.mxu0 0
    %1989 = vmatprep.mubr.bf16.mxu0 0
    %1990 = vmatmul.mubr.bf16.gmra.mxu0 %v1952
    %v1991 = vpop.f32.mrf.mxu0
    %v1992 = vadd.f32 0.0, %v1991
    %v1993 = vpop.f32.mrf.mxu0
    %v1994 = vpop.f32.mrf.mxu0
    %v1995 = vpop.f32.mrf.mxu0
    %1996 = vdwg.mxu0
    %v1998 = vsel %vm1293, %v1763, 0
    %v2001 = vsel %vm1769, %v1282, 0
    %2003 = vmatprep.subr.bf16.mxu0 0
    %2004 = vmatpush1.bf16.msra.mxu0 0
    %2005 = vmatprep.subr.bf16.mxu0 0
    %2006 = vmatpush1.bf16.msra.mxu0 0
    %2007 = vmatprep.subr.bf16.mxu0 0
    %2008 = vmatpush1.bf16.msra.mxu0 0
    %2009 = vmatprep.subr.bf16.mxu0 0
    %2010 = vmatpush1.bf16.msra.mxu0 0
    %2011 = vmatprep.subr.bf16.mxu0 0
    %2012 = vmatpush1.bf16.msra.mxu0 0
    %2013 = vmatprep.subr.bf16.mxu0 0
    %2014 = vmatpush1.bf16.msra.mxu0 0
    %2015 = vmatprep.subr.bf16.mxu0 0
    %2016 = vmatpush1.bf16.msra.mxu0 0
    %2017 = vmatprep.subr.bf16.mxu0 0
    %2018 = vmatpush1.bf16.msra.mxu0 %v2001
    %2019 = vmatprep.subr.bf16.mxu0 0
    %2020 = vmatpush2.bf16.msra.mxu0 0
    %2021 = vmatprep.subr.bf16.mxu0 0
    %2022 = vmatpush2.bf16.msra.mxu0 0
    %2023 = vmatprep.subr.bf16.mxu0 0
    %2024 = vmatpush2.bf16.msra.mxu0 0
    %2025 = vmatprep.subr.bf16.mxu0 0
    %2026 = vmatpush2.bf16.msra.mxu0 0
    %2027 = vmatprep.subr.bf16.mxu0 0
    %2028 = vmatpush2.bf16.msra.mxu0 0
    %2029 = vmatprep.subr.bf16.mxu0 0
    %2030 = vmatpush2.bf16.msra.mxu0 0
    %2031 = vmatprep.subr.bf16.mxu0 0
    %2032 = vmatpush2.bf16.msra.mxu0 0
    %2033 = vmatprep.subr.bf16.mxu0 0
    %2034 = vmatpush2.bf16.msra.mxu0 0
    %2035 = vmatprep.mubr.bf16.mxu0 0
    %2036 = vmatmul.mubr.bf16.gmra.mxu0 %v1998
    %v2037 = vpop.f32.mrf.mxu0
    %v2038 = vadd.f32 0.0, %v2037
    %v2039 = vpop.f32.mrf.mxu0
    %v2040 = vpop.f32.mrf.mxu0
    %v2041 = vpop.f32.mrf.mxu0
    %2042 = vdwg.mxu0
    %v2044 = vsel %vm1293, %v1764, 0
    %v2047 = vsel %vm1769, %v1283, 0
    %2049 = vmatprep.subr.bf16.mxu0 0
    %2050 = vmatpush1.bf16.msra.mxu0 0
    %2051 = vmatprep.subr.bf16.mxu0 0
    %2052 = vmatpush1.bf16.msra.mxu0 0
    %2053 = vmatprep.subr.bf16.mxu0 0
    %2054 = vmatpush1.bf16.msra.mxu0 0
    %2055 = vmatprep.subr.bf16.mxu0 0
    %2056 = vmatpush1.bf16.msra.mxu0 0
    %2057 = vmatprep.subr.bf16.mxu0 0
    %2058 = vmatpush1.bf16.msra.mxu0 0
    %2059 = vmatprep.subr.bf16.mxu0 0
    %2060 = vmatpush1.bf16.msra.mxu0 0
    %2061 = vmatprep.subr.bf16.mxu0 0
    %2062 = vmatpush1.bf16.msra.mxu0 0
    %2063 = vmatprep.subr.bf16.mxu0 0
    %2064 = vmatpush1.bf16.msra.mxu0 %v2047
    %2065 = vmatprep.subr.bf16.mxu0 0
    %2066 = vmatpush2.bf16.msra.mxu0 0
    %2067 = vmatprep.subr.bf16.mxu0 0
    %2068 = vmatpush2.bf16.msra.mxu0 0
    %2069 = vmatprep.subr.bf16.mxu0 0
    %2070 = vmatpush2.bf16.msra.mxu0 0
    %2071 = vmatprep.subr.bf16.mxu0 0
    %2072 = vmatpush2.bf16.msra.mxu0 0
    %2073 = vmatprep.subr.bf16.mxu0 0
    %2074 = vmatpush2.bf16.msra.mxu0 0
    %2075 = vmatprep.subr.bf16.mxu0 0
    %2076 = vmatpush2.bf16.msra.mxu0 0
    %2077 = vmatprep.subr.bf16.mxu0 0
    %2078 = vmatpush2.bf16.msra.mxu0 0
    %2079 = vmatprep.subr.bf16.mxu0 0
    %2080 = vmatpush2.bf16.msra.mxu0 0
    %2081 = vmatprep.mubr.bf16.mxu0 0
    %2082 = vmatmul.mubr.bf16.gmra.mxu0 %v2044
    %v2083 = vpop.f32.mrf.mxu0
    %v2084 = vadd.f32 0.0, %v2083
    %v2085 = vpop.f32.mrf.mxu0
    %v2086 = vpop.f32.mrf.mxu0
    %v2087 = vpop.f32.mrf.mxu0
    %2088 = vdwg.mxu0
    %v2090 = vsel %vm1293, %v1765, 0
    %v2093 = vsel %vm1769, %v1284, 0
    %2095 = vmatprep.subr.bf16.mxu0 0
    %2096 = vmatpush1.bf16.msra.mxu0 0
    %2097 = vmatprep.subr.bf16.mxu0 0
    %2098 = vmatpush1.bf16.msra.mxu0 0
    %2099 = vmatprep.subr.bf16.mxu0 0
    %2100 = vmatpush1.bf16.msra.mxu0 0
    %2101 = vmatprep.subr.bf16.mxu0 0
    %2102 = vmatpush1.bf16.msra.mxu0 0
    %2103 = vmatprep.subr.bf16.mxu0 0
    %2104 = vmatpush1.bf16.msra.mxu0 0
    %2105 = vmatprep.subr.bf16.mxu0 0
    %2106 = vmatpush1.bf16.msra.mxu0 0
    %2107 = vmatprep.subr.bf16.mxu0 0
    %2108 = vmatpush1.bf16.msra.mxu0 0
    %2109 = vmatprep.subr.bf16.mxu0 0
    %2110 = vmatpush1.bf16.msra.mxu0 %v2093
    %2111 = vmatprep.subr.bf16.mxu0 0
    %2112 = vmatpush2.bf16.msra.mxu0 0
    %2113 = vmatprep.subr.bf16.mxu0 0
    %2114 = vmatpush2.bf16.msra.mxu0 0
    %2115 = vmatprep.subr.bf16.mxu0 0
    %2116 = vmatpush2.bf16.msra.mxu0 0
    %2117 = vmatprep.subr.bf16.mxu0 0
    %2118 = vmatpush2.bf16.msra.mxu0 0
    %2119 = vmatprep.subr.bf16.mxu0 0
    %2120 = vmatpush2.bf16.msra.mxu0 0
    %2121 = vmatprep.subr.bf16.mxu0 0
    %2122 = vmatpush2.bf16.msra.mxu0 0
    %2123 = vmatprep.subr.bf16.mxu0 0
    %2124 = vmatpush2.bf16.msra.mxu0 0
    %2125 = vmatprep.subr.bf16.mxu0 0
    %2126 = vmatpush2.bf16.msra.mxu0 0
    %2127 = vmatprep.mubr.bf16.mxu0 0
    %2128 = vmatmul.mubr.bf16.gmra.mxu0 %v2090
    %v2129 = vpop.f32.mrf.mxu0
    %v2130 = vadd.f32 0.0, %v2129
    %v2131 = vpop.f32.mrf.mxu0
    %v2132 = vpop.f32.mrf.mxu0
    %v2133 = vpop.f32.mrf.mxu0
    %2134 = vdwg.mxu0
    %v2135 = vld [vmem:[%s6] sm:$0xf]
    %v2136 = vld [vmem:[%s6 + $0x4] sm:$0xf]
    %v2137 = vld [vmem:[%s6 + $0x8] sm:$0xf]
    %v2138 = vld [vmem:[%s6 + $0xc] sm:$0xf]
    %v2139 = vpack.c.bf16 %v1808, %v1808
    %v2140 = vpack.c.bf16 %v1854, %v1854
    %v2141 = vpack.c.bf16 %v1900, %v1900
    %v2142 = vpack.c.bf16 %v1946, %v1946
    %v2143 = vpack.c.bf16 %v1992, %v1992
    %v2144 = vpack.c.bf16 %v2038, %v2038
    %v2145 = vpack.c.bf16 %v2084, %v2084
    %v2146 = vpack.c.bf16 %v2130, %v2130
    %v2148 = vsel %vm1293, %v2139, 0
    %v2151 = vsel %vm1769, %v2135, 0
    %2153 = vmatprep.subr.bf16.mxu0 0
    %2154 = vmatpush1.bf16.msra.mxu0 0
    %2155 = vmatprep.subr.bf16.mxu0 0
    %2156 = vmatpush1.bf16.msra.mxu0 0
    %2157 = vmatprep.subr.bf16.mxu0 0
    %2158 = vmatpush1.bf16.msra.mxu0 0
    %2159 = vmatprep.subr.bf16.mxu0 0
    %2160 = vmatpush1.bf16.msra.mxu0 0
    %2161 = vmatprep.subr.bf16.mxu0 0
    %2162 = vmatpush1.bf16.msra.mxu0 0
    %2163 = vmatprep.subr.bf16.mxu0 0
    %2164 = vmatpush1.bf16.msra.mxu0 0
    %2165 = vmatprep.subr.bf16.mxu0 0
    %2166 = vmatpush1.bf16.msra.mxu0 0
    %2167 = vmatprep.subr.bf16.mxu0 0
    %2168 = vmatpush1.bf16.msra.mxu0 %v2151
    %2169 = vmatprep.subr.bf16.mxu0 0
    %2170 = vmatpush2.bf16.msra.mxu0 0
    %2171 = vmatprep.subr.bf16.mxu0 0
    %2172 = vmatpush2.bf16.msra.mxu0 0
    %2173 = vmatprep.subr.bf16.mxu0 0
    %2174 = vmatpush2.bf16.msra.mxu0 0
    %2175 = vmatprep.subr.bf16.mxu0 0
    %2176 = vmatpush2.bf16.msra.mxu0 0
    %2177 = vmatprep.subr.bf16.mxu0 0
    %2178 = vmatpush2.bf16.msra.mxu0 0
    %2179 = vmatprep.subr.bf16.mxu0 0
    %2180 = vmatpush2.bf16.msra.mxu0 0
    %2181 = vmatprep.subr.bf16.mxu0 0
    %2182 = vmatpush2.bf16.msra.mxu0 0
    %2183 = vmatprep.subr.bf16.mxu0 0
    %2184 = vmatpush2.bf16.msra.mxu0 0
    %2185 = vmatprep.mubr.bf16.mxu0 0
    %2186 = vmatmul.mubr.bf16.gmra.mxu0 %v2148
    %v2187 = vpop.f32.mrf.mxu0
    %v2188 = vadd.f32 0.0, %v2187
    %v2189 = vpop.f32.mrf.mxu0
    %v2190 = vpop.f32.mrf.mxu0
    %v2191 = vpop.f32.mrf.mxu0
    %2192 = vdwg.mxu0
    %v2194 = vsel %vm1293, %v2140, 0
    %v2197 = vsel %vm1769, %v2136, 0
    %2199 = vmatprep.subr.bf16.mxu0 0
    %2200 = vmatpush1.bf16.msra.mxu0 0
    %2201 = vmatprep.subr.bf16.mxu0 0
    %2202 = vmatpush1.bf16.msra.mxu0 0
    %2203 = vmatprep.subr.bf16.mxu0 0
    %2204 = vmatpush1.bf16.msra.mxu0 0
    %2205 = vmatprep.subr.bf16.mxu0 0
    %2206 = vmatpush1.bf16.msra.mxu0 0
    %2207 = vmatprep.subr.bf16.mxu0 0
    %2208 = vmatpush1.bf16.msra.mxu0 0
    %2209 = vmatprep.subr.bf16.mxu0 0
    %2210 = vmatpush1.bf16.msra.mxu0 0
    %2211 = vmatprep.subr.bf16.mxu0 0
    %2212 = vmatpush1.bf16.msra.mxu0 0
    %2213 = vmatprep.subr.bf16.mxu0 0
    %2214 = vmatpush1.bf16.msra.mxu0 %v2197
    %2215 = vmatprep.subr.bf16.mxu0 0
    %2216 = vmatpush2.bf16.msra.mxu0 0
    %2217 = vmatprep.subr.bf16.mxu0 0
    %2218 = vmatpush2.bf16.msra.mxu0 0
    %2219 = vmatprep.subr.bf16.mxu0 0
    %2220 = vmatpush2.bf16.msra.mxu0 0
    %2221 = vmatprep.subr.bf16.mxu0 0
    %2222 = vmatpush2.bf16.msra.mxu0 0
    %2223 = vmatprep.subr.bf16.mxu0 0
    %2224 = vmatpush2.bf16.msra.mxu0 0
    %2225 = vmatprep.subr.bf16.mxu0 0
    %2226 = vmatpush2.bf16.msra.mxu0 0
    %2227 = vmatprep.subr.bf16.mxu0 0
    %2228 = vmatpush2.bf16.msra.mxu0 0
    %2229 = vmatprep.subr.bf16.mxu0 0
    %2230 = vmatpush2.bf16.msra.mxu0 0
    %2231 = vmatprep.mubr.bf16.mxu0 0
    %2232 = vmatmul.mubr.bf16.gmra.mxu0 %v2194
    %v2233 = vpop.f32.mrf.mxu0
    %v2234 = vadd.f32 0.0, %v2233
    %v2235 = vpop.f32.mrf.mxu0
    %v2236 = vpop.f32.mrf.mxu0
    %v2237 = vpop.f32.mrf.mxu0
    %2238 = vdwg.mxu0
    %v2240 = vsel %vm1293, %v2141, 0
    %v2243 = vsel %vm1769, %v2137, 0
    %2245 = vmatprep.subr.bf16.mxu0 0
    %2246 = vmatpush1.bf16.msra.mxu0 0
    %2247 = vmatprep.subr.bf16.mxu0 0
    %2248 = vmatpush1.bf16.msra.mxu0 0
    %2249 = vmatprep.subr.bf16.mxu0 0
    %2250 = vmatpush1.bf16.msra.mxu0 0
    %2251 = vmatprep.subr.bf16.mxu0 0
    %2252 = vmatpush1.bf16.msra.mxu0 0
    %2253 = vmatprep.subr.bf16.mxu0 0
    %2254 = vmatpush1.bf16.msra.mxu0 0
    %2255 = vmatprep.subr.bf16.mxu0 0
    %2256 = vmatpush1.bf16.msra.mxu0 0
    %2257 = vmatprep.subr.bf16.mxu0 0
    %2258 = vmatpush1.bf16.msra.mxu0 0
    %2259 = vmatprep.subr.bf16.mxu0 0
    %2260 = vmatpush1.bf16.msra.mxu0 %v2243
    %2261 = vmatprep.subr.bf16.mxu0 0
    %2262 = vmatpush2.bf16.msra.mxu0 0
    %2263 = vmatprep.subr.bf16.mxu0 0
    %2264 = vmatpush2.bf16.msra.mxu0 0
    %2265 = vmatprep.subr.bf16.mxu0 0
    %2266 = vmatpush2.bf16.msra.mxu0 0
    %2267 = vmatprep.subr.bf16.mxu0 0
    %2268 = vmatpush2.bf16.msra.mxu0 0
    %2269 = vmatprep.subr.bf16.mxu0 0
    %2270 = vmatpush2.bf16.msra.mxu0 0
    %2271 = vmatprep.subr.bf16.mxu0 0
    %2272 = vmatpush2.bf16.msra.mxu0 0
    %2273 = vmatprep.subr.bf16.mxu0 0
    %2274 = vmatpush2.bf16.msra.mxu0 0
    %2275 = vmatprep.subr.bf16.mxu0 0
    %2276 = vmatpush2.bf16.msra.mxu0 0
    %2277 = vmatprep.mubr.bf16.mxu0 0
    %2278 = vmatmul.mubr.bf16.gmra.mxu0 %v2240
    %v2279 = vpop.f32.mrf.mxu0
    %v2280 = vadd.f32 0.0, %v2279
    %v2281 = vpop.f32.mrf.mxu0
    %v2282 = vpop.f32.mrf.mxu0
    %v2283 = vpop.f32.mrf.mxu0
    %2284 = vdwg.mxu0
    %v2286 = vsel %vm1293, %v2142, 0
    %v2289 = vsel %vm1769, %v2138, 0
    %2291 = vmatprep.subr.bf16.mxu0 0
    %2292 = vmatpush1.bf16.msra.mxu0 0
    %2293 = vmatprep.subr.bf16.mxu0 0
    %2294 = vmatpush1.bf16.msra.mxu0 0
    %2295 = vmatprep.subr.bf16.mxu0 0
    %2296 = vmatpush1.bf16.msra.mxu0 0
    %2297 = vmatprep.subr.bf16.mxu0 0
    %2298 = vmatpush1.bf16.msra.mxu0 0
    %2299 = vmatprep.subr.bf16.mxu0 0
    %2300 = vmatpush1.bf16.msra.mxu0 0
    %2301 = vmatprep.subr.bf16.mxu0 0
    %2302 = vmatpush1.bf16.msra.mxu0 0
    %2303 = vmatprep.subr.bf16.mxu0 0
    %2304 = vmatpush1.bf16.msra.mxu0 0
    %2305 = vmatprep.subr.bf16.mxu0 0
    %2306 = vmatpush1.bf16.msra.mxu0 %v2289
    %2307 = vmatprep.subr.bf16.mxu0 0
    %2308 = vmatpush2.bf16.msra.mxu0 0
    %2309 = vmatprep.subr.bf16.mxu0 0
    %2310 = vmatpush2.bf16.msra.mxu0 0
    %2311 = vmatprep.subr.bf16.mxu0 0
    %2312 = vmatpush2.bf16.msra.mxu0 0
    %2313 = vmatprep.subr.bf16.mxu0 0
    %2314 = vmatpush2.bf16.msra.mxu0 0
    %2315 = vmatprep.subr.bf16.mxu0 0
    %2316 = vmatpush2.bf16.msra.mxu0 0
    %2317 = vmatprep.subr.bf16.mxu0 0
    %2318 = vmatpush2.bf16.msra.mxu0 0
    %2319 = vmatprep.subr.bf16.mxu0 0
    %2320 = vmatpush2.bf16.msra.mxu0 0
    %2321 = vmatprep.subr.bf16.mxu0 0
    %2322 = vmatpush2.bf16.msra.mxu0 0
    %2323 = vmatprep.mubr.bf16.mxu0 0
    %2324 = vmatmul.mubr.bf16.gmra.mxu0 %v2286
    %v2325 = vpop.f32.mrf.mxu0
    %v2326 = vadd.f32 0.0, %v2325
    %v2327 = vpop.f32.mrf.mxu0
    %v2328 = vpop.f32.mrf.mxu0
    %v2329 = vpop.f32.mrf.mxu0
    %2330 = vdwg.mxu0
    %v2332 = vsel %vm1293, %v2143, 0
    %2334 = vmatprep.subr.bf16.mxu0 0
    %2335 = vmatpush1.bf16.msra.mxu0 0
    %2336 = vmatprep.subr.bf16.mxu0 0
    %2337 = vmatpush1.bf16.msra.mxu0 0
    %2338 = vmatprep.subr.bf16.mxu0 0
    %2339 = vmatpush1.bf16.msra.mxu0 0
    %2340 = vmatprep.subr.bf16.mxu0 0
    %2341 = vmatpush1.bf16.msra.mxu0 0
    %2342 = vmatprep.subr.bf16.mxu0 0
    %2343 = vmatpush1.bf16.msra.mxu0 0
    %2344 = vmatprep.subr.bf16.mxu0 0
    %2345 = vmatpush1.bf16.msra.mxu0 0
    %2346 = vmatprep.subr.bf16.mxu0 0
    %2347 = vmatpush1.bf16.msra.mxu0 0
    %2348 = vmatprep.subr.bf16.mxu0 0
    %2349 = vmatpush1.bf16.msra.mxu0 %v2151
    %2350 = vmatprep.subr.bf16.mxu0 0
    %2351 = vmatpush2.bf16.msra.mxu0 0
    %2352 = vmatprep.subr.bf16.mxu0 0
    %2353 = vmatpush2.bf16.msra.mxu0 0
    %2354 = vmatprep.subr.bf16.mxu0 0
    %2355 = vmatpush2.bf16.msra.mxu0 0
    %2356 = vmatprep.subr.bf16.mxu0 0
    %2357 = vmatpush2.bf16.msra.mxu0 0
    %2358 = vmatprep.subr.bf16.mxu0 0
    %2359 = vmatpush2.bf16.msra.mxu0 0
    %2360 = vmatprep.subr.bf16.mxu0 0
    %2361 = vmatpush2.bf16.msra.mxu0 0
    %2362 = vmatprep.subr.bf16.mxu0 0
    %2363 = vmatpush2.bf16.msra.mxu0 0
    %2364 = vmatprep.subr.bf16.mxu0 0
    %2365 = vmatpush2.bf16.msra.mxu0 0
    %2366 = vmatprep.mubr.bf16.mxu0 0
    %2367 = vmatmul.mubr.bf16.gmra.mxu0 %v2332
    %v2368 = vpop.f32.mrf.mxu0
    %v2369 = vadd.f32 0.0, %v2368
    %v2370 = vpop.f32.mrf.mxu0
    %v2371 = vpop.f32.mrf.mxu0
    %v2372 = vpop.f32.mrf.mxu0
    %2373 = vdwg.mxu0
    %v2375 = vsel %vm1293, %v2144, 0
    %2377 = vmatprep.subr.bf16.mxu0 0
    %2378 = vmatpush1.bf16.msra.mxu0 0
    %2379 = vmatprep.subr.bf16.mxu0 0
    %2380 = vmatpush1.bf16.msra.mxu0 0
    %2381 = vmatprep.subr.bf16.mxu0 0
    %2382 = vmatpush1.bf16.msra.mxu0 0
    %2383 = vmatprep.subr.bf16.mxu0 0
    %2384 = vmatpush1.bf16.msra.mxu0 0
    %2385 = vmatprep.subr.bf16.mxu0 0
    %2386 = vmatpush1.bf16.msra.mxu0 0
    %2387 = vmatprep.subr.bf16.mxu0 0
    %2388 = vmatpush1.bf16.msra.mxu0 0
    %2389 = vmatprep.subr.bf16.mxu0 0
    %2390 = vmatpush1.bf16.msra.mxu0 0
    %2391 = vmatprep.subr.bf16.mxu0 0
    %2392 = vmatpush1.bf16.msra.mxu0 %v2197
    %2393 = vmatprep.subr.bf16.mxu0 0
    %2394 = vmatpush2.bf16.msra.mxu0 0
    %2395 = vmatprep.subr.bf16.mxu0 0
    %2396 = vmatpush2.bf16.msra.mxu0 0
    %2397 = vmatprep.subr.bf16.mxu0 0
    %2398 = vmatpush2.bf16.msra.mxu0 0
    %2399 = vmatprep.subr.bf16.mxu0 0
    %2400 = vmatpush2.bf16.msra.mxu0 0
    %2401 = vmatprep.subr.bf16.mxu0 0
    %2402 = vmatpush2.bf16.msra.mxu0 0
    %2403 = vmatprep.subr.bf16.mxu0 0
    %2404 = vmatpush2.bf16.msra.mxu0 0
    %2405 = vmatprep.subr.bf16.mxu0 0
    %2406 = vmatpush2.bf16.msra.mxu0 0
    %2407 = vmatprep.subr.bf16.mxu0 0
    %2408 = vmatpush2.bf16.msra.mxu0 0
    %2409 = vmatprep.mubr.bf16.mxu0 0
    %2410 = vmatmul.mubr.bf16.gmra.mxu0 %v2375
    %v2411 = vpop.f32.mrf.mxu0
    %v2412 = vadd.f32 0.0, %v2411
    %v2413 = vpop.f32.mrf.mxu0
    %v2414 = vpop.f32.mrf.mxu0
    %v2415 = vpop.f32.mrf.mxu0
    %2416 = vdwg.mxu0
    %v2418 = vsel %vm1293, %v2145, 0
    %2420 = vmatprep.subr.bf16.mxu0 0
    %2421 = vmatpush1.bf16.msra.mxu0 0
    %2422 = vmatprep.subr.bf16.mxu0 0
    %2423 = vmatpush1.bf16.msra.mxu0 0
    %2424 = vmatprep.subr.bf16.mxu0 0
    %2425 = vmatpush1.bf16.msra.mxu0 0
    %2426 = vmatprep.subr.bf16.mxu0 0
    %2427 = vmatpush1.bf16.msra.mxu0 0
    %2428 = vmatprep.subr.bf16.mxu0 0
    %2429 = vmatpush1.bf16.msra.mxu0 0
    %2430 = vmatprep.subr.bf16.mxu0 0
    %2431 = vmatpush1.bf16.msra.mxu0 0
    %2432 = vmatprep.subr.bf16.mxu0 0
    %2433 = vmatpush1.bf16.msra.mxu0 0
    %2434 = vmatprep.subr.bf16.mxu0 0
    %2435 = vmatpush1.bf16.msra.mxu0 %v2243
    %2436 = vmatprep.subr.bf16.mxu0 0
    %2437 = vmatpush2.bf16.msra.mxu0 0
    %2438 = vmatprep.subr.bf16.mxu0 0
    %2439 = vmatpush2.bf16.msra.mxu0 0
    %2440 = vmatprep.subr.bf16.mxu0 0
    %2441 = vmatpush2.bf16.msra.mxu0 0
    %2442 = vmatprep.subr.bf16.mxu0 0
    %2443 = vmatpush2.bf16.msra.mxu0 0
    %2444 = vmatprep.subr.bf16.mxu0 0
    %2445 = vmatpush2.bf16.msra.mxu0 0
    %2446 = vmatprep.subr.bf16.mxu0 0
    %2447 = vmatpush2.bf16.msra.mxu0 0
    %2448 = vmatprep.subr.bf16.mxu0 0
    %2449 = vmatpush2.bf16.msra.mxu0 0
    %2450 = vmatprep.subr.bf16.mxu0 0
    %2451 = vmatpush2.bf16.msra.mxu0 0
    %2452 = vmatprep.mubr.bf16.mxu0 0
    %2453 = vmatmul.mubr.bf16.gmra.mxu0 %v2418
    %v2454 = vpop.f32.mrf.mxu0
    %v2455 = vadd.f32 0.0, %v2454
    %v2456 = vpop.f32.mrf.mxu0
    %v2457 = vpop.f32.mrf.mxu0
    %v2458 = vpop.f32.mrf.mxu0
    %2459 = vdwg.mxu0
    %v2461 = vsel %vm1293, %v2146, 0
    %2463 = vmatprep.subr.bf16.mxu0 0
    %2464 = vmatpush1.bf16.msra.mxu0 0
    %2465 = vmatprep.subr.bf16.mxu0 0
    %2466 = vmatpush1.bf16.msra.mxu0 0
    %2467 = vmatprep.subr.bf16.mxu0 0
    %2468 = vmatpush1.bf16.msra.mxu0 0
    %2469 = vmatprep.subr.bf16.mxu0 0
    %2470 = vmatpush1.bf16.msra.mxu0 0
    %2471 = vmatprep.subr.bf16.mxu0 0
    %2472 = vmatpush1.bf16.msra.mxu0 0
    %2473 = vmatprep.subr.bf16.mxu0 0
    %2474 = vmatpush1.bf16.msra.mxu0 0
    %2475 = vmatprep.subr.bf16.mxu0 0
    %2476 = vmatpush1.bf16.msra.mxu0 0
    %2477 = vmatprep.subr.bf16.mxu0 0
    %2478 = vmatpush1.bf16.msra.mxu0 %v2289
    %2479 = vmatprep.subr.bf16.mxu0 0
    %2480 = vmatpush2.bf16.msra.mxu0 0
    %2481 = vmatprep.subr.bf16.mxu0 0
    %2482 = vmatpush2.bf16.msra.mxu0 0
    %2483 = vmatprep.subr.bf16.mxu0 0
    %2484 = vmatpush2.bf16.msra.mxu0 0
    %2485 = vmatprep.subr.bf16.mxu0 0
    %2486 = vmatpush2.bf16.msra.mxu0 0
    %2487 = vmatprep.subr.bf16.mxu0 0
    %2488 = vmatpush2.bf16.msra.mxu0 0
    %2489 = vmatprep.subr.bf16.mxu0 0
    %2490 = vmatpush2.bf16.msra.mxu0 0
    %2491 = vmatprep.subr.bf16.mxu0 0
    %2492 = vmatpush2.bf16.msra.mxu0 0
    %2493 = vmatprep.subr.bf16.mxu0 0
    %2494 = vmatpush2.bf16.msra.mxu0 0
    %2495 = vmatprep.mubr.bf16.mxu0 0
    %2496 = vmatmul.mubr.bf16.gmra.mxu0 %v2461
    %v2497 = vpop.f32.mrf.mxu0
    %v2498 = vadd.f32 0.0, %v2497
    %v2499 = vpop.f32.mrf.mxu0
    %v2500 = vpop.f32.mrf.mxu0
    %v2501 = vpop.f32.mrf.mxu0
    %2502 = vdwg.mxu0
    %v2503 = vsel %vm54, %v2188, 0.0
    %v2504 = vsel %vm54, %v2234, 0.0
    %v2505 = vadd.f32 %v2503, %v2504
    %v2506 = vsel %vm54, %v2280, 0.0
    %v2507 = vadd.f32 %v2505, %v2506
    %v2508 = vsel %vm54, %v2326, 0.0
    %v2509 = vadd.f32 %v2507, %v2508
    %v2510 = vsel %vm54, %v2369, 0.0
    %v2511 = vsel %vm54, %v2412, 0.0
    %v2512 = vadd.f32 %v2510, %v2511
    %v2513 = vsel %vm54, %v2455, 0.0
    %v2514 = vadd.f32 %v2512, %v2513
    %v2515 = vsel %vm54, %v2498, 0.0
    %v2516 = vadd.f32 %v2514, %v2515
    %v2517 = vlaneseq
    %v2518 = vshrl.u32 %v2517, 7
    %v2519 = vsub.s32 4, %v2518
    %v2520 = vrot.slane %v41, %v2519
    %v2521 = vadd.f32 %v2509, %v2520
    %v2522 = vadd.f32 %v2516, %v2520
    %v2523 = vadd.f32 %v37, %v2521
    %v2524 = vadd.f32 %v38, %v2522
    %v2525 = vsel %vm54, %v2523, 0.0
    %2526 = vadd.xlane.f32.xlu0 %v2525
    %v2527 = vpop.xlane.xlu0 %2526
    %v2528 = vsel %vm54, %v2524, 0.0
    %2529 = vadd.xlane.f32.xlu0 %v2528
    %v2530 = vpop.xlane.xlu0 %2529
    %v2531 = vmul.f32 %v2527, %v61
    %v2532 = vmul.f32 %v2530, %v61
    %v2533 = vsub.f32 %v2523, %v2531
    %v2534 = vsub.f32 %v2524, %v2532
    %v2535 = vmul.f32 %v2533, %v2533
    %v2536 = vmul.f32 %v2534, %v2534
    %v2537 = vsel %vm54, %v2535, 0.0
    %2538 = vadd.xlane.f32.xlu0 %v2537
    %v2539 = vpop.xlane.xlu0 %2538
    %v2540 = vsel %vm54, %v2536, 0.0
    %2541 = vadd.xlane.f32.xlu0 %v2540
    %v2542 = vpop.xlane.xlu0 %2541
    %v2543 = vmul.f32 %v2539, %v61
    %v2544 = vmul.f32 %v2542, %v61
    %v2545 = vadd.f32 %v2543, 1e-05
    %v2546 = vadd.f32 %v2544, 1e-05
    %v2547 = vrsqrt.pop %v2545
    %v2548 = vrsqrt.pop %v2546
    %v2549 = vmul.f32 %v2533, %v2547
    %v2550 = vmul.f32 %v2534, %v2548
    %v2551 = vlaneseq
    %v2552 = vshrl.u32 %v2551, 7
    %v2553 = vsub.s32 2, %v2552
    %v2554 = vrot.slane %v41, %v2553
    %v2555 = vmul.f32 %v2549, %v2554
    %v2556 = vmul.f32 %v2550, %v2554
    %v2557 = vlaneseq
    %v2558 = vshrl.u32 %v2557, 7
    %v2559 = vsub.s32 3, %v2558
    %v2560 = vrot.slane %v41, %v2559
    %v2561 = vadd.f32 %v2555, %v2560
    %v2562 = vadd.f32 %v2556, %v2560
    %v2563 = vpack.c.bf16 %v2562, %v2561
    %v2564 = vld [vmem:[%s7] sm:$0xf]
    %v2565 = vld [vmem:[%s7 + $0x4] sm:$0xf]
    %v2566 = vld [vmem:[%s7 + $0x8] sm:$0xf]
    %v2567 = vld [vmem:[%s7 + $0xc] sm:$0xf]
    %v2568 = vld [vmem:[%s8] sm:$0x1]
    %v2570 = vlaneseq
    %v2571 = vshrl.u32 %v2570, 7
    %v2572 = vsub.s32 0, %v2571
    %v2573 = vrot.slane %v2568, %v2572
    %v2579 = vunpack.c.l.b16 %v2564
    %v2580 = vunpack.c.l.b16 %v2565
    %v2581 = vunpack.c.l.b16 %v2566
    %v2582 = vunpack.c.l.b16 %v2567
    %v2583 = vpack.c.b16 %v2580, %v2579
    %v2584 = vpack.c.b16 %v2582, %v2581
    %v2588 = vsel %vm54, %v2563, 0
    %2590 = vmatprep.subr.bf16.mxu0 0
    %2591 = vmatpush1.bf16.msra.mxu0 0
    %2592 = vmatprep.subr.bf16.mxu0 0
    %2593 = vmatpush1.bf16.msra.mxu0 0
    %2594 = vmatprep.subr.bf16.mxu0 0
    %2595 = vmatpush1.bf16.msra.mxu0 0
    %2596 = vmatprep.subr.bf16.mxu0 0
    %2597 = vmatpush1.bf16.msra.mxu0 0
    %2598 = vmatprep.subr.bf16.mxu0 0
    %2599 = vmatpush1.bf16.msra.mxu0 0
    %2600 = vmatprep.subr.bf16.mxu0 0
    %2601 = vmatpush1.bf16.msra.mxu0 0
    %2602 = vmatprep.subr.bf16.mxu0 0
    %2603 = vmatpush1.bf16.msra.mxu0 %v2584
    %2604 = vmatprep.subr.bf16.mxu0 0
    %2605 = vmatpush1.bf16.msra.mxu0 %v2583
    %2606 = vmatprep.subr.bf16.mxu0 0
    %2607 = vmatpush2.bf16.msra.mxu0 0
    %2608 = vmatprep.subr.bf16.mxu0 0
    %2609 = vmatpush2.bf16.msra.mxu0 0
    %2610 = vmatprep.subr.bf16.mxu0 0
    %2611 = vmatpush2.bf16.msra.mxu0 0
    %2612 = vmatprep.subr.bf16.mxu0 0
    %2613 = vmatpush2.bf16.msra.mxu0 0
    %2614 = vmatprep.subr.bf16.mxu0 0
    %2615 = vmatpush2.bf16.msra.mxu0 0
    %2616 = vmatprep.subr.bf16.mxu0 0
    %2617 = vmatpush2.bf16.msra.mxu0 0
    %2618 = vmatprep.subr.bf16.mxu0 0
    %2619 = vmatpush2.bf16.msra.mxu0 0
    %2620 = vmatprep.subr.bf16.mxu0 0
    %2621 = vmatpush2.bf16.msra.mxu0 0
    %2622 = vmatprep.mubr.bf16.mxu0 0
    %2623 = vmatmul.mubr.bf16.gmra.mxu0 %v2588
    %v2624 = vpop.f32.mrf.mxu0
    %v2625 = vadd.f32 %v2573, %v2624
    %v2626 = vpop.f32.mrf.mxu0
    %v2627 = vpop.f32.mrf.mxu0
    %v2628 = vadd.f32 %v2573, %v2627
    %v2629 = vpop.f32.mrf.mxu0
    %2630 = vdwg.mxu0
    %v2631 = vmax.f32 %v2625, 0.0
    %v2632 = vmax.f32 %v2628, 0.0
    %v2633 = vpack.c.bf16 %v2632, %v2631
    %v2634 = vld [vmem:[%s9] sm:$0xf]
    %v2635 = vld [vmem:[%s9 + $0x4] sm:$0xf]
    %v2636 = vld [vmem:[%s9 + $0x8] sm:$0xf]
    %v2637 = vld [vmem:[%s9 + $0xc] sm:$0xf]
    %v2638 = vld [vmem:[%s9 + $0x10] sm:$0xf]
    %v2639 = vld [vmem:[%s9 + $0x14] sm:$0xf]
    %v2640 = vld [vmem:[%s9 + $0x18] sm:$0xf]
    %v2641 = vld [vmem:[%s9 + $0x1c] sm:$0xf]
    %v2642 = vlaneseq
    %v2643 = vshrl.u32 %v2642, 7
    %v2644 = vsub.s32 5, %v2643
    %v2645 = vrot.slane %v41, %v2644
    %v2654 = vunpack.c.l.b16 %v2634
    %v2655 = vunpack.c.l.b16 %v2635
    %v2656 = vunpack.c.l.b16 %v2636
    %v2657 = vunpack.c.l.b16 %v2637
    %v2658 = vunpack.c.l.b16 %v2638
    %v2659 = vunpack.c.l.b16 %v2639
    %v2660 = vunpack.c.l.b16 %v2640
    %v2661 = vunpack.c.l.b16 %v2641
    %v2662 = vpack.c.b16 %v2655, %v2654
    %v2663 = vpack.c.b16 %v2657, %v2656
    %v2664 = vpack.c.b16 %v2659, %v2658
    %v2665 = vpack.c.b16 %v2661, %v2660
    %vm2670 = vcmask 523264
    %v2672 = vsel %vm2670, %v2633, 0
    %2674 = vmatprep.subr.bf16.mxu0 0
    %2675 = vmatpush1.bf16.msra.mxu0 0
    %2676 = vmatprep.subr.bf16.mxu0 0
    %2677 = vmatpush1.bf16.msra.mxu0 0
    %2678 = vmatprep.subr.bf16.mxu0 0
    %2679 = vmatpush1.bf16.msra.mxu0 0
    %2680 = vmatprep.subr.bf16.mxu0 0
    %2681 = vmatpush1.bf16.msra.mxu0 0
    %2682 = vmatprep.subr.bf16.mxu0 0
    %2683 = vmatpush1.bf16.msra.mxu0 %v2665
    %2684 = vmatprep.subr.bf16.mxu0 0
    %2685 = vmatpush1.bf16.msra.mxu0 %v2664
    %2686 = vmatprep.subr.bf16.mxu0 0
    %2687 = vmatpush1.bf16.msra.mxu0 %v2663
    %2688 = vmatprep.subr.bf16.mxu0 0
    %2689 = vmatpush1.bf16.msra.mxu0 %v2662
    %2690 = vmatprep.subr.bf16.mxu0 0
    %2691 = vmatpush2.bf16.msra.mxu0 0
    %2692 = vmatprep.subr.bf16.mxu0 0
    %2693 = vmatpush2.bf16.msra.mxu0 0
    %2694 = vmatprep.subr.bf16.mxu0 0
    %2695 = vmatpush2.bf16.msra.mxu0 0
    %2696 = vmatprep.subr.bf16.mxu0 0
    %2697 = vmatpush2.bf16.msra.mxu0 0
    %2698 = vmatprep.subr.bf16.mxu0 0
    %2699 = vmatpush2.bf16.msra.mxu0 0
    %2700 = vmatprep.subr.bf16.mxu0 0
    %2701 = vmatpush2.bf16.msra.mxu0 0
    %2702 = vmatprep.subr.bf16.mxu0 0
    %2703 = vmatpush2.bf16.msra.mxu0 0
    %2704 = vmatprep.subr.bf16.mxu0 0
    %2705 = vmatpush2.bf16.msra.mxu0 0
    %2706 = vmatprep.mubr.bf16.mxu0 0
    %2707 = vmatmul.mubr.bf16.gmra.mxu0 %v2672
    %v2708 = vpop.f32.mrf.mxu0
    %v2709 = vadd.f32 %v2645, %v2708
    %v2710 = vpop.f32.mrf.mxu0
    %v2711 = vpop.f32.mrf.mxu0
    %v2712 = vadd.f32 %v2645, %v2711
    %v2713 = vpop.f32.mrf.mxu0
    %2714 = vdwg.mxu0
    %v2715 = vadd.f32 %v2523, %v2709
    %v2716 = vadd.f32 %v2524, %v2712
    %v2717 = vsel %vm54, %v2715, 0.0
    %2718 = vadd.xlane.f32.xlu0 %v2717
    %v2719 = vpop.xlane.xlu0 %2718
    %v2720 = vsel %vm54, %v2716, 0.0
    %2721 = vadd.xlane.f32.xlu0 %v2720
    %v2722 = vpop.xlane.xlu0 %2721
    %v2723 = vmul.f32 %v2719, %v61
    %v2724 = vmul.f32 %v2722, %v61
    %v2725 = vsub.f32 %v2715, %v2723
    %v2726 = vsub.f32 %v2716, %v2724
    %v2727 = vmul.f32 %v2725, %v2725
    %v2728 = vmul.f32 %v2726, %v2726
    %v2729 = vsel %vm54, %v2727, 0.0
    %2730 = vadd.xlane.f32.xlu0 %v2729
    %v2731 = vpop.xlane.xlu0 %2730
    %v2732 = vsel %vm54, %v2728, 0.0
    %2733 = vadd.xlane.f32.xlu0 %v2732
    %v2734 = vpop.xlane.xlu0 %2733
    %v2735 = vmul.f32 %v2731, %v61
    %v2736 = vmul.f32 %v2734, %v61
    %v2737 = vadd.f32 %v2735, 1e-05
    %v2738 = vadd.f32 %v2736, 1e-05
    %v2739 = vrsqrt.pop %v2737
    %v2740 = vrsqrt.pop %v2738
    %v2741 = vmul.f32 %v2725, %v2739
    %v2742 = vmul.f32 %v2726, %v2740
    %v2743 = vmul.f32 %v2741, %v2554
    %v2744 = vmul.f32 %v2742, %v2554
    %v2745 = vadd.f32 %v2743, %v2560
    %v2746 = vadd.f32 %v2744, %v2560
    %2747 = vst.msk [vmem:[#allocation2] sm:$0xff] %vm54, %v2745
    %2748 = vst.msk [vmem:[#allocation2 + $0x8] sm:$0xff] %vm54, %v2746
    // Predicated region
    $region42: #{tpu_custom_call.1} parent=1 // pred_check
      _
    $region43: #{tpu_custom_call.1} parent=1 // pred_check_branch
      %2750 = sbr.rel (0) target = $region45
    $region44: #{tpu_custom_call.1} parent=1 // pred_region
      %s2752 = ssub.s32 256, 256
      %2753 = vsyncadd [#allocation3], %s2752
      %s2754 = sshll.u32 [#allocation2], 4
      %s2755 = int_to_ptr.vmem [resolvable:$true] %s2754
      %2760 = dma.vmem_to_hbm [thread:$0]  %s2755, 256, %s10, [#allocation3], 128, 128, 8
    $region45: #{tpu_custom_call.1} parent=1 // pred_fallthru
      _
    // Predicated region
    $region46: #{tpu_custom_call.1} parent=1 // pred_check
      _
    $region47: #{tpu_custom_call.1} parent=1 // pred_check_branch
      %2762 = sbr.rel (0) target = $region49
    $region48: #{tpu_custom_call.1} parent=1 // pred_region
      %2763 = dma.done [#allocation3], 256
    $region49: #{tpu_custom_call.1} parent=1 // pred_fallthru
      _
    %2764 = vsyncpa [#allocation3], 1

</llo_original>
